<compile_context>
chip_gen: v7x
topology: tpu7x:2x2x1
jax: 0.10.0
libtpu: 0.0.40
codegen_flags: <defaults>
</compile_context>

<pallas_src>
import jax
import jax.numpy as jnp
from jax.experimental import pallas as pl
from jax.experimental.pallas import tpu as pltpu

BN_EPS = 1e-5
BOND_FEATURE_DIMS = (5, 6, 2)     # OGB-style bond-feature vocabulary sizes
LANE = 128
NUM_LAYERS = 3
MATMUL_DTYPE = jnp.float32        # see NOTE above; jnp.bfloat16 to opt in


def _round_up(n, m):
    return ((n + m - 1) // m) * m


def _pad2(a, rows, cols):
    """Zero-pad a 2-D array to (rows, cols), top-left aligned, f32."""
    a = jnp.asarray(a, jnp.float32)
    out = jnp.zeros((rows, cols), jnp.float32)
    return out.at[:a.shape[0], :a.shape[1]].set(a)


# ----------------------------- fused Pallas kernel ---------------------------

def _make_vgin_kernel(*, n_nodes, v_cnt, b_cnt, dp, d2p, op, offs):
    VB = v_cnt * b_cnt
    L = NUM_LAYERS
    F32 = jnp.float32

    def kernel(x_ref, src_ref, dstT_ref, bond_ref, pool_ref, a_ref, vn0_ref,
               lin_w_ref, w_up_ref, w_down_ref, bond_all_ref, head_w_ref,
               vec_ref, o_ref):

        def fdot(a, b):                       # small pooling / group matmuls, f32
            return jnp.dot(a, b, preferred_element_type=F32)

        def odot(onehot, dense):              # exact 0/1 one-hot (bf16) x dense
            return jnp.dot(onehot.astype(MATMUL_DTYPE),
                           dense.astype(MATMUL_DTYPE),
                           preferred_element_type=F32)

        def wdot(a, w):                       # activation x weight-slab slice
            return jnp.dot(a.astype(MATMUL_DTYPE), w,
                           preferred_element_type=F32)

        def vrow(name):                       # static row-slice of the param slab
            o, r, w = offs[name]
            return vec_ref[o:o + r, :w]

        def bn_nodes(z, g, b):                # BatchNorm1d over the node batch
            m = jnp.mean(z, axis=0, keepdims=True)
            v = jnp.mean((z - m) ** 2, axis=0, keepdims=True)
            return (z - m) * jax.lax.rsqrt(v + BN_EPS) * g + b

        # ---- VMEM-resident graph tensors (loaded once, sliced statically) ----
        src = src_ref[...]                    # [E, N]  bf16 0/1 (exact)
        dstT = dstT_ref[...]                  # [N, E]  bf16 0/1 (exact)
        at_m = pool_ref[0:VB, :]              # [VB, N] score_v * onehot(batch)^T
        bmean = pool_ref[VB:VB + b_cnt, :]    # [B, N]  onehot(batch)^T / count
        a_m = a_ref[0:n_nodes, :]             # [N, VB] score_v * onehot(batch)
        gmean = a_ref[n_nodes:n_nodes + VB, :]  # [VB, VB] per-vn group-mean matrix

        def bn_group(z, g, b):                # per-virtual-node BN over B graphs
            m = fdot(gmean, z)
            v = fdot(gmean, (z - m) ** 2)
            return (z - m) * jax.lax.rsqrt(v + BN_EPS) * g + b

        # BondEncoder for ALL three GIN layers in one [E,13]@[13,3*dp] matmul.
        eattr_all = odot(bond_ref[...], bond_all_ref[...])       # [E, 3*dp]

        # ------------------------------- forward ------------------------------
        h = wdot(x_ref[...], lin_w_ref[...]) + vrow('lin_b')     # h0 = lin(x)
        vemb = vn0_ref[...]                                      # [VB, dp]

        vtemp = fdot(at_m, h) + vemb                             # vn pooling
        h = h + fdot(a_m, vemb)                                  # vn injection

        for l in range(L):
            # ---- GINConv l: bond emb + relu message + scatter-add(dst) ----
            eattr = eattr_all[:, l * dp:(l + 1) * dp]
            x_j = odot(src, h)                                   # gather h[src]
            msg = jnp.maximum(x_j + eattr, 0.0)
            aggr = odot(dstT, msg)                               # scatter-add
            w1 = w_up_ref[l * dp:(l + 1) * dp, :]
            z = wdot(h + aggr, w1) + vrow(f'b1_{l}')             # (1+eps)*h + aggr
            z = jnp.maximum(bn_nodes(z, vrow(f'mg_{l}'), vrow(f'mb_{l}')), 0.0)
            w2 = w_down_ref[l * d2p:(l + 1) * d2p, :]
            h = wdot(z, w2) + vrow(f'b2_{l}')
            h = bn_nodes(h, vrow(f'og_{l}'), vrow(f'ob_{l}'))    # bn_l epilogue

            if l < L - 1:
                h = jnp.maximum(h, 0.0)                          # relu (layers 1,2)
                # ---- MLPVirtual l: all V virtual nodes in one matmul chain ----
                l1w = w_up_ref[(L + l) * dp:(L + l + 1) * dp, :]
                zz = wdot(vtemp, l1w) + vrow(f'vl1b_{l}')
                zz = jnp.maximum(
                    bn_group(zz, vrow(f'vg1_{l}'), vrow(f'vbe1_{l}')), 0.0)
                l2w = w_down_ref[(L + l) * d2p:(L + l + 1) * d2p, :]
                zz = wdot(zz, l2w) + vrow(f'vl2b_{l}')
                vemb = jnp.maximum(
                    bn_group(zz, vrow(f'vg2_{l}'), vrow(f'vbe2_{l}')), 0.0)
                if l == 0:
                    vtemp = fdot(at_m, h) + vemb                 # uses h before inject
                h = h + fdot(a_m, vemb)                          # vn injection
            # dropout(p=0.5): identity in inference mode

        # ---- vGIN head: global mean pool + Classifier ----
        g = fdot(bmean, h)                                       # [B, dp]
        c = jnp.maximum(fdot(g, head_w_ref[:, 0:dp]) + vrow('c1b'), 0.0)
        o_ref[...] = fdot(c, head_w_ref[:, dp:dp + op]) + vrow('c2b')

    return kernel


# ----------------------------------- wrapper ----------------------------------

def vgin_forward(params, x, edge_index, edge_attr, batch, score, vn):
    """Full vGIN forward (encoder + mean pool + classifier) in ONE pallas_call."""
    n, cin = x.shape
    v_cnt, d = vn.shape
    # NOTE: like the module's batch[-1].item() + 1, this needs a concrete, sorted
    # batch vector (fine in this harness; would force a sync under jit tracing).
    b_cnt = int(batch[-1]) + 1
    o_dim = params['c2_w'].shape[1]

    dp = _round_up(d, LANE)                 # padded feature width (lane-dense)
    d2p = _round_up(2 * d, LANE)            # padded GIN hidden width (NOT 2*dp)
    op = _round_up(o_dim, LANE)
    colw = max(dp, d2p, op)
    vb = v_cnt * b_cnt

    f32, bf16 = jnp.float32, jnp.bfloat16

    # ---- graph tensors (exact 0/1 one-hots stored as bf16: half the DMA) ----
    src_oh = jax.nn.one_hot(edge_index[0], n, dtype=bf16)           # [E, N]
    dst_oh_t = jax.nn.one_hot(edge_index[1], n, dtype=bf16).T       # [N, E]
    bond_oh = jnp.concatenate(
        [jax.nn.one_hot(edge_attr[:, i], vsz, dtype=bf16)
         for i, vsz in enumerate(BOND_FEATURE_DIMS)], axis=1)       # [E, 13]

    batch_oh = jax.nn.one_hot(batch, b_cnt, dtype=f32)              # [N, B]
    counts = jnp.sum(batch_oh, axis=0)                              # [B]
    bmean_t = batch_oh.T / counts[:, None]                          # [B, N]
    a_mat = (score[:, :, None] * batch_oh[:, None, :]).reshape(n, vb)   # [N, VB]
    # block-diagonal group-mean matrix for the per-virtual-node BatchNorms
    gmean = jnp.kron(jnp.eye(v_cnt, dtype=f32),
                     jnp.ones((b_cnt, b_cnt), f32)) / b_cnt         # [VB, VB]
    pool_mat = jnp.concatenate([a_mat.T, bmean_t], axis=0)          # [VB+B, N]
    a_slab = jnp.concatenate([a_mat, gmean], axis=0)                # [N+VB, VB]
    vn0_b = jnp.repeat(_pad2(vn, v_cnt, dp), b_cnt, axis=0)         # [VB, dp]

    # ---- packed weight slabs (zero-padded; padded rows/cols stay exactly 0) ----
    lin_w = _pad2(params['lin_w'], cin, dp).astype(MATMUL_DTYPE)
    w_up = jnp.concatenate(
        [_pad2(params[f'conv{l}']['w1'], dp, d2p) for l in (1, 2, 3)] +
        [_pad2(params[f'mlp{m}']['l1_w'], dp, d2p) for m in (1, 2)],
        axis=0).astype(MATMUL_DTYPE)                                # [5*dp, d2p]
    w_down = jnp.concatenate(
        [_pad2(params[f'conv{l}']['w2'], d2p, dp) for l in (1, 2, 3)] +
        [_pad2(params[f'mlp{m}']['l2_w'], d2p, dp) for m in (1, 2)],
        axis=0).astype(MATMUL_DTYPE)                                # [5*d2p, dp]
    bond_all = jnp.concatenate(
        [_pad2(jnp.concatenate(params[f'conv{l}']['bond_tables'], axis=0),
               sum(BOND_FEATURE_DIMS), dp) for l in (1, 2, 3)],
        axis=1).astype(MATMUL_DTYPE)                                # [13, 3*dp]
    head_w = jnp.concatenate(
        [_pad2(params['c1_w'], dp, dp), _pad2(params['c2_w'], dp, op)],
        axis=1)                                                     # [dp, dp+op]

    # ---- one slab of every bias / BN gamma / BN beta row (static offsets) ----
    vec_rows, offs = [], {}

    def add(name, arr, width):
        arr = jnp.asarray(arr, f32)
        offs[name] = (sum(r.shape[0] for r in vec_rows), arr.shape[0], width)
        vec_rows.append(_pad2(arr, arr.shape[0], colw))

    add('lin_b', params['lin_b'], dp)
    for l in range(NUM_LAYERS):
        c = params[f'conv{l + 1}']
        add(f'b1_{l}', c['b1'], d2p)
        add(f'mg_{l}', c['bn_g'], d2p)
        add(f'mb_{l}', c['bn_b'], d2p)
        add(f'b2_{l}', c['b2'], dp)
        add(f'og_{l}', params[f'bn{l + 1}_g'], dp)
        add(f'ob_{l}', params[f'bn{l + 1}_b'], dp)
    for m in range(NUM_LAYERS - 1):
        mp = params[f'mlp{m + 1}']
        add(f'vl1b_{m}', mp['l1_b'], d2p)
        add(f'vg1_{m}', jnp.repeat(mp['bn1_g'].reshape(v_cnt, 2 * d), b_cnt, 0), d2p)
        add(f'vbe1_{m}', jnp.repeat(mp['bn1_b'].reshape(v_cnt, 2 * d), b_cnt, 0), d2p)
        add(f'vl2b_{m}', mp['l2_b'], dp)
        add(f'vg2_{m}', jnp.repeat(mp['bn2_g'].reshape(v_cnt, d), b_cnt, 0), dp)
        add(f'vbe2_{m}', jnp.repeat(mp['bn2_b'].reshape(v_cnt, d), b_cnt, 0), dp)
    add('c1b', params['c1_b'], dp)
    add('c2b', params['c2_b'], op)
    vec_slab = jnp.concatenate(vec_rows, axis=0)                    # [R, colw]

    inputs = [x.astype(f32), src_oh, dst_oh_t, bond_oh, pool_mat, a_slab,
              vn0_b, lin_w, w_up, w_down, bond_all, head_w, vec_slab]

    kernel = _make_vgin_kernel(n_nodes=n, v_cnt=v_cnt, b_cnt=b_cnt,
                               dp=dp, d2p=d2p, op=op, offs=offs)
    out = pl.pallas_call(
        kernel,
        out_shape=jax.ShapeDtypeStruct((b_cnt, op), f32),
        in_specs=[pl.BlockSpec(memory_space=pltpu.MemorySpace.VMEM)
                  for _ in inputs],
        out_specs=pl.BlockSpec(memory_space=pltpu.MemorySpace.VMEM),
        compiler_params=pltpu.CompilerParams(
            # actual footprint is well under this; explicit budget documents the
            # v7x ceiling (64 MiB physical) for scaled-up graphs.
            vmem_limit_bytes=32 * 1024 * 1024),
    )(*inputs)
    return out[:, :o_dim]


# ----------------------------- pure-JAX reference ----------------------------

def reference_forward(params, x, edge_index, edge_attr, batch, score, vn):
    v_cnt, d = vn.shape
    b_cnt = int(batch[-1]) + 1

    def bn(z, g, b):
        m = jnp.mean(z, axis=0, keepdims=True)
        var = jnp.mean((z - m) ** 2, axis=0, keepdims=True)
        return (z - m) / jnp.sqrt(var + BN_EPS) * g + b

    def bond_enc(tables):
        e = jnp.zeros((edge_attr.shape[0], d), jnp.float32)
        for i, t in enumerate(tables):
            e = e + jnp.take(t, edge_attr[:, i], axis=0)
        return e

    def gin_conv(h, c):
        eattr = bond_enc(c['bond_tables'])
        msg = jnp.maximum(h[edge_index[0]] + eattr, 0.0)
        aggr = jnp.zeros_like(h).at[edge_index[1]].add(msg)
        z = (h + aggr) @ c['w1'] + c['b1']
        z = jnp.maximum(bn(z, c['bn_g'], c['bn_b']), 0.0)
        return z @ c['w2'] + c['b2']

    def mlp_virtual(xv, m):                        # [B, V, D] -> [B, V, D]
        z = xv @ m['l1_w'] + m['l1_b']
        z = bn(z.reshape(b_cnt, v_cnt * 2 * d), m['bn1_g'], m['bn1_b'])
        z = jnp.maximum(z.reshape(b_cnt, v_cnt, 2 * d), 0.0)
        z = z @ m['l2_w'] + m['l2_b']
        z = bn(z.reshape(b_cnt, v_cnt * d), m['bn2_g'], m['bn2_b'])
        return jnp.maximum(z.reshape(b_cnt, v_cnt, d), 0.0)

    batch_oh = jax.nn.one_hot(batch, b_cnt, dtype=jnp.float32)

    def vn_pool(h):
        return jnp.einsum('nb,nv,nd->bvd', batch_oh, score, h)

    def vn_delta(vemb):
        return jnp.einsum('nv,nvd->nd', score, vemb[batch])

    h = x @ params['lin_w'] + params['lin_b']
    vemb = jnp.broadcast_to(vn[None, :, :], (b_cnt, v_cnt, d))
    vtemp = vn_pool(h) + vemb
    h = h + vn_delta(vemb)

    h = gin_conv(h, params['conv1'])
    h = jnp.maximum(bn(h, params['bn1_g'], params['bn1_b']), 0.0)
    vemb = mlp_virtual(vtemp, params['mlp1'])
    vtemp = vn_pool(h) + vemb
    h = h + vn_delta(vemb)

    h = gin_conv(h, params['conv2'])
    h = jnp.maximum(bn(h, params['bn2_g'], params['bn2_b']), 0.0)
    vemb = mlp_virtual(vtemp, params['mlp2'])
    h = h + vn_delta(vemb)

    h = gin_conv(h, params['conv3'])
    h = bn(h, params['bn3_g'], params['bn3_b'])

    counts = jnp.sum(batch_oh, axis=0)
    g = (batch_oh.T @ h) / counts[:, None]
    c = jnp.maximum(g @ params['c1_w'] + params['c1_b'], 0.0)
    return c @ params['c2_w'] + params['c2_b']


# ------------------------------ parameter set-up -----------------------------

def _init_linear(key, d_in, d_out):
    k1, k2 = jax.random.split(key)
    bound = 1.0 / jnp.sqrt(d_in)
    w = jax.random.uniform(k1, (d_in, d_out), jnp.float32, -bound, bound)
    b = jax.random.uniform(k2, (1, d_out), jnp.float32, -bound, bound)
    return w, b


def _init_bn(key, n):
    k1, k2 = jax.random.split(key)
    g = 1.0 + 0.1 * jax.random.normal(k1, (1, n), jnp.float32)
    b = 0.1 * jax.random.normal(k2, (1, n), jnp.float32)
    return g, b


def _init_conv(key, d):
    ks = jax.random.split(key, 3 + len(BOND_FEATURE_DIMS))
    w1, b1 = _init_linear(ks[0], d, 2 * d)
    w2, b2 = _init_linear(ks[1], 2 * d, d)
    bn_g, bn_b = _init_bn(ks[2], 2 * d)
    tables = [0.1 * jax.random.normal(ks[3 + i], (vsz, d), jnp.float32)
              for i, vsz in enumerate(BOND_FEATURE_DIMS)]
    return dict(w1=w1, b1=b1, w2=w2, b2=b2, bn_g=bn_g, bn_b=bn_b,
                bond_tables=tables)


def _init_vmlp(key, d, num_vn):
    ks = jax.random.split(key, 4)
    l1_w, l1_b = _init_linear(ks[0], d, 2 * d)
    l2_w, l2_b = _init_linear(ks[1], 2 * d, d)
    bn1_g, bn1_b = _init_bn(ks[2], num_vn * 2 * d)
    bn2_g, bn2_b = _init_bn(ks[3], num_vn * d)
    return dict(l1_w=l1_w, l1_b=l1_b, l2_w=l2_w, l2_b=l2_b,
                bn1_g=bn1_g, bn1_b=bn1_b, bn2_g=bn2_g, bn2_b=bn2_b)


# ------------------------------------ main ------------------------------------

if __name__ == "__main__":
    IN_CHANNELS = 16
    EMB_DIM = 32          # hidden_channels (zero-padded to 128 lanes in-kernel)
    NUM_VN = 3
    OUT_CLASSES = 4
    BATCH_SIZE = 2        # number of graphs
    N_NODES = 24
    N_EDGES = 48

    root = jax.random.PRNGKey(0)
    keys = jax.random.split(root, 16)

    lin_w, lin_b = _init_linear(keys[0], IN_CHANNELS, EMB_DIM)
    c1_w, c1_b = _init_linear(keys[1], EMB_DIM, EMB_DIM)
    c2_w, c2_b = _init_linear(keys[2], EMB_DIM, OUT_CLASSES)
    params = {
        'lin_w': lin_w, 'lin_b': lin_b,
        'conv1': _init_conv(keys[3], EMB_DIM),
        'conv2': _init_conv(keys[4], EMB_DIM),
        'conv3': _init_conv(keys[5], EMB_DIM),
        'mlp1': _init_vmlp(keys[6], EMB_DIM, NUM_VN),
        'mlp2': _init_vmlp(keys[7], EMB_DIM, NUM_VN),
        'c1_w': c1_w, 'c1_b': c1_b, 'c2_w': c2_w, 'c2_b': c2_b,
    }
    for l, k in zip((1, 2, 3), jax.random.split(keys[8], 3)):
        params[f'bn{l}_g'], params[f'bn{l}_b'] = _init_bn(k, EMB_DIM)

    x = jax.random.normal(keys[9], (N_NODES, IN_CHANNELS), jnp.float32)
    edge_index = jax.random.randint(keys[10], (2, N_EDGES), 0, N_NODES, jnp.int32)
    edge_attr = jnp.stack(
        [jax.random.randint(k, (N_EDGES,), 0, vsz, jnp.int32)
         for k, vsz in zip(jax.random.split(keys[11], 3), BOND_FEATURE_DIMS)],
        axis=1)
    batch = jnp.repeat(jnp.arange(BATCH_SIZE, dtype=jnp.int32),
                       N_NODES // BATCH_SIZE)
    score = jax.nn.softmax(
        jax.random.normal(keys[12], (N_NODES, NUM_VN), jnp.float32), axis=1)
    vn = jax.random.normal(keys[13], (NUM_VN, EMB_DIM), jnp.float32)

    out = vgin_forward(params, x, edge_index, edge_attr, batch, score, vn)
    out = jax.block_until_ready(out)

    ref = reference_forward(params, x, edge_index, edge_attr, batch, score, vn)
    err = float(jnp.max(jnp.abs(out - ref)))
    assert out.shape == (BATCH_SIZE, OUT_CLASSES)
    assert jnp.allclose(out, ref, atol=2e-3, rtol=2e-3), \
        f"mismatch vs reference (max |err| = {err})"

    print("KERNEL_OK")
</pallas_src>

<mosaic_0001>
module attributes {stable_mosaic.version = 11 : i64} {
  func.func @kernel(%arg0: memref<24x16xf32, #tpu.memory_space<vmem>>, %arg1: memref<48x24xbf16, #tpu.memory_space<vmem>>, %arg2: memref<24x48xbf16, #tpu.memory_space<vmem>>, %arg3: memref<48x13xbf16, #tpu.memory_space<vmem>>, %arg4: memref<8x24xf32, #tpu.memory_space<vmem>>, %arg5: memref<30x6xf32, #tpu.memory_space<vmem>>, %arg6: memref<6x128xf32, #tpu.memory_space<vmem>>, %arg7: memref<16x128xf32, #tpu.memory_space<vmem>>, %arg8: memref<640x128xf32, #tpu.memory_space<vmem>>, %arg9: memref<640x128xf32, #tpu.memory_space<vmem>>, %arg10: memref<13x384xf32, #tpu.memory_space<vmem>>, %arg11: memref<128x256xf32, #tpu.memory_space<vmem>>, %arg12: memref<73x128xf32, #tpu.memory_space<vmem>>, %arg13: memref<2x128xf32, #tpu.memory_space<vmem>>) attributes {dimension_semantics = [], scalar_prefetch = 0 : i64, scratch_operands = 0 : i64, tpu.core_type = #tpu.core_type<tc>} {
    %c0 = arith.constant 0 : index
    %c0_0 = arith.constant 0 : index
    %0 = vector.load %arg1[%c0, %c0_0] : memref<48x24xbf16, #tpu.memory_space<vmem>>, vector<48x24xbf16>
    %c0_1 = arith.constant 0 : index
    %c0_2 = arith.constant 0 : index
    %1 = vector.load %arg2[%c0_1, %c0_2] : memref<24x48xbf16, #tpu.memory_space<vmem>>, vector<24x48xbf16>
    %c0_3 = arith.constant 0 : index
    %c0_4 = arith.constant 0 : index
    %2 = vector.load %arg4[%c0_3, %c0_4] : memref<8x24xf32, #tpu.memory_space<vmem>>, vector<6x24xf32>
    %c6 = arith.constant 6 : index
    %c0_5 = arith.constant 0 : index
    %3 = vector.load %arg4[%c6, %c0_5] : memref<8x24xf32, #tpu.memory_space<vmem>>, vector<2x24xf32>
    %c0_6 = arith.constant 0 : index
    %c0_7 = arith.constant 0 : index
    %4 = vector.load %arg5[%c0_6, %c0_7] : memref<30x6xf32, #tpu.memory_space<vmem>>, vector<24x6xf32>
    %c24 = arith.constant 24 : index
    %c0_8 = arith.constant 0 : index
    %5 = vector.load %arg5[%c24, %c0_8] : memref<30x6xf32, #tpu.memory_space<vmem>>, vector<6x6xf32>
    %c0_9 = arith.constant 0 : index
    %c0_10 = arith.constant 0 : index
    %6 = vector.load %arg3[%c0_9, %c0_10] : memref<48x13xbf16, #tpu.memory_space<vmem>>, vector<48x13xbf16>
    %c0_11 = arith.constant 0 : index
    %c0_12 = arith.constant 0 : index
    %7 = vector.load %arg10[%c0_11, %c0_12] : memref<13x384xf32, #tpu.memory_space<vmem>>, vector<13x384xf32>
    %8 = arith.extf %6 : vector<48x13xbf16> to vector<48x13xf32>
    %cst = arith.constant dense<0.000000e+00> : vector<48x384xf32>
    %9 = tpu.matmul %8, %7, %cst {dimension_numbers = #tpu.dot_dimension_numbers<[1], [0], [0], [1], [0, 0, 1, 1], [], []>} : vector<48x13xf32>, vector<13x384xf32>, vector<48x384xf32> -> vector<48x384xf32>
    %c0_13 = arith.constant 0 : index
    %c0_14 = arith.constant 0 : index
    %10 = vector.load %arg0[%c0_13, %c0_14] : memref<24x16xf32, #tpu.memory_space<vmem>>, vector<24x16xf32>
    %c0_15 = arith.constant 0 : index
    %c0_16 = arith.constant 0 : index
    %11 = vector.load %arg7[%c0_15, %c0_16] : memref<16x128xf32, #tpu.memory_space<vmem>>, vector<16x128xf32>
    %cst_17 = arith.constant dense<0.000000e+00> : vector<24x128xf32>
    %12 = tpu.matmul %10, %11, %cst_17 {dimension_numbers = #tpu.dot_dimension_numbers<[1], [0], [0], [1], [0, 0, 1, 1], [], []>} : vector<24x16xf32>, vector<16x128xf32>, vector<24x128xf32> -> vector<24x128xf32>
    %c0_18 = arith.constant 0 : index
    %c0_19 = arith.constant 0 : index
    %13 = vector.load %arg12[%c0_18, %c0_19] : memref<73x128xf32, #tpu.memory_space<vmem>>, vector<1x128xf32>
    %14 = vector.broadcast %13 : vector<1x128xf32> to vector<24x128xf32>
    %15 = arith.addf %12, %14 : vector<24x128xf32>
    %c0_20 = arith.constant 0 : index
    %c0_21 = arith.constant 0 : index
    %16 = vector.load %arg6[%c0_20, %c0_21] : memref<6x128xf32, #tpu.memory_space<vmem>>, vector<6x128xf32>
    %cst_22 = arith.constant dense<0.000000e+00> : vector<6x128xf32>
    %17 = tpu.matmul %2, %15, %cst_22 {dimension_numbers = #tpu.dot_dimension_numbers<[1], [0], [0], [1], [0, 0, 1, 1], [], []>} : vector<6x24xf32>, vector<24x128xf32>, vector<6x128xf32> -> vector<6x128xf32>
    %18 = arith.addf %17, %16 : vector<6x128xf32>
    %cst_23 = arith.constant dense<0.000000e+00> : vector<24x128xf32>
    %19 = tpu.matmul %4, %16, %cst_23 {dimension_numbers = #tpu.dot_dimension_numbers<[1], [0], [0], [1], [0, 0, 1, 1], [], []>} : vector<24x6xf32>, vector<6x128xf32>, vector<24x128xf32> -> vector<24x128xf32>
    %20 = arith.addf %15, %19 : vector<24x128xf32>
    %21 = vector.extract_strided_slice %9 {offsets = [0, 0], sizes = [48, 128], strides = [1, 1]} : vector<48x384xf32> to vector<48x128xf32>
    %22 = arith.extf %0 : vector<48x24xbf16> to vector<48x24xf32>
    %cst_24 = arith.constant dense<0.000000e+00> : vector<48x128xf32>
    %23 = tpu.matmul %22, %20, %cst_24 {dimension_numbers = #tpu.dot_dimension_numbers<[1], [0], [0], [1], [0, 0, 1, 1], [], []>} : vector<48x24xf32>, vector<24x128xf32>, vector<48x128xf32> -> vector<48x128xf32>
    %24 = arith.addf %23, %21 : vector<48x128xf32>
    %cst_25 = arith.constant 0.000000e+00 : f32
    %25 = vector.broadcast %cst_25 : f32 to vector<48x128xf32>
    %26 = arith.maximumf %24, %25 : vector<48x128xf32>
    %27 = arith.extf %1 : vector<24x48xbf16> to vector<24x48xf32>
    %cst_26 = arith.constant dense<0.000000e+00> : vector<24x128xf32>
    %28 = tpu.matmul %27, %26, %cst_26 {dimension_numbers = #tpu.dot_dimension_numbers<[1], [0], [0], [1], [0, 0, 1, 1], [], []>} : vector<24x48xf32>, vector<48x128xf32>, vector<24x128xf32> -> vector<24x128xf32>
    %c0_27 = arith.constant 0 : index
    %c0_28 = arith.constant 0 : index
    %29 = vector.load %arg8[%c0_27, %c0_28] : memref<640x128xf32, #tpu.memory_space<vmem>>, vector<128x128xf32>
    %30 = arith.addf %20, %28 : vector<24x128xf32>
    %cst_29 = arith.constant dense<0.000000e+00> : vector<24x128xf32>
    %31 = tpu.matmul %30, %29, %cst_29 {dimension_numbers = #tpu.dot_dimension_numbers<[1], [0], [0], [1], [0, 0, 1, 1], [], []>} : vector<24x128xf32>, vector<128x128xf32>, vector<24x128xf32> -> vector<24x128xf32>
    %c1 = arith.constant 1 : index
    %c0_30 = arith.constant 0 : index
    %32 = vector.load %arg12[%c1, %c0_30] : memref<73x128xf32, #tpu.memory_space<vmem>>, vector<1x128xf32>
    %33 = vector.broadcast %32 : vector<1x128xf32> to vector<24x128xf32>
    %34 = arith.addf %31, %33 : vector<24x128xf32>
    %c2 = arith.constant 2 : index
    %c0_31 = arith.constant 0 : index
    %35 = vector.load %arg12[%c2, %c0_31] : memref<73x128xf32, #tpu.memory_space<vmem>>, vector<1x128xf32>
    %c3 = arith.constant 3 : index
    %c0_32 = arith.constant 0 : index
    %36 = vector.load %arg12[%c3, %c0_32] : memref<73x128xf32, #tpu.memory_space<vmem>>, vector<1x128xf32>
    %cst_33 = arith.constant dense<0.000000e+00> : vector<128xf32>
    %37 = vector.multi_reduction <add>, %34, %cst_33 [0] : vector<24x128xf32> to vector<128xf32>
    %38 = vector.shape_cast %37 : vector<128xf32> to vector<1x128xf32>
    %cst_34 = arith.constant 2.400000e+01 : f32
    %39 = vector.broadcast %cst_34 : f32 to vector<1x128xf32>
    %40 = arith.divf %38, %39 : vector<1x128xf32>
    %41 = vector.broadcast %40 : vector<1x128xf32> to vector<24x128xf32>
    %42 = arith.subf %34, %41 : vector<24x128xf32>
    %43 = arith.mulf %42, %42 : vector<24x128xf32>
    %cst_35 = arith.constant dense<0.000000e+00> : vector<128xf32>
    %44 = vector.multi_reduction <add>, %43, %cst_35 [0] : vector<24x128xf32> to vector<128xf32>
    %45 = vector.shape_cast %44 : vector<128xf32> to vector<1x128xf32>
    %cst_36 = arith.constant 2.400000e+01 : f32
    %46 = vector.broadcast %cst_36 : f32 to vector<1x128xf32>
    %47 = arith.divf %45, %46 : vector<1x128xf32>
    %48 = vector.broadcast %40 : vector<1x128xf32> to vector<24x128xf32>
    %49 = arith.subf %34, %48 : vector<24x128xf32>
    %cst_37 = arith.constant 9.99999974E-6 : f32
    %50 = vector.broadcast %cst_37 : f32 to vector<1x128xf32>
    %51 = arith.addf %47, %50 : vector<1x128xf32>
    %52 = math.rsqrt %51 : vector<1x128xf32>
    %53 = vector.broadcast %52 : vector<1x128xf32> to vector<24x128xf32>
    %54 = arith.mulf %49, %53 : vector<24x128xf32>
    %55 = vector.broadcast %35 : vector<1x128xf32> to vector<24x128xf32>
    %56 = arith.mulf %54, %55 : vector<24x128xf32>
    %57 = vector.broadcast %36 : vector<1x128xf32> to vector<24x128xf32>
    %58 = arith.addf %56, %57 : vector<24x128xf32>
    %cst_38 = arith.constant 0.000000e+00 : f32
    %59 = vector.broadcast %cst_38 : f32 to vector<24x128xf32>
    %60 = arith.maximumf %58, %59 : vector<24x128xf32>
    %c0_39 = arith.constant 0 : index
    %c0_40 = arith.constant 0 : index
    %61 = vector.load %arg9[%c0_39, %c0_40] : memref<640x128xf32, #tpu.memory_space<vmem>>, vector<128x128xf32>
    %cst_41 = arith.constant dense<0.000000e+00> : vector<24x128xf32>
    %62 = tpu.matmul %60, %61, %cst_41 {dimension_numbers = #tpu.dot_dimension_numbers<[1], [0], [0], [1], [0, 0, 1, 1], [], []>} : vector<24x128xf32>, vector<128x128xf32>, vector<24x128xf32> -> vector<24x128xf32>
    %c4 = arith.constant 4 : index
    %c0_42 = arith.constant 0 : index
    %63 = vector.load %arg12[%c4, %c0_42] : memref<73x128xf32, #tpu.memory_space<vmem>>, vector<1x128xf32>
    %64 = vector.broadcast %63 : vector<1x128xf32> to vector<24x128xf32>
    %65 = arith.addf %62, %64 : vector<24x128xf32>
    %c5 = arith.constant 5 : index
    %c0_43 = arith.constant 0 : index
    %66 = vector.load %arg12[%c5, %c0_43] : memref<73x128xf32, #tpu.memory_space<vmem>>, vector<1x128xf32>
    %c6_44 = arith.constant 6 : index
    %c0_45 = arith.constant 0 : index
    %67 = vector.load %arg12[%c6_44, %c0_45] : memref<73x128xf32, #tpu.memory_space<vmem>>, vector<1x128xf32>
    %cst_46 = arith.constant dense<0.000000e+00> : vector<128xf32>
    %68 = vector.multi_reduction <add>, %65, %cst_46 [0] : vector<24x128xf32> to vector<128xf32>
    %69 = vector.shape_cast %68 : vector<128xf32> to vector<1x128xf32>
    %cst_47 = arith.constant 2.400000e+01 : f32
    %70 = vector.broadcast %cst_47 : f32 to vector<1x128xf32>
    %71 = arith.divf %69, %70 : vector<1x128xf32>
    %72 = vector.broadcast %71 : vector<1x128xf32> to vector<24x128xf32>
    %73 = arith.subf %65, %72 : vector<24x128xf32>
    %74 = arith.mulf %73, %73 : vector<24x128xf32>
    %cst_48 = arith.constant dense<0.000000e+00> : vector<128xf32>
    %75 = vector.multi_reduction <add>, %74, %cst_48 [0] : vector<24x128xf32> to vector<128xf32>
    %76 = vector.shape_cast %75 : vector<128xf32> to vector<1x128xf32>
    %cst_49 = arith.constant 2.400000e+01 : f32
    %77 = vector.broadcast %cst_49 : f32 to vector<1x128xf32>
    %78 = arith.divf %76, %77 : vector<1x128xf32>
    %79 = vector.broadcast %71 : vector<1x128xf32> to vector<24x128xf32>
    %80 = arith.subf %65, %79 : vector<24x128xf32>
    %cst_50 = arith.constant 9.99999974E-6 : f32
    %81 = vector.broadcast %cst_50 : f32 to vector<1x128xf32>
    %82 = arith.addf %78, %81 : vector<1x128xf32>
    %83 = math.rsqrt %82 : vector<1x128xf32>
    %84 = vector.broadcast %83 : vector<1x128xf32> to vector<24x128xf32>
    %85 = arith.mulf %80, %84 : vector<24x128xf32>
    %86 = vector.broadcast %66 : vector<1x128xf32> to vector<24x128xf32>
    %87 = arith.mulf %85, %86 : vector<24x128xf32>
    %88 = vector.broadcast %67 : vector<1x128xf32> to vector<24x128xf32>
    %89 = arith.addf %87, %88 : vector<24x128xf32>
    %cst_51 = arith.constant 0.000000e+00 : f32
    %90 = vector.broadcast %cst_51 : f32 to vector<24x128xf32>
    %91 = arith.maximumf %89, %90 : vector<24x128xf32>
    %c384 = arith.constant 384 : index
    %c0_52 = arith.constant 0 : index
    %92 = vector.load %arg8[%c384, %c0_52] : memref<640x128xf32, #tpu.memory_space<vmem>>, vector<128x128xf32>
    %cst_53 = arith.constant dense<0.000000e+00> : vector<6x128xf32>
    %93 = tpu.matmul %18, %92, %cst_53 {dimension_numbers = #tpu.dot_dimension_numbers<[1], [0], [0], [1], [0, 0, 1, 1], [], []>} : vector<6x128xf32>, vector<128x128xf32>, vector<6x128xf32> -> vector<6x128xf32>
    %c19 = arith.constant 19 : index
    %c0_54 = arith.constant 0 : index
    %94 = vector.load %arg12[%c19, %c0_54] : memref<73x128xf32, #tpu.memory_space<vmem>>, vector<1x128xf32>
    %95 = vector.broadcast %94 : vector<1x128xf32> to vector<6x128xf32>
    %96 = arith.addf %93, %95 : vector<6x128xf32>
    %c20 = arith.constant 20 : index
    %c0_55 = arith.constant 0 : index
    %97 = vector.load %arg12[%c20, %c0_55] : memref<73x128xf32, #tpu.memory_space<vmem>>, vector<6x128xf32>
    %c26 = arith.constant 26 : index
    %c0_56 = arith.constant 0 : index
    %98 = vector.load %arg12[%c26, %c0_56] : memref<73x128xf32, #tpu.memory_space<vmem>>, vector<6x128xf32>
    %cst_57 = arith.constant dense<0.000000e+00> : vector<6x128xf32>
    %99 = tpu.matmul %5, %96, %cst_57 {dimension_numbers = #tpu.dot_dimension_numbers<[1], [0], [0], [1], [0, 0, 1, 1], [], []>} : vector<6x6xf32>, vector<6x128xf32>, vector<6x128xf32> -> vector<6x128xf32>
    %100 = arith.subf %96, %99 : vector<6x128xf32>
    %101 = arith.mulf %100, %100 : vector<6x128xf32>
    %cst_58 = arith.constant dense<0.000000e+00> : vector<6x128xf32>
    %102 = tpu.matmul %5, %101, %cst_58 {dimension_numbers = #tpu.dot_dimension_numbers<[1], [0], [0], [1], [0, 0, 1, 1], [], []>} : vector<6x6xf32>, vector<6x128xf32>, vector<6x128xf32> -> vector<6x128xf32>
    %103 = arith.subf %96, %99 : vector<6x128xf32>
    %cst_59 = arith.constant 9.99999974E-6 : f32
    %104 = vector.broadcast %cst_59 : f32 to vector<6x128xf32>
    %105 = arith.addf %102, %104 : vector<6x128xf32>
    %106 = math.rsqrt %105 : vector<6x128xf32>
    %107 = arith.mulf %103, %106 : vector<6x128xf32>
    %108 = arith.mulf %107, %97 : vector<6x128xf32>
    %109 = arith.addf %108, %98 : vector<6x128xf32>
    %cst_60 = arith.constant 0.000000e+00 : f32
    %110 = vector.broadcast %cst_60 : f32 to vector<6x128xf32>
    %111 = arith.maximumf %109, %110 : vector<6x128xf32>
    %c384_61 = arith.constant 384 : index
    %c0_62 = arith.constant 0 : index
    %112 = vector.load %arg9[%c384_61, %c0_62] : memref<640x128xf32, #tpu.memory_space<vmem>>, vector<128x128xf32>
    %cst_63 = arith.constant dense<0.000000e+00> : vector<6x128xf32>
    %113 = tpu.matmul %111, %112, %cst_63 {dimension_numbers = #tpu.dot_dimension_numbers<[1], [0], [0], [1], [0, 0, 1, 1], [], []>} : vector<6x128xf32>, vector<128x128xf32>, vector<6x128xf32> -> vector<6x128xf32>
    %c32 = arith.constant 32 : index
    %c0_64 = arith.constant 0 : index
    %114 = vector.load %arg12[%c32, %c0_64] : memref<73x128xf32, #tpu.memory_space<vmem>>, vector<1x128xf32>
    %115 = vector.broadcast %114 : vector<1x128xf32> to vector<6x128xf32>
    %116 = arith.addf %113, %115 : vector<6x128xf32>
    %c33 = arith.constant 33 : index
    %c0_65 = arith.constant 0 : index
    %117 = vector.load %arg12[%c33, %c0_65] : memref<73x128xf32, #tpu.memory_space<vmem>>, vector<6x128xf32>
    %c39 = arith.constant 39 : index
    %c0_66 = arith.constant 0 : index
    %118 = vector.load %arg12[%c39, %c0_66] : memref<73x128xf32, #tpu.memory_space<vmem>>, vector<6x128xf32>
    %cst_67 = arith.constant dense<0.000000e+00> : vector<6x128xf32>
    %119 = tpu.matmul %5, %116, %cst_67 {dimension_numbers = #tpu.dot_dimension_numbers<[1], [0], [0], [1], [0, 0, 1, 1], [], []>} : vector<6x6xf32>, vector<6x128xf32>, vector<6x128xf32> -> vector<6x128xf32>
    %120 = arith.subf %116, %119 : vector<6x128xf32>
    %121 = arith.mulf %120, %120 : vector<6x128xf32>
    %cst_68 = arith.constant dense<0.000000e+00> : vector<6x128xf32>
    %122 = tpu.matmul %5, %121, %cst_68 {dimension_numbers = #tpu.dot_dimension_numbers<[1], [0], [0], [1], [0, 0, 1, 1], [], []>} : vector<6x6xf32>, vector<6x128xf32>, vector<6x128xf32> -> vector<6x128xf32>
    %123 = arith.subf %116, %119 : vector<6x128xf32>
    %cst_69 = arith.constant 9.99999974E-6 : f32
    %124 = vector.broadcast %cst_69 : f32 to vector<6x128xf32>
    %125 = arith.addf %122, %124 : vector<6x128xf32>
    %126 = math.rsqrt %125 : vector<6x128xf32>
    %127 = arith.mulf %123, %126 : vector<6x128xf32>
    %128 = arith.mulf %127, %117 : vector<6x128xf32>
    %129 = arith.addf %128, %118 : vector<6x128xf32>
    %cst_70 = arith.constant 0.000000e+00 : f32
    %130 = vector.broadcast %cst_70 : f32 to vector<6x128xf32>
    %131 = arith.maximumf %129, %130 : vector<6x128xf32>
    %cst_71 = arith.constant dense<0.000000e+00> : vector<6x128xf32>
    %132 = tpu.matmul %2, %91, %cst_71 {dimension_numbers = #tpu.dot_dimension_numbers<[1], [0], [0], [1], [0, 0, 1, 1], [], []>} : vector<6x24xf32>, vector<24x128xf32>, vector<6x128xf32> -> vector<6x128xf32>
    %133 = arith.addf %132, %131 : vector<6x128xf32>
    %cst_72 = arith.constant dense<0.000000e+00> : vector<24x128xf32>
    %134 = tpu.matmul %4, %131, %cst_72 {dimension_numbers = #tpu.dot_dimension_numbers<[1], [0], [0], [1], [0, 0, 1, 1], [], []>} : vector<24x6xf32>, vector<6x128xf32>, vector<24x128xf32> -> vector<24x128xf32>
    %135 = arith.addf %91, %134 : vector<24x128xf32>
    %136 = vector.extract_strided_slice %9 {offsets = [0, 128], sizes = [48, 128], strides = [1, 1]} : vector<48x384xf32> to vector<48x128xf32>
    %137 = arith.extf %0 : vector<48x24xbf16> to vector<48x24xf32>
    %cst_73 = arith.constant dense<0.000000e+00> : vector<48x128xf32>
    %138 = tpu.matmul %137, %135, %cst_73 {dimension_numbers = #tpu.dot_dimension_numbers<[1], [0], [0], [1], [0, 0, 1, 1], [], []>} : vector<48x24xf32>, vector<24x128xf32>, vector<48x128xf32> -> vector<48x128xf32>
    %139 = arith.addf %138, %136 : vector<48x128xf32>
    %cst_74 = arith.constant 0.000000e+00 : f32
    %140 = vector.broadcast %cst_74 : f32 to vector<48x128xf32>
    %141 = arith.maximumf %139, %140 : vector<48x128xf32>
    %142 = arith.extf %1 : vector<24x48xbf16> to vector<24x48xf32>
    %cst_75 = arith.constant dense<0.000000e+00> : vector<24x128xf32>
    %143 = tpu.matmul %142, %141, %cst_75 {dimension_numbers = #tpu.dot_dimension_numbers<[1], [0], [0], [1], [0, 0, 1, 1], [], []>} : vector<24x48xf32>, vector<48x128xf32>, vector<24x128xf32> -> vector<24x128xf32>
    %c128 = arith.constant 128 : index
    %c0_76 = arith.constant 0 : index
    %144 = vector.load %arg8[%c128, %c0_76] : memref<640x128xf32, #tpu.memory_space<vmem>>, vector<128x128xf32>
    %145 = arith.addf %135, %143 : vector<24x128xf32>
    %cst_77 = arith.constant dense<0.000000e+00> : vector<24x128xf32>
    %146 = tpu.matmul %145, %144, %cst_77 {dimension_numbers = #tpu.dot_dimension_numbers<[1], [0], [0], [1], [0, 0, 1, 1], [], []>} : vector<24x128xf32>, vector<128x128xf32>, vector<24x128xf32> -> vector<24x128xf32>
    %c7 = arith.constant 7 : index
    %c0_78 = arith.constant 0 : index
    %147 = vector.load %arg12[%c7, %c0_78] : memref<73x128xf32, #tpu.memory_space<vmem>>, vector<1x128xf32>
    %148 = vector.broadcast %147 : vector<1x128xf32> to vector<24x128xf32>
    %149 = arith.addf %146, %148 : vector<24x128xf32>
    %c8 = arith.constant 8 : index
    %c0_79 = arith.constant 0 : index
    %150 = vector.load %arg12[%c8, %c0_79] : memref<73x128xf32, #tpu.memory_space<vmem>>, vector<1x128xf32>
    %c9 = arith.constant 9 : index
    %c0_80 = arith.constant 0 : index
    %151 = vector.load %arg12[%c9, %c0_80] : memref<73x128xf32, #tpu.memory_space<vmem>>, vector<1x128xf32>
    %cst_81 = arith.constant dense<0.000000e+00> : vector<128xf32>
    %152 = vector.multi_reduction <add>, %149, %cst_81 [0] : vector<24x128xf32> to vector<128xf32>
    %153 = vector.shape_cast %152 : vector<128xf32> to vector<1x128xf32>
    %cst_82 = arith.constant 2.400000e+01 : f32
    %154 = vector.broadcast %cst_82 : f32 to vector<1x128xf32>
    %155 = arith.divf %153, %154 : vector<1x128xf32>
    %156 = vector.broadcast %155 : vector<1x128xf32> to vector<24x128xf32>
    %157 = arith.subf %149, %156 : vector<24x128xf32>
    %158 = arith.mulf %157, %157 : vector<24x128xf32>
    %cst_83 = arith.constant dense<0.000000e+00> : vector<128xf32>
    %159 = vector.multi_reduction <add>, %158, %cst_83 [0] : vector<24x128xf32> to vector<128xf32>
    %160 = vector.shape_cast %159 : vector<128xf32> to vector<1x128xf32>
    %cst_84 = arith.constant 2.400000e+01 : f32
    %161 = vector.broadcast %cst_84 : f32 to vector<1x128xf32>
    %162 = arith.divf %160, %161 : vector<1x128xf32>
    %163 = vector.broadcast %155 : vector<1x128xf32> to vector<24x128xf32>
    %164 = arith.subf %149, %163 : vector<24x128xf32>
    %cst_85 = arith.constant 9.99999974E-6 : f32
    %165 = vector.broadcast %cst_85 : f32 to vector<1x128xf32>
    %166 = arith.addf %162, %165 : vector<1x128xf32>
    %167 = math.rsqrt %166 : vector<1x128xf32>
    %168 = vector.broadcast %167 : vector<1x128xf32> to vector<24x128xf32>
    %169 = arith.mulf %164, %168 : vector<24x128xf32>
    %170 = vector.broadcast %150 : vector<1x128xf32> to vector<24x128xf32>
    %171 = arith.mulf %169, %170 : vector<24x128xf32>
    %172 = vector.broadcast %151 : vector<1x128xf32> to vector<24x128xf32>
    %173 = arith.addf %171, %172 : vector<24x128xf32>
    %cst_86 = arith.constant 0.000000e+00 : f32
    %174 = vector.broadcast %cst_86 : f32 to vector<24x128xf32>
    %175 = arith.maximumf %173, %174 : vector<24x128xf32>
    %c128_87 = arith.constant 128 : index
    %c0_88 = arith.constant 0 : index
    %176 = vector.load %arg9[%c128_87, %c0_88] : memref<640x128xf32, #tpu.memory_space<vmem>>, vector<128x128xf32>
    %cst_89 = arith.constant dense<0.000000e+00> : vector<24x128xf32>
    %177 = tpu.matmul %175, %176, %cst_89 {dimension_numbers = #tpu.dot_dimension_numbers<[1], [0], [0], [1], [0, 0, 1, 1], [], []>} : vector<24x128xf32>, vector<128x128xf32>, vector<24x128xf32> -> vector<24x128xf32>
    %c10 = arith.constant 10 : index
    %c0_90 = arith.constant 0 : index
    %178 = vector.load %arg12[%c10, %c0_90] : memref<73x128xf32, #tpu.memory_space<vmem>>, vector<1x128xf32>
    %179 = vector.broadcast %178 : vector<1x128xf32> to vector<24x128xf32>
    %180 = arith.addf %177, %179 : vector<24x128xf32>
    %c11 = arith.constant 11 : index
    %c0_91 = arith.constant 0 : index
    %181 = vector.load %arg12[%c11, %c0_91] : memref<73x128xf32, #tpu.memory_space<vmem>>, vector<1x128xf32>
    %c12 = arith.constant 12 : index
    %c0_92 = arith.constant 0 : index
    %182 = vector.load %arg12[%c12, %c0_92] : memref<73x128xf32, #tpu.memory_space<vmem>>, vector<1x128xf32>
    %cst_93 = arith.constant dense<0.000000e+00> : vector<128xf32>
    %183 = vector.multi_reduction <add>, %180, %cst_93 [0] : vector<24x128xf32> to vector<128xf32>
    %184 = vector.shape_cast %183 : vector<128xf32> to vector<1x128xf32>
    %cst_94 = arith.constant 2.400000e+01 : f32
    %185 = vector.broadcast %cst_94 : f32 to vector<1x128xf32>
    %186 = arith.divf %184, %185 : vector<1x128xf32>
    %187 = vector.broadcast %186 : vector<1x128xf32> to vector<24x128xf32>
    %188 = arith.subf %180, %187 : vector<24x128xf32>
    %189 = arith.mulf %188, %188 : vector<24x128xf32>
    %cst_95 = arith.constant dense<0.000000e+00> : vector<128xf32>
    %190 = vector.multi_reduction <add>, %189, %cst_95 [0] : vector<24x128xf32> to vector<128xf32>
    %191 = vector.shape_cast %190 : vector<128xf32> to vector<1x128xf32>
    %cst_96 = arith.constant 2.400000e+01 : f32
    %192 = vector.broadcast %cst_96 : f32 to vector<1x128xf32>
    %193 = arith.divf %191, %192 : vector<1x128xf32>
    %194 = vector.broadcast %186 : vector<1x128xf32> to vector<24x128xf32>
    %195 = arith.subf %180, %194 : vector<24x128xf32>
    %cst_97 = arith.constant 9.99999974E-6 : f32
    %196 = vector.broadcast %cst_97 : f32 to vector<1x128xf32>
    %197 = arith.addf %193, %196 : vector<1x128xf32>
    %198 = math.rsqrt %197 : vector<1x128xf32>
    %199 = vector.broadcast %198 : vector<1x128xf32> to vector<24x128xf32>
    %200 = arith.mulf %195, %199 : vector<24x128xf32>
    %201 = vector.broadcast %181 : vector<1x128xf32> to vector<24x128xf32>
    %202 = arith.mulf %200, %201 : vector<24x128xf32>
    %203 = vector.broadcast %182 : vector<1x128xf32> to vector<24x128xf32>
    %204 = arith.addf %202, %203 : vector<24x128xf32>
    %cst_98 = arith.constant 0.000000e+00 : f32
    %205 = vector.broadcast %cst_98 : f32 to vector<24x128xf32>
    %206 = arith.maximumf %204, %205 : vector<24x128xf32>
    %c512 = arith.constant 512 : index
    %c0_99 = arith.constant 0 : index
    %207 = vector.load %arg8[%c512, %c0_99] : memref<640x128xf32, #tpu.memory_space<vmem>>, vector<128x128xf32>
    %cst_100 = arith.constant dense<0.000000e+00> : vector<6x128xf32>
    %208 = tpu.matmul %133, %207, %cst_100 {dimension_numbers = #tpu.dot_dimension_numbers<[1], [0], [0], [1], [0, 0, 1, 1], [], []>} : vector<6x128xf32>, vector<128x128xf32>, vector<6x128xf32> -> vector<6x128xf32>
    %c45 = arith.constant 45 : index
    %c0_101 = arith.constant 0 : index
    %209 = vector.load %arg12[%c45, %c0_101] : memref<73x128xf32, #tpu.memory_space<vmem>>, vector<1x128xf32>
    %210 = vector.broadcast %209 : vector<1x128xf32> to vector<6x128xf32>
    %211 = arith.addf %208, %210 : vector<6x128xf32>
    %c46 = arith.constant 46 : index
    %c0_102 = arith.constant 0 : index
    %212 = vector.load %arg12[%c46, %c0_102] : memref<73x128xf32, #tpu.memory_space<vmem>>, vector<6x128xf32>
    %c52 = arith.constant 52 : index
    %c0_103 = arith.constant 0 : index
    %213 = vector.load %arg12[%c52, %c0_103] : memref<73x128xf32, #tpu.memory_space<vmem>>, vector<6x128xf32>
    %cst_104 = arith.constant dense<0.000000e+00> : vector<6x128xf32>
    %214 = tpu.matmul %5, %211, %cst_104 {dimension_numbers = #tpu.dot_dimension_numbers<[1], [0], [0], [1], [0, 0, 1, 1], [], []>} : vector<6x6xf32>, vector<6x128xf32>, vector<6x128xf32> -> vector<6x128xf32>
    %215 = arith.subf %211, %214 : vector<6x128xf32>
    %216 = arith.mulf %215, %215 : vector<6x128xf32>
    %cst_105 = arith.constant dense<0.000000e+00> : vector<6x128xf32>
    %217 = tpu.matmul %5, %216, %cst_105 {dimension_numbers = #tpu.dot_dimension_numbers<[1], [0], [0], [1], [0, 0, 1, 1], [], []>} : vector<6x6xf32>, vector<6x128xf32>, vector<6x128xf32> -> vector<6x128xf32>
    %218 = arith.subf %211, %214 : vector<6x128xf32>
    %cst_106 = arith.constant 9.99999974E-6 : f32
    %219 = vector.broadcast %cst_106 : f32 to vector<6x128xf32>
    %220 = arith.addf %217, %219 : vector<6x128xf32>
    %221 = math.rsqrt %220 : vector<6x128xf32>
    %222 = arith.mulf %218, %221 : vector<6x128xf32>
    %223 = arith.mulf %222, %212 : vector<6x128xf32>
    %224 = arith.addf %223, %213 : vector<6x128xf32>
    %cst_107 = arith.constant 0.000000e+00 : f32
    %225 = vector.broadcast %cst_107 : f32 to vector<6x128xf32>
    %226 = arith.maximumf %224, %225 : vector<6x128xf32>
    %c512_108 = arith.constant 512 : index
    %c0_109 = arith.constant 0 : index
    %227 = vector.load %arg9[%c512_108, %c0_109] : memref<640x128xf32, #tpu.memory_space<vmem>>, vector<128x128xf32>
    %cst_110 = arith.constant dense<0.000000e+00> : vector<6x128xf32>
    %228 = tpu.matmul %226, %227, %cst_110 {dimension_numbers = #tpu.dot_dimension_numbers<[1], [0], [0], [1], [0, 0, 1, 1], [], []>} : vector<6x128xf32>, vector<128x128xf32>, vector<6x128xf32> -> vector<6x128xf32>
    %c58 = arith.constant 58 : index
    %c0_111 = arith.constant 0 : index
    %229 = vector.load %arg12[%c58, %c0_111] : memref<73x128xf32, #tpu.memory_space<vmem>>, vector<1x128xf32>
    %230 = vector.broadcast %229 : vector<1x128xf32> to vector<6x128xf32>
    %231 = arith.addf %228, %230 : vector<6x128xf32>
    %c59 = arith.constant 59 : index
    %c0_112 = arith.constant 0 : index
    %232 = vector.load %arg12[%c59, %c0_112] : memref<73x128xf32, #tpu.memory_space<vmem>>, vector<6x128xf32>
    %c65 = arith.constant 65 : index
    %c0_113 = arith.constant 0 : index
    %233 = vector.load %arg12[%c65, %c0_113] : memref<73x128xf32, #tpu.memory_space<vmem>>, vector<6x128xf32>
    %cst_114 = arith.constant dense<0.000000e+00> : vector<6x128xf32>
    %234 = tpu.matmul %5, %231, %cst_114 {dimension_numbers = #tpu.dot_dimension_numbers<[1], [0], [0], [1], [0, 0, 1, 1], [], []>} : vector<6x6xf32>, vector<6x128xf32>, vector<6x128xf32> -> vector<6x128xf32>
    %235 = arith.subf %231, %234 : vector<6x128xf32>
    %236 = arith.mulf %235, %235 : vector<6x128xf32>
    %cst_115 = arith.constant dense<0.000000e+00> : vector<6x128xf32>
    %237 = tpu.matmul %5, %236, %cst_115 {dimension_numbers = #tpu.dot_dimension_numbers<[1], [0], [0], [1], [0, 0, 1, 1], [], []>} : vector<6x6xf32>, vector<6x128xf32>, vector<6x128xf32> -> vector<6x128xf32>
    %238 = arith.subf %231, %234 : vector<6x128xf32>
    %cst_116 = arith.constant 9.99999974E-6 : f32
    %239 = vector.broadcast %cst_116 : f32 to vector<6x128xf32>
    %240 = arith.addf %237, %239 : vector<6x128xf32>
    %241 = math.rsqrt %240 : vector<6x128xf32>
    %242 = arith.mulf %238, %241 : vector<6x128xf32>
    %243 = arith.mulf %242, %232 : vector<6x128xf32>
    %244 = arith.addf %243, %233 : vector<6x128xf32>
    %cst_117 = arith.constant 0.000000e+00 : f32
    %245 = vector.broadcast %cst_117 : f32 to vector<6x128xf32>
    %246 = arith.maximumf %244, %245 : vector<6x128xf32>
    %cst_118 = arith.constant dense<0.000000e+00> : vector<24x128xf32>
    %247 = tpu.matmul %4, %246, %cst_118 {dimension_numbers = #tpu.dot_dimension_numbers<[1], [0], [0], [1], [0, 0, 1, 1], [], []>} : vector<24x6xf32>, vector<6x128xf32>, vector<24x128xf32> -> vector<24x128xf32>
    %248 = arith.addf %206, %247 : vector<24x128xf32>
    %249 = vector.extract_strided_slice %9 {offsets = [0, 256], sizes = [48, 128], strides = [1, 1]} : vector<48x384xf32> to vector<48x128xf32>
    %250 = arith.extf %0 : vector<48x24xbf16> to vector<48x24xf32>
    %cst_119 = arith.constant dense<0.000000e+00> : vector<48x128xf32>
    %251 = tpu.matmul %250, %248, %cst_119 {dimension_numbers = #tpu.dot_dimension_numbers<[1], [0], [0], [1], [0, 0, 1, 1], [], []>} : vector<48x24xf32>, vector<24x128xf32>, vector<48x128xf32> -> vector<48x128xf32>
    %252 = arith.addf %251, %249 : vector<48x128xf32>
    %cst_120 = arith.constant 0.000000e+00 : f32
    %253 = vector.broadcast %cst_120 : f32 to vector<48x128xf32>
    %254 = arith.maximumf %252, %253 : vector<48x128xf32>
    %255 = arith.extf %1 : vector<24x48xbf16> to vector<24x48xf32>
    %cst_121 = arith.constant dense<0.000000e+00> : vector<24x128xf32>
    %256 = tpu.matmul %255, %254, %cst_121 {dimension_numbers = #tpu.dot_dimension_numbers<[1], [0], [0], [1], [0, 0, 1, 1], [], []>} : vector<24x48xf32>, vector<48x128xf32>, vector<24x128xf32> -> vector<24x128xf32>
    %c256 = arith.constant 256 : index
    %c0_122 = arith.constant 0 : index
    %257 = vector.load %arg8[%c256, %c0_122] : memref<640x128xf32, #tpu.memory_space<vmem>>, vector<128x128xf32>
    %258 = arith.addf %248, %256 : vector<24x128xf32>
    %cst_123 = arith.constant dense<0.000000e+00> : vector<24x128xf32>
    %259 = tpu.matmul %258, %257, %cst_123 {dimension_numbers = #tpu.dot_dimension_numbers<[1], [0], [0], [1], [0, 0, 1, 1], [], []>} : vector<24x128xf32>, vector<128x128xf32>, vector<24x128xf32> -> vector<24x128xf32>
    %c13 = arith.constant 13 : index
    %c0_124 = arith.constant 0 : index
    %260 = vector.load %arg12[%c13, %c0_124] : memref<73x128xf32, #tpu.memory_space<vmem>>, vector<1x128xf32>
    %261 = vector.broadcast %260 : vector<1x128xf32> to vector<24x128xf32>
    %262 = arith.addf %259, %261 : vector<24x128xf32>
    %c14 = arith.constant 14 : index
    %c0_125 = arith.constant 0 : index
    %263 = vector.load %arg12[%c14, %c0_125] : memref<73x128xf32, #tpu.memory_space<vmem>>, vector<1x128xf32>
    %c15 = arith.constant 15 : index
    %c0_126 = arith.constant 0 : index
    %264 = vector.load %arg12[%c15, %c0_126] : memref<73x128xf32, #tpu.memory_space<vmem>>, vector<1x128xf32>
    %cst_127 = arith.constant dense<0.000000e+00> : vector<128xf32>
    %265 = vector.multi_reduction <add>, %262, %cst_127 [0] : vector<24x128xf32> to vector<128xf32>
    %266 = vector.shape_cast %265 : vector<128xf32> to vector<1x128xf32>
    %cst_128 = arith.constant 2.400000e+01 : f32
    %267 = vector.broadcast %cst_128 : f32 to vector<1x128xf32>
    %268 = arith.divf %266, %267 : vector<1x128xf32>
    %269 = vector.broadcast %268 : vector<1x128xf32> to vector<24x128xf32>
    %270 = arith.subf %262, %269 : vector<24x128xf32>
    %271 = arith.mulf %270, %270 : vector<24x128xf32>
    %cst_129 = arith.constant dense<0.000000e+00> : vector<128xf32>
    %272 = vector.multi_reduction <add>, %271, %cst_129 [0] : vector<24x128xf32> to vector<128xf32>
    %273 = vector.shape_cast %272 : vector<128xf32> to vector<1x128xf32>
    %cst_130 = arith.constant 2.400000e+01 : f32
    %274 = vector.broadcast %cst_130 : f32 to vector<1x128xf32>
    %275 = arith.divf %273, %274 : vector<1x128xf32>
    %276 = vector.broadcast %268 : vector<1x128xf32> to vector<24x128xf32>
    %277 = arith.subf %262, %276 : vector<24x128xf32>
    %cst_131 = arith.constant 9.99999974E-6 : f32
    %278 = vector.broadcast %cst_131 : f32 to vector<1x128xf32>
    %279 = arith.addf %275, %278 : vector<1x128xf32>
    %280 = math.rsqrt %279 : vector<1x128xf32>
    %281 = vector.broadcast %280 : vector<1x128xf32> to vector<24x128xf32>
    %282 = arith.mulf %277, %281 : vector<24x128xf32>
    %283 = vector.broadcast %263 : vector<1x128xf32> to vector<24x128xf32>
    %284 = arith.mulf %282, %283 : vector<24x128xf32>
    %285 = vector.broadcast %264 : vector<1x128xf32> to vector<24x128xf32>
    %286 = arith.addf %284, %285 : vector<24x128xf32>
    %cst_132 = arith.constant 0.000000e+00 : f32
    %287 = vector.broadcast %cst_132 : f32 to vector<24x128xf32>
    %288 = arith.maximumf %286, %287 : vector<24x128xf32>
    %c256_133 = arith.constant 256 : index
    %c0_134 = arith.constant 0 : index
    %289 = vector.load %arg9[%c256_133, %c0_134] : memref<640x128xf32, #tpu.memory_space<vmem>>, vector<128x128xf32>
    %cst_135 = arith.constant dense<0.000000e+00> : vector<24x128xf32>
    %290 = tpu.matmul %288, %289, %cst_135 {dimension_numbers = #tpu.dot_dimension_numbers<[1], [0], [0], [1], [0, 0, 1, 1], [], []>} : vector<24x128xf32>, vector<128x128xf32>, vector<24x128xf32> -> vector<24x128xf32>
    %c16 = arith.constant 16 : index
    %c0_136 = arith.constant 0 : index
    %291 = vector.load %arg12[%c16, %c0_136] : memref<73x128xf32, #tpu.memory_space<vmem>>, vector<1x128xf32>
    %292 = vector.broadcast %291 : vector<1x128xf32> to vector<24x128xf32>
    %293 = arith.addf %290, %292 : vector<24x128xf32>
    %c17 = arith.constant 17 : index
    %c0_137 = arith.constant 0 : index
    %294 = vector.load %arg12[%c17, %c0_137] : memref<73x128xf32, #tpu.memory_space<vmem>>, vector<1x128xf32>
    %c18 = arith.constant 18 : index
    %c0_138 = arith.constant 0 : index
    %295 = vector.load %arg12[%c18, %c0_138] : memref<73x128xf32, #tpu.memory_space<vmem>>, vector<1x128xf32>
    %cst_139 = arith.constant dense<0.000000e+00> : vector<128xf32>
    %296 = vector.multi_reduction <add>, %293, %cst_139 [0] : vector<24x128xf32> to vector<128xf32>
    %297 = vector.shape_cast %296 : vector<128xf32> to vector<1x128xf32>
    %cst_140 = arith.constant 2.400000e+01 : f32
    %298 = vector.broadcast %cst_140 : f32 to vector<1x128xf32>
    %299 = arith.divf %297, %298 : vector<1x128xf32>
    %300 = vector.broadcast %299 : vector<1x128xf32> to vector<24x128xf32>
    %301 = arith.subf %293, %300 : vector<24x128xf32>
    %302 = arith.mulf %301, %301 : vector<24x128xf32>
    %cst_141 = arith.constant dense<0.000000e+00> : vector<128xf32>
    %303 = vector.multi_reduction <add>, %302, %cst_141 [0] : vector<24x128xf32> to vector<128xf32>
    %304 = vector.shape_cast %303 : vector<128xf32> to vector<1x128xf32>
    %cst_142 = arith.constant 2.400000e+01 : f32
    %305 = vector.broadcast %cst_142 : f32 to vector<1x128xf32>
    %306 = arith.divf %304, %305 : vector<1x128xf32>
    %307 = vector.broadcast %299 : vector<1x128xf32> to vector<24x128xf32>
    %308 = arith.subf %293, %307 : vector<24x128xf32>
    %cst_143 = arith.constant 9.99999974E-6 : f32
    %309 = vector.broadcast %cst_143 : f32 to vector<1x128xf32>
    %310 = arith.addf %306, %309 : vector<1x128xf32>
    %311 = math.rsqrt %310 : vector<1x128xf32>
    %312 = vector.broadcast %311 : vector<1x128xf32> to vector<24x128xf32>
    %313 = arith.mulf %308, %312 : vector<24x128xf32>
    %314 = vector.broadcast %294 : vector<1x128xf32> to vector<24x128xf32>
    %315 = arith.mulf %313, %314 : vector<24x128xf32>
    %316 = vector.broadcast %295 : vector<1x128xf32> to vector<24x128xf32>
    %317 = arith.addf %315, %316 : vector<24x128xf32>
    %cst_144 = arith.constant dense<0.000000e+00> : vector<2x128xf32>
    %318 = tpu.matmul %3, %317, %cst_144 {dimension_numbers = #tpu.dot_dimension_numbers<[1], [0], [0], [1], [0, 0, 1, 1], [], []>} : vector<2x24xf32>, vector<24x128xf32>, vector<2x128xf32> -> vector<2x128xf32>
    %c0_145 = arith.constant 0 : index
    %c0_146 = arith.constant 0 : index
    %319 = vector.load %arg11[%c0_145, %c0_146] : memref<128x256xf32, #tpu.memory_space<vmem>>, vector<128x128xf32>
    %cst_147 = arith.constant dense<0.000000e+00> : vector<2x128xf32>
    %320 = tpu.matmul %318, %319, %cst_147 {dimension_numbers = #tpu.dot_dimension_numbers<[1], [0], [0], [1], [0, 0, 1, 1], [], []>} : vector<2x128xf32>, vector<128x128xf32>, vector<2x128xf32> -> vector<2x128xf32>
    %c71 = arith.constant 71 : index
    %c0_148 = arith.constant 0 : index
    %321 = vector.load %arg12[%c71, %c0_148] : memref<73x128xf32, #tpu.memory_space<vmem>>, vector<1x128xf32>
    %322 = vector.broadcast %321 : vector<1x128xf32> to vector<2x128xf32>
    %323 = arith.addf %320, %322 : vector<2x128xf32>
    %cst_149 = arith.constant 0.000000e+00 : f32
    %324 = vector.broadcast %cst_149 : f32 to vector<2x128xf32>
    %325 = arith.maximumf %323, %324 : vector<2x128xf32>
    %c0_150 = arith.constant 0 : index
    %c128_151 = arith.constant 128 : index
    %326 = vector.load %arg11[%c0_150, %c128_151] : memref<128x256xf32, #tpu.memory_space<vmem>>, vector<128x128xf32>
    %cst_152 = arith.constant dense<0.000000e+00> : vector<2x128xf32>
    %327 = tpu.matmul %325, %326, %cst_152 {dimension_numbers = #tpu.dot_dimension_numbers<[1], [0], [0], [1], [0, 0, 1, 1], [], []>} : vector<2x128xf32>, vector<128x128xf32>, vector<2x128xf32> -> vector<2x128xf32>
    %c72 = arith.constant 72 : index
    %c0_153 = arith.constant 0 : index
    %328 = vector.load %arg12[%c72, %c0_153] : memref<73x128xf32, #tpu.memory_space<vmem>>, vector<1x128xf32>
    %329 = vector.broadcast %328 : vector<1x128xf32> to vector<2x128xf32>
    %330 = arith.addf %327, %329 : vector<2x128xf32>
    %c0_154 = arith.constant 0 : index
    %c0_155 = arith.constant 0 : index
    %331 = vector.load %arg13[%c0_154, %c0_155] : memref<2x128xf32, #tpu.memory_space<vmem>>, vector<2x128xf32>
    tpu.vector_store %arg13[%c0_154, %c0_155], %330 {strides = array<i32>} : memref<2x128xf32, #tpu.memory_space<vmem>>, vector<2x128xf32>,
    return
  }
}

</mosaic_0001>

<llo_original>
// kernel: tpu_custom_call.1
$region0: #{tpu_custom_call.1}
  #allocation0 [shape = 'u32[]', space=smem, size = 0x4, offset = 0x4, fixed_abs, tag = 'smem constant byte address 0x4 - core index']
  #allocation1 [shape = 'u32[144,128]{1,0:T(1,128)}', space=vmem, size = 0x12000, scoped, tag = 'internal scratch']
  %s0 = inlined_call_operand.vmem [shape: f32[24,16], index: 0, kind: input, shape index: {}]
  %s1 = inlined_call_operand.vmem [shape: bf16[48,24], index: 1, kind: input, shape index: {}]
  %s2 = inlined_call_operand.vmem [shape: bf16[24,48], index: 2, kind: input, shape index: {}]
  %s3 = inlined_call_operand.vmem [shape: bf16[48,13], index: 3, kind: input, shape index: {}]
  %s4 = inlined_call_operand.hbm [shape: f32[8,24], index: 4, kind: input, shape index: {}]
  %s5 = inlined_call_operand.vmem [shape: f32[30,6], index: 5, kind: input, shape index: {}]
  %s6 = inlined_call_operand.vmem [shape: f32[6,128], index: 6, kind: input, shape index: {}]
  %s7 = inlined_call_operand.vmem [shape: f32[16,128], index: 7, kind: input, shape index: {}]
  %s8 = inlined_call_operand.hbm [shape: f32[640,128], index: 8, kind: input, shape index: {}]
  %s9 = inlined_call_operand.hbm [shape: f32[640,128], index: 9, kind: input, shape index: {}]
  %s10 = inlined_call_operand.vmem [shape: f32[13,384], index: 10, kind: input, shape index: {}]
  %s11 = inlined_call_operand.hbm [shape: f32[128,256], index: 11, kind: input, shape index: {}]
  %s12 = inlined_call_operand.vmem [shape: f32[73,128], index: 12, kind: input, shape index: {}]
  %s13 = inlined_call_operand.hbm [shape: f32[2,128], index: 13, kind: output, shape index: {}]
  %s14 = sld [smem:[#allocation0]]
  $region78: #{tpu_custom_call.1} parent=0
    _
  %s16 = ssub.s32 1, %s14
  %s17 = scalar_select 0, %s16, %s14
  $region1: #{tpu_custom_call.1} parent=0
    #allocation2 [shape = 'u8[4096]{0}', space=vmem, size = 0x1000, scoped, tag = 'input window, operand 4, single buffered']
    #allocation3 [shape = 's32[1]{0}', space=sflag, size = 0x4, scoped, tag = 'scoped memory for tpu_custom_call.1']
    #allocation4 [shape = 's32[1]{0}', space=sflag, size = 0x4, scoped, tag = 'scoped memory for tpu_custom_call.1']
    #allocation5 [shape = 'u8[327680]{0}', space=vmem, size = 0x50000, scoped, tag = 'input window, operand 8, single buffered']
    #allocation6 [shape = 's32[1]{0}', space=sflag, size = 0x4, scoped, tag = 'scoped memory for tpu_custom_call.1']
    #allocation7 [shape = 'u8[327680]{0}', space=vmem, size = 0x50000, scoped, tag = 'input window, operand 9, single buffered']
    #allocation8 [shape = 'u8[131072]{0}', space=vmem, size = 0x20000, scoped, tag = 'input window, operand 11, single buffered']
    #allocation9 [shape = 's32[1]{0}', space=sflag, size = 0x4, scoped, tag = 'scoped memory for tpu_custom_call.1']
    #allocation10 [shape = 'u8[1024]{0}', space=vmem, size = 0x400, scoped, tag = 'output window, operand 0, single buffered']
    %18 = vsyncpa [#allocation3], 0
    %19 = vsyncpa [#allocation6], 0
    %20 = vsyncpa [#allocation9], 0
    %21 = vsyncpa [#allocation4], 0
    // Predicated region
    $region2: #{tpu_custom_call.1} parent=1 // pred_check
      _
    $region3: #{tpu_custom_call.1} parent=1 // pred_check_branch
      %23 = sbr.rel (0) target = $region5
    $region4: #{tpu_custom_call.1} parent=1 // pred_region
      _
    $region5: #{tpu_custom_call.1} parent=1 // pred_fallthru
      _
    // Predicated region
    $region6: #{tpu_custom_call.1} parent=1 // pred_check
      _
    $region7: #{tpu_custom_call.1} parent=1 // pred_check_branch
      %25 = sbr.rel (0) target = $region9
    $region8: #{tpu_custom_call.1} parent=1 // pred_region
      _
    $region9: #{tpu_custom_call.1} parent=1 // pred_fallthru
      _
    // Predicated region
    $region10: #{tpu_custom_call.1} parent=1 // pred_check
      _
    $region11: #{tpu_custom_call.1} parent=1 // pred_check_branch
      %27 = sbr.rel (0) target = $region13
    $region12: #{tpu_custom_call.1} parent=1 // pred_region
      _
    $region13: #{tpu_custom_call.1} parent=1 // pred_fallthru
      _
    // Predicated region
    $region14: #{tpu_custom_call.1} parent=1 // pred_check
      _
    $region15: #{tpu_custom_call.1} parent=1 // pred_check_branch
      %29 = sbr.rel (0) target = $region17
    $region16: #{tpu_custom_call.1} parent=1 // pred_region
      _
    $region17: #{tpu_custom_call.1} parent=1 // pred_fallthru
      _
    // Predicated region
    $region18: #{tpu_custom_call.1} parent=1 // pred_check
      _
    $region19: #{tpu_custom_call.1} parent=1 // pred_check_branch
      %31 = sbr.rel (0) target = $region21
    $region20: #{tpu_custom_call.1} parent=1 // pred_region
      %s33 = ssub.s32 128, 128
      %34 = vsyncadd [#allocation3], %s33
      %s36 = sshll.u32 [#allocation2], 4
      %s37 = int_to_ptr.vmem [resolvable:$true] %s36
      %39 = dma.hbm_to_vmem [thread:$0]  %s4, 128, %s37, [#allocation3]
    $region21: #{tpu_custom_call.1} parent=1 // pred_fallthru
      _
    // Predicated region
    $region22: #{tpu_custom_call.1} parent=1 // pred_check
      _
    $region23: #{tpu_custom_call.1} parent=1 // pred_check_branch
      %41 = sbr.rel (0) target = $region25
    $region24: #{tpu_custom_call.1} parent=1 // pred_region
      _
    $region25: #{tpu_custom_call.1} parent=1 // pred_fallthru
      _
    // Predicated region
    $region26: #{tpu_custom_call.1} parent=1 // pred_check
      _
    $region27: #{tpu_custom_call.1} parent=1 // pred_check_branch
      %43 = sbr.rel (0) target = $region29
    $region28: #{tpu_custom_call.1} parent=1 // pred_region
      _
    $region29: #{tpu_custom_call.1} parent=1 // pred_fallthru
      _
    // Predicated region
    $region30: #{tpu_custom_call.1} parent=1 // pred_check
      _
    $region31: #{tpu_custom_call.1} parent=1 // pred_check_branch
      %45 = sbr.rel (0) target = $region33
    $region32: #{tpu_custom_call.1} parent=1 // pred_region
      _
    $region33: #{tpu_custom_call.1} parent=1 // pred_fallthru
      _
    // Predicated region
    $region34: #{tpu_custom_call.1} parent=1 // pred_check
      _
    $region35: #{tpu_custom_call.1} parent=1 // pred_check_branch
      %47 = sbr.rel (0) target = $region37
    $region36: #{tpu_custom_call.1} parent=1 // pred_region
      %s49 = ssub.s32 10240, 10240
      %50 = vsyncadd [#allocation6], %s49
      %s51 = sshll.u32 [#allocation5], 4
      %s52 = int_to_ptr.vmem [resolvable:$true] %s51
      %57 = dma.hbm_to_vmem [thread:$0]  %s8, 10240, %s52, [#allocation6], 128, 128, 8
    $region37: #{tpu_custom_call.1} parent=1 // pred_fallthru
      _
    // Predicated region
    $region38: #{tpu_custom_call.1} parent=1 // pred_check
      _
    $region39: #{tpu_custom_call.1} parent=1 // pred_check_branch
      %59 = sbr.rel (0) target = $region41
    $region40: #{tpu_custom_call.1} parent=1 // pred_region
      %s61 = ssub.s32 10240, 10240
      %62 = vsyncadd [#allocation6], %s61
      %s63 = sshll.u32 [#allocation7], 4
      %s64 = int_to_ptr.vmem [resolvable:$true] %s63
      %69 = dma.hbm_to_vmem [thread:$0]  %s9, 10240, %s64, [#allocation6], 128, 128, 8
    $region41: #{tpu_custom_call.1} parent=1 // pred_fallthru
      _
    // Predicated region
    $region42: #{tpu_custom_call.1} parent=1 // pred_check
      _
    $region43: #{tpu_custom_call.1} parent=1 // pred_check_branch
      %71 = sbr.rel (0) target = $region45
    $region44: #{tpu_custom_call.1} parent=1 // pred_region
      _
    $region45: #{tpu_custom_call.1} parent=1 // pred_fallthru
      _
    // Predicated region
    $region46: #{tpu_custom_call.1} parent=1 // pred_check
      _
    $region47: #{tpu_custom_call.1} parent=1 // pred_check_branch
      %73 = sbr.rel (0) target = $region49
    $region48: #{tpu_custom_call.1} parent=1 // pred_region
      %s75 = ssub.s32 4096, 4096
      %76 = vsyncadd [#allocation9], %s75
      %s77 = sshll.u32 [#allocation8], 4
      %s78 = int_to_ptr.vmem [resolvable:$true] %s77
      %83 = dma.hbm_to_vmem [thread:$0]  %s11, 4096, %s78, [#allocation9], 256, 256, 16
    $region49: #{tpu_custom_call.1} parent=1 // pred_fallthru
      _
    // Predicated region
    $region50: #{tpu_custom_call.1} parent=1 // pred_check
      _
    $region51: #{tpu_custom_call.1} parent=1 // pred_check_branch
      %85 = sbr.rel (0) target = $region53
    $region52: #{tpu_custom_call.1} parent=1 // pred_region
      _
    $region53: #{tpu_custom_call.1} parent=1 // pred_fallthru
      _
    // Predicated region
    $region54: #{tpu_custom_call.1} parent=1 // pred_check
      _
    $region55: #{tpu_custom_call.1} parent=1 // pred_check_branch
      %87 = sbr.rel (0) target = $region57
    $region56: #{tpu_custom_call.1} parent=1 // pred_region
      %88 = dma.done [#allocation3], 128
    $region57: #{tpu_custom_call.1} parent=1 // pred_fallthru
      _
    // Predicated region
    $region58: #{tpu_custom_call.1} parent=1 // pred_check
      _
    $region59: #{tpu_custom_call.1} parent=1 // pred_check_branch
      %90 = sbr.rel (0) target = $region61
    $region60: #{tpu_custom_call.1} parent=1 // pred_region
      %91 = dma.done [#allocation6], 10240
    $region61: #{tpu_custom_call.1} parent=1 // pred_fallthru
      _
    // Predicated region
    $region62: #{tpu_custom_call.1} parent=1 // pred_check
      _
    $region63: #{tpu_custom_call.1} parent=1 // pred_check_branch
      %93 = sbr.rel (0) target = $region65
    $region64: #{tpu_custom_call.1} parent=1 // pred_region
      %94 = dma.done [#allocation6], 10240
    $region65: #{tpu_custom_call.1} parent=1 // pred_fallthru
      _
    // Predicated region
    $region66: #{tpu_custom_call.1} parent=1 // pred_check
      _
    $region67: #{tpu_custom_call.1} parent=1 // pred_check_branch
      %96 = sbr.rel (0) target = $region69
    $region68: #{tpu_custom_call.1} parent=1 // pred_region
      %97 = dma.done [#allocation9], 4096
    $region69: #{tpu_custom_call.1} parent=1 // pred_fallthru
      _
    %v98 = vld [vmem:[%s1] sm:$0xf]
    %v99 = vld [vmem:[%s1 + $0x4] sm:$0xf]
    %v100 = vld [vmem:[%s1 + $0x8] sm:$0xf]
    %v101 = vld [vmem:[%s1 + $0xc] sm:$0xf]
    %v102 = vld [vmem:[%s1 + $0x10] sm:$0xf]
    %v103 = vld [vmem:[%s1 + $0x14] sm:$0xf]
    %v104 = vld [vmem:[%s2] sm:$0xf]
    %v105 = vld [vmem:[%s2 + $0x4] sm:$0xf]
    %v106 = vld [vmem:[%s2 + $0x8] sm:$0xf]
    %v107 = vld [vmem:[#allocation2] sm:$0x3f]
    %v108 = vld [vmem:[#allocation2 + $0x6] sm:$0x3]
    %v109 = vld [vmem:[%s5] sm:$0xff]
    %v110 = vld [vmem:[%s5 + $0x8] sm:$0xff]
    %v111 = vld [vmem:[%s5 + $0x10] sm:$0xff]
    %v112 = vld [vmem:[%s5 + $0x18] sm:$0x3f]
    %v113 = vld [vmem:[%s3] sm:$0xf]
    %v114 = vld [vmem:[%s3 + $0x4] sm:$0xf]
    %v115 = vld [vmem:[%s3 + $0x8] sm:$0xf]
    %v116 = vld [vmem:[%s3 + $0xc] sm:$0xf]
    %v117 = vld [vmem:[%s3 + $0x10] sm:$0xf]
    %v118 = vld [vmem:[%s3 + $0x14] sm:$0xf]
    %v119 = vld [vmem:[%s10] sm:$0xff]
    %v120 = vld [vmem:[%s10 + $0x8] sm:$0xff]
    %v121 = vld [vmem:[%s10 + $0x10] sm:$0xff]
    %v122 = vld [vmem:[%s10 + $0x18] sm:$0x1f]
    %v123 = vld [vmem:[%s10 + $0x20] sm:$0x1f]
    %v124 = vld [vmem:[%s10 + $0x28] sm:$0x1f]
    %v125 = vunpack.c.l.bf16 %v113
    %v126 = vunpack.c.l.bf16 %v114
    %v127 = vunpack.c.l.bf16 %v115
    %v128 = vunpack.c.l.bf16 %v116
    %v129 = vunpack.c.l.bf16 %v117
    %v130 = vunpack.c.l.bf16 %v118
    %vm131 = vcmask 105472
    %v133 = vsel %vm131, %v125, 0
    %v136 = vsel %vm131, %v126, 0
    %v139 = vsel %vm131, %v127, 0
    %v142 = vsel %vm131, %v128, 0
    %v145 = vsel %vm131, %v129, 0
    %v148 = vsel %vm131, %v130, 0
    %vm150 = vcmask 1044480
    %v152 = vsel %vm150, %v122, 0
    %v155 = vsel %vm150, %v123, 0
    %v158 = vsel %vm150, %v124, 0
    %160 = vmatprep.subr.mxu0 %v120
    %161 = vmatpush1.msra.mxu0 %v119
    %162 = vmatprep.subr.mxu0 %v155
    %163 = vmatpush1.msra.mxu0 %v152
    %164 = vmatprep.subr.mxu0 0.0
    %165 = vmatpush1.msra.mxu0 0.0
    %166 = vmatprep.subr.mxu0 0.0
    %167 = vmatpush1.msra.mxu0 0.0
    %168 = vmatprep.subr.mxu0 0.0
    %169 = vmatpush1.msra.mxu0 0.0
    %170 = vmatprep.subr.mxu0 0.0
    %171 = vmatpush1.msra.mxu0 0.0
    %172 = vmatprep.subr.mxu0 0.0
    %173 = vmatpush1.msra.mxu0 0.0
    %174 = vmatprep.subr.mxu0 0.0
    %175 = vmatpush1.msra.mxu0 0.0
    %176 = vmatprep.subr.mxu0 0.0
    %177 = vmatpush1.msra.mxu0 0.0
    %178 = vmatprep.subr.mxu0 0.0
    %179 = vmatpush1.msra.mxu0 0.0
    %180 = vmatprep.subr.mxu0 0.0
    %181 = vmatpush1.msra.mxu0 0.0
    %182 = vmatprep.subr.mxu0 0.0
    %183 = vmatpush1.msra.mxu0 0.0
    %184 = vmatprep.subr.mxu0 0.0
    %185 = vmatpush1.msra.mxu0 0.0
    %186 = vmatprep.subr.mxu0 0.0
    %187 = vmatpush1.msra.mxu0 0.0
    %188 = vmatprep.subr.mxu0 0.0
    %189 = vmatpush1.msra.mxu0 0.0
    %190 = vmatprep.subr.mxu0 0.0
    %191 = vmatpush1.msra.mxu0 0.0
    %192 = vmatprep.subr.mxu0 0.0
    %193 = vmatpush1.msra.mxu0 0.0
    %194 = vmatprep.subr.mxu0 0.0
    %195 = vmatpush1.msra.mxu0 0.0
    %196 = vmatprep.subr.mxu0 0.0
    %197 = vmatpush1.msra.mxu0 0.0
    %198 = vmatprep.subr.mxu0 0.0
    %199 = vmatpush1.msra.mxu0 0.0
    %200 = vmatprep.subr.mxu0 0.0
    %201 = vmatpush1.msra.mxu0 0.0
    %202 = vmatprep.subr.mxu0 0.0
    %203 = vmatpush1.msra.mxu0 0.0
    %204 = vmatprep.subr.mxu0 0.0
    %205 = vmatpush1.msra.mxu0 0.0
    %206 = vmatprep.subr.mxu0 0.0
    %207 = vmatpush1.msra.mxu0 0.0
    %208 = vmatprep.subr.mxu0 0.0
    %209 = vmatpush1.msra.mxu0 0.0
    %210 = vmatprep.subr.mxu0 0.0
    %211 = vmatpush1.msra.mxu0 0.0
    %212 = vmatprep.subr.mxu0 0.0
    %213 = vmatpush1.msra.mxu0 0.0
    %214 = vmatprep.subr.mxu0 0.0
    %215 = vmatpush1.msra.mxu0 0.0
    %216 = vmatprep.subr.mxu0 0.0
    %217 = vmatpush1.msra.mxu0 0.0
    %218 = vmatprep.subr.mxu0 0.0
    %219 = vmatpush1.msra.mxu0 0.0
    %220 = vmatprep.subr.mxu0 0.0
    %221 = vmatpush1.msra.mxu0 0.0
    %222 = vmatprep.subr.mxu0 0.0
    %223 = vmatpush1.msra.mxu0 0.0
    %224 = vmatprep.mubr.f32.mxu0 0.0
    %225 = vmatmul.mubr.f32.gmra.mrb[0].mxu0 %v133
    %v226 = vpop.f32.mrb[0].mxu0
    %v227 = vadd.f32 0.0, %v226
    %v228 = vpop.f32.mrb[0].mxu0
    %v229 = vadd.f32 0.0, %v228
    %230 = vmatprep.mubr.f32.mxu0 0.0
    %231 = vmatmul.mubr.f32.gmra.mrb[0].mxu0 %v136
    %v232 = vpop.f32.mrb[0].mxu0
    %v233 = vadd.f32 0.0, %v232
    %v234 = vpop.f32.mrb[0].mxu0
    %v235 = vadd.f32 0.0, %v234
    %236 = vmatprep.mubr.f32.mxu0 0.0
    %237 = vmatmul.mubr.f32.gmra.mrb[0].mxu0 %v139
    %v238 = vpop.f32.mrb[0].mxu0
    %v239 = vadd.f32 0.0, %v238
    %v240 = vpop.f32.mrb[0].mxu0
    %v241 = vadd.f32 0.0, %v240
    %242 = vmatprep.mubr.f32.mxu0 0.0
    %243 = vmatmul.mubr.f32.gmra.mrb[0].mxu0 %v142
    %v244 = vpop.f32.mrb[0].mxu0
    %v245 = vadd.f32 0.0, %v244
    %v246 = vpop.f32.mrb[0].mxu0
    %v247 = vadd.f32 0.0, %v246
    %248 = vmatprep.mubr.f32.mxu0 0.0
    %249 = vmatmul.mubr.f32.gmra.mrb[0].mxu0 %v145
    %v250 = vpop.f32.mrb[0].mxu0
    %v251 = vadd.f32 0.0, %v250
    %v252 = vpop.f32.mrb[0].mxu0
    %v253 = vadd.f32 0.0, %v252
    %254 = vmatprep.mubr.f32.mxu0 0.0
    %255 = vmatmul.mubr.f32.gmra.mrb[0].mxu0 %v148
    %v256 = vpop.f32.mrb[0].mxu0
    %v257 = vadd.f32 0.0, %v256
    %v258 = vpop.f32.mrb[0].mxu0
    %v259 = vadd.f32 0.0, %v258
    %260 = vdwg.mxu0
    %261 = vmatprep.subr.mxu0 0.0
    %262 = vmatpush1.msra.mxu0 %v121
    %263 = vmatprep.subr.mxu0 0.0
    %264 = vmatpush1.msra.mxu0 %v158
    %265 = vmatprep.subr.mxu0 0.0
    %266 = vmatpush1.msra.mxu0 0.0
    %267 = vmatprep.subr.mxu0 0.0
    %268 = vmatpush1.msra.mxu0 0.0
    %269 = vmatprep.subr.mxu0 0.0
    %270 = vmatpush1.msra.mxu0 0.0
    %271 = vmatprep.subr.mxu0 0.0
    %272 = vmatpush1.msra.mxu0 0.0
    %273 = vmatprep.subr.mxu0 0.0
    %274 = vmatpush1.msra.mxu0 0.0
    %275 = vmatprep.subr.mxu0 0.0
    %276 = vmatpush1.msra.mxu0 0.0
    %277 = vmatprep.subr.mxu0 0.0
    %278 = vmatpush1.msra.mxu0 0.0
    %279 = vmatprep.subr.mxu0 0.0
    %280 = vmatpush1.msra.mxu0 0.0
    %281 = vmatprep.subr.mxu0 0.0
    %282 = vmatpush1.msra.mxu0 0.0
    %283 = vmatprep.subr.mxu0 0.0
    %284 = vmatpush1.msra.mxu0 0.0
    %285 = vmatprep.subr.mxu0 0.0
    %286 = vmatpush1.msra.mxu0 0.0
    %287 = vmatprep.subr.mxu0 0.0
    %288 = vmatpush1.msra.mxu0 0.0
    %289 = vmatprep.subr.mxu0 0.0
    %290 = vmatpush1.msra.mxu0 0.0
    %291 = vmatprep.subr.mxu0 0.0
    %292 = vmatpush1.msra.mxu0 0.0
    %293 = vmatprep.subr.mxu0 0.0
    %294 = vmatpush1.msra.mxu0 0.0
    %295 = vmatprep.subr.mxu0 0.0
    %296 = vmatpush1.msra.mxu0 0.0
    %297 = vmatprep.subr.mxu0 0.0
    %298 = vmatpush1.msra.mxu0 0.0
    %299 = vmatprep.subr.mxu0 0.0
    %300 = vmatpush1.msra.mxu0 0.0
    %301 = vmatprep.subr.mxu0 0.0
    %302 = vmatpush1.msra.mxu0 0.0
    %303 = vmatprep.subr.mxu0 0.0
    %304 = vmatpush1.msra.mxu0 0.0
    %305 = vmatprep.subr.mxu0 0.0
    %306 = vmatpush1.msra.mxu0 0.0
    %307 = vmatprep.subr.mxu0 0.0
    %308 = vmatpush1.msra.mxu0 0.0
    %309 = vmatprep.subr.mxu0 0.0
    %310 = vmatpush1.msra.mxu0 0.0
    %311 = vmatprep.subr.mxu0 0.0
    %312 = vmatpush1.msra.mxu0 0.0
    %313 = vmatprep.subr.mxu0 0.0
    %314 = vmatpush1.msra.mxu0 0.0
    %315 = vmatprep.subr.mxu0 0.0
    %316 = vmatpush1.msra.mxu0 0.0
    %317 = vmatprep.subr.mxu0 0.0
    %318 = vmatpush1.msra.mxu0 0.0
    %319 = vmatprep.subr.mxu0 0.0
    %320 = vmatpush1.msra.mxu0 0.0
    %321 = vmatprep.subr.mxu0 0.0
    %322 = vmatpush1.msra.mxu0 0.0
    %323 = vmatprep.subr.mxu0 0.0
    %324 = vmatpush1.msra.mxu0 0.0
    %325 = vmatprep.mubr.f32.mxu0 0.0
    %326 = vmatmul.mubr.f32.gmra.mrb[0].mxu0 %v133
    %v327 = vpop.f32.mrb[0].mxu0
    %v328 = vadd.f32 0.0, %v327
    %v329 = vpop.f32.mrb[0].mxu0
    %330 = vmatprep.mubr.f32.mxu0 0.0
    %331 = vmatmul.mubr.f32.gmra.mrb[0].mxu0 %v136
    %v332 = vpop.f32.mrb[0].mxu0
    %v333 = vadd.f32 0.0, %v332
    %v334 = vpop.f32.mrb[0].mxu0
    %335 = vmatprep.mubr.f32.mxu0 0.0
    %336 = vmatmul.mubr.f32.gmra.mrb[0].mxu0 %v139
    %v337 = vpop.f32.mrb[0].mxu0
    %v338 = vadd.f32 0.0, %v337
    %v339 = vpop.f32.mrb[0].mxu0
    %340 = vmatprep.mubr.f32.mxu0 0.0
    %341 = vmatmul.mubr.f32.gmra.mrb[0].mxu0 %v142
    %v342 = vpop.f32.mrb[0].mxu0
    %v343 = vadd.f32 0.0, %v342
    %v344 = vpop.f32.mrb[0].mxu0
    %345 = vmatprep.mubr.f32.mxu0 0.0
    %346 = vmatmul.mubr.f32.gmra.mrb[0].mxu0 %v145
    %v347 = vpop.f32.mrb[0].mxu0
    %v348 = vadd.f32 0.0, %v347
    %v349 = vpop.f32.mrb[0].mxu0
    %350 = vmatprep.mubr.f32.mxu0 0.0
    %351 = vmatmul.mubr.f32.gmra.mrb[0].mxu0 %v148
    %v352 = vpop.f32.mrb[0].mxu0
    %v353 = vadd.f32 0.0, %v352
    %v354 = vpop.f32.mrb[0].mxu0
    %355 = vdwg.mxu0
    %v356 = vld [vmem:[%s0] sm:$0xff]
    %v357 = vld [vmem:[%s0 + $0x8] sm:$0xff]
    %v358 = vld [vmem:[%s0 + $0x10] sm:$0xff]
    %v359 = vld [vmem:[%s7] sm:$0xff]
    %v360 = vld [vmem:[%s7 + $0x8] sm:$0xff]
    %v361 = vld [vmem:[%s12] sm:$0x1]
    %v362 = vlaneseq
    %v363 = vshrl.u32 %v362, 7
    %v364 = vsub.s32 0, %v363
    %v365 = vrot.slane %v361, %v364
    %vm366 = vcmask 130048
    %v368 = vsel %vm366, %v356, 0
    %v371 = vsel %vm366, %v357, 0
    %v374 = vsel %vm366, %v358, 0
    %376 = vmatprep.subr.mxu0 0.0
    %377 = vmatpush1.msra.mxu0 %v359
    %378 = vmatprep.subr.mxu0 0.0
    %379 = vmatpush1.msra.mxu0 %v360
    %380 = vmatprep.subr.mxu0 0.0
    %381 = vmatpush1.msra.mxu0 0.0
    %382 = vmatprep.subr.mxu0 0.0
    %383 = vmatpush1.msra.mxu0 0.0
    %384 = vmatprep.subr.mxu0 0.0
    %385 = vmatpush1.msra.mxu0 0.0
    %386 = vmatprep.subr.mxu0 0.0
    %387 = vmatpush1.msra.mxu0 0.0
    %388 = vmatprep.subr.mxu0 0.0
    %389 = vmatpush1.msra.mxu0 0.0
    %390 = vmatprep.subr.mxu0 0.0
    %391 = vmatpush1.msra.mxu0 0.0
    %392 = vmatprep.subr.mxu0 0.0
    %393 = vmatpush1.msra.mxu0 0.0
    %394 = vmatprep.subr.mxu0 0.0
    %395 = vmatpush1.msra.mxu0 0.0
    %396 = vmatprep.subr.mxu0 0.0
    %397 = vmatpush1.msra.mxu0 0.0
    %398 = vmatprep.subr.mxu0 0.0
    %399 = vmatpush1.msra.mxu0 0.0
    %400 = vmatprep.subr.mxu0 0.0
    %401 = vmatpush1.msra.mxu0 0.0
    %402 = vmatprep.subr.mxu0 0.0
    %403 = vmatpush1.msra.mxu0 0.0
    %404 = vmatprep.subr.mxu0 0.0
    %405 = vmatpush1.msra.mxu0 0.0
    %406 = vmatprep.subr.mxu0 0.0
    %407 = vmatpush1.msra.mxu0 0.0
    %408 = vmatprep.subr.mxu0 0.0
    %409 = vmatpush1.msra.mxu0 0.0
    %410 = vmatprep.subr.mxu0 0.0
    %411 = vmatpush1.msra.mxu0 0.0
    %412 = vmatprep.subr.mxu0 0.0
    %413 = vmatpush1.msra.mxu0 0.0
    %414 = vmatprep.subr.mxu0 0.0
    %415 = vmatpush1.msra.mxu0 0.0
    %416 = vmatprep.subr.mxu0 0.0
    %417 = vmatpush1.msra.mxu0 0.0
    %418 = vmatprep.subr.mxu0 0.0
    %419 = vmatpush1.msra.mxu0 0.0
    %420 = vmatprep.subr.mxu0 0.0
    %421 = vmatpush1.msra.mxu0 0.0
    %422 = vmatprep.subr.mxu0 0.0
    %423 = vmatpush1.msra.mxu0 0.0
    %424 = vmatprep.subr.mxu0 0.0
    %425 = vmatpush1.msra.mxu0 0.0
    %426 = vmatprep.subr.mxu0 0.0
    %427 = vmatpush1.msra.mxu0 0.0
    %428 = vmatprep.subr.mxu0 0.0
    %429 = vmatpush1.msra.mxu0 0.0
    %430 = vmatprep.subr.mxu0 0.0
    %431 = vmatpush1.msra.mxu0 0.0
    %432 = vmatprep.subr.mxu0 0.0
    %433 = vmatpush1.msra.mxu0 0.0
    %434 = vmatprep.subr.mxu0 0.0
    %435 = vmatpush1.msra.mxu0 0.0
    %436 = vmatprep.subr.mxu0 0.0
    %437 = vmatpush1.msra.mxu0 0.0
    %438 = vmatprep.subr.mxu0 0.0
    %439 = vmatpush1.msra.mxu0 0.0
    %440 = vmatprep.mubr.f32.mxu0 0.0
    %441 = vmatmul.mubr.f32.gmra.mrb[0].mxu0 %v368
    %v442 = vpop.f32.mrb[0].mxu0
    %v443 = vadd.f32 %v365, %v442
    %v444 = vpop.f32.mrb[0].mxu0
    %445 = vmatprep.mubr.f32.mxu0 0.0
    %446 = vmatmul.mubr.f32.gmra.mrb[0].mxu0 %v371
    %v447 = vpop.f32.mrb[0].mxu0
    %v448 = vadd.f32 %v365, %v447
    %v449 = vpop.f32.mrb[0].mxu0
    %450 = vmatprep.mubr.f32.mxu0 0.0
    %451 = vmatmul.mubr.f32.gmra.mrb[0].mxu0 %v374
    %v452 = vpop.f32.mrb[0].mxu0
    %v453 = vadd.f32 %v365, %v452
    %v454 = vpop.f32.mrb[0].mxu0
    %455 = vdwg.mxu0
    %v456 = vld [vmem:[%s6] sm:$0x3f]
    %vm457 = vcmask 195584
    %v459 = vsel %vm457, %v107, 0
    %461 = vmatprep.subr.mxu0 0.0
    %462 = vmatpush1.msra.mxu0 %v443
    %463 = vmatprep.subr.mxu0 0.0
    %464 = vmatpush1.msra.mxu0 %v448
    %465 = vmatprep.subr.mxu0 0.0
    %466 = vmatpush1.msra.mxu0 %v453
    %467 = vmatprep.subr.mxu0 0.0
    %468 = vmatpush1.msra.mxu0 0.0
    %469 = vmatprep.subr.mxu0 0.0
    %470 = vmatpush1.msra.mxu0 0.0
    %471 = vmatprep.subr.mxu0 0.0
    %472 = vmatpush1.msra.mxu0 0.0
    %473 = vmatprep.subr.mxu0 0.0
    %474 = vmatpush1.msra.mxu0 0.0
    %475 = vmatprep.subr.mxu0 0.0
    %476 = vmatpush1.msra.mxu0 0.0
    %477 = vmatprep.subr.mxu0 0.0
    %478 = vmatpush1.msra.mxu0 0.0
    %479 = vmatprep.subr.mxu0 0.0
    %480 = vmatpush1.msra.mxu0 0.0
    %481 = vmatprep.subr.mxu0 0.0
    %482 = vmatpush1.msra.mxu0 0.0
    %483 = vmatprep.subr.mxu0 0.0
    %484 = vmatpush1.msra.mxu0 0.0
    %485 = vmatprep.subr.mxu0 0.0
    %486 = vmatpush1.msra.mxu0 0.0
    %487 = vmatprep.subr.mxu0 0.0
    %488 = vmatpush1.msra.mxu0 0.0
    %489 = vmatprep.subr.mxu0 0.0
    %490 = vmatpush1.msra.mxu0 0.0
    %491 = vmatprep.subr.mxu0 0.0
    %492 = vmatpush1.msra.mxu0 0.0
    %493 = vmatprep.subr.mxu0 0.0
    %494 = vmatpush1.msra.mxu0 0.0
    %495 = vmatprep.subr.mxu0 0.0
    %496 = vmatpush1.msra.mxu0 0.0
    %497 = vmatprep.subr.mxu0 0.0
    %498 = vmatpush1.msra.mxu0 0.0
    %499 = vmatprep.subr.mxu0 0.0
    %500 = vmatpush1.msra.mxu0 0.0
    %501 = vmatprep.subr.mxu0 0.0
    %502 = vmatpush1.msra.mxu0 0.0
    %503 = vmatprep.subr.mxu0 0.0
    %504 = vmatpush1.msra.mxu0 0.0
    %505 = vmatprep.subr.mxu0 0.0
    %506 = vmatpush1.msra.mxu0 0.0
    %507 = vmatprep.subr.mxu0 0.0
    %508 = vmatpush1.msra.mxu0 0.0
    %509 = vmatprep.subr.mxu0 0.0
    %510 = vmatpush1.msra.mxu0 0.0
    %511 = vmatprep.subr.mxu0 0.0
    %512 = vmatpush1.msra.mxu0 0.0
    %513 = vmatprep.subr.mxu0 0.0
    %514 = vmatpush1.msra.mxu0 0.0
    %515 = vmatprep.subr.mxu0 0.0
    %516 = vmatpush1.msra.mxu0 0.0
    %517 = vmatprep.subr.mxu0 0.0
    %518 = vmatpush1.msra.mxu0 0.0
    %519 = vmatprep.subr.mxu0 0.0
    %520 = vmatpush1.msra.mxu0 0.0
    %521 = vmatprep.subr.mxu0 0.0
    %522 = vmatpush1.msra.mxu0 0.0
    %523 = vmatprep.subr.mxu0 0.0
    %524 = vmatpush1.msra.mxu0 0.0
    %525 = vmatprep.mubr.f32.mxu0 0.0
    %526 = vmatmul.mubr.f32.gmra.mrb[0].mxu0 %v459
    %v527 = vpop.f32.mrb[0].mxu0
    %v528 = vadd.f32 %v456, %v527
    %v529 = vpop.f32.mrb[0].mxu0
    %530 = vdwg.mxu0
    %vm531 = vcmask 48128
    %v533 = vsel %vm531, %v109, 0
    %v536 = vsel %vm531, %v110, 0
    %v539 = vsel %vm531, %v111, 0
    %vm541 = vcmask 1045504
    %v543 = vsel %vm541, %v456, 0
    %545 = vmatprep.subr.mxu0 0.0
    %546 = vmatpush1.msra.mxu0 %v543
    %547 = vmatprep.subr.mxu0 0.0
    %548 = vmatpush1.msra.mxu0 0.0
    %549 = vmatprep.subr.mxu0 0.0
    %550 = vmatpush1.msra.mxu0 0.0
    %551 = vmatprep.subr.mxu0 0.0
    %552 = vmatpush1.msra.mxu0 0.0
    %553 = vmatprep.subr.mxu0 0.0
    %554 = vmatpush1.msra.mxu0 0.0
    %555 = vmatprep.subr.mxu0 0.0
    %556 = vmatpush1.msra.mxu0 0.0
    %557 = vmatprep.subr.mxu0 0.0
    %558 = vmatpush1.msra.mxu0 0.0
    %559 = vmatprep.subr.mxu0 0.0
    %560 = vmatpush1.msra.mxu0 0.0
    %561 = vmatprep.subr.mxu0 0.0
    %562 = vmatpush1.msra.mxu0 0.0
    %563 = vmatprep.subr.mxu0 0.0
    %564 = vmatpush1.msra.mxu0 0.0
    %565 = vmatprep.subr.mxu0 0.0
    %566 = vmatpush1.msra.mxu0 0.0
    %567 = vmatprep.subr.mxu0 0.0
    %568 = vmatpush1.msra.mxu0 0.0
    %569 = vmatprep.subr.mxu0 0.0
    %570 = vmatpush1.msra.mxu0 0.0
    %571 = vmatprep.subr.mxu0 0.0
    %572 = vmatpush1.msra.mxu0 0.0
    %573 = vmatprep.subr.mxu0 0.0
    %574 = vmatpush1.msra.mxu0 0.0
    %575 = vmatprep.subr.mxu0 0.0
    %576 = vmatpush1.msra.mxu0 0.0
    %577 = vmatprep.subr.mxu0 0.0
    %578 = vmatpush1.msra.mxu0 0.0
    %579 = vmatprep.subr.mxu0 0.0
    %580 = vmatpush1.msra.mxu0 0.0
    %581 = vmatprep.subr.mxu0 0.0
    %582 = vmatpush1.msra.mxu0 0.0
    %583 = vmatprep.subr.mxu0 0.0
    %584 = vmatpush1.msra.mxu0 0.0
    %585 = vmatprep.subr.mxu0 0.0
    %586 = vmatpush1.msra.mxu0 0.0
    %587 = vmatprep.subr.mxu0 0.0
    %588 = vmatpush1.msra.mxu0 0.0
    %589 = vmatprep.subr.mxu0 0.0
    %590 = vmatpush1.msra.mxu0 0.0
    %591 = vmatprep.subr.mxu0 0.0
    %592 = vmatpush1.msra.mxu0 0.0
    %593 = vmatprep.subr.mxu0 0.0
    %594 = vmatpush1.msra.mxu0 0.0
    %595 = vmatprep.subr.mxu0 0.0
    %596 = vmatpush1.msra.mxu0 0.0
    %597 = vmatprep.subr.mxu0 0.0
    %598 = vmatpush1.msra.mxu0 0.0
    %599 = vmatprep.subr.mxu0 0.0
    %600 = vmatpush1.msra.mxu0 0.0
    %601 = vmatprep.subr.mxu0 0.0
    %602 = vmatpush1.msra.mxu0 0.0
    %603 = vmatprep.subr.mxu0 0.0
    %604 = vmatpush1.msra.mxu0 0.0
    %605 = vmatprep.subr.mxu0 0.0
    %606 = vmatpush1.msra.mxu0 0.0
    %607 = vmatprep.subr.mxu0 0.0
    %608 = vmatpush1.msra.mxu0 0.0
    %609 = vmatprep.mubr.f32.mxu0 0.0
    %610 = vmatmul.mubr.f32.gmra.mrb[0].mxu0 %v533
    %v611 = vpop.f32.mrb[0].mxu0
    %v612 = vadd.f32 0.0, %v611
    %v613 = vpop.f32.mrb[0].mxu0
    %614 = vmatprep.mubr.f32.mxu0 0.0
    %615 = vmatmul.mubr.f32.gmra.mrb[0].mxu0 %v536
    %v616 = vpop.f32.mrb[0].mxu0
    %v617 = vadd.f32 0.0, %v616
    %v618 = vpop.f32.mrb[0].mxu0
    %619 = vmatprep.mubr.f32.mxu0 0.0
    %620 = vmatmul.mubr.f32.gmra.mrb[0].mxu0 %v539
    %v621 = vpop.f32.mrb[0].mxu0
    %v622 = vadd.f32 0.0, %v621
    %v623 = vpop.f32.mrb[0].mxu0
    %624 = vdwg.mxu0
    %v625 = vadd.f32 %v443, %v612
    %v626 = vadd.f32 %v448, %v617
    %v627 = vadd.f32 %v453, %v622
    %v628 = vunpack.c.l.bf16 %v98
    %v629 = vunpack.c.l.bf16 %v99
    %v630 = vunpack.c.l.bf16 %v100
    %v631 = vunpack.c.l.bf16 %v101
    %v632 = vunpack.c.l.bf16 %v102
    %v633 = vunpack.c.l.bf16 %v103
    %v635 = vsel %vm457, %v628, 0
    %v638 = vsel %vm457, %v629, 0
    %v641 = vsel %vm457, %v630, 0
    %v644 = vsel %vm457, %v631, 0
    %v647 = vsel %vm457, %v632, 0
    %v650 = vsel %vm457, %v633, 0
    %652 = vmatprep.subr.mxu0 0.0
    %653 = vmatpush1.msra.mxu0 %v625
    %654 = vmatprep.subr.mxu0 0.0
    %655 = vmatpush1.msra.mxu0 %v626
    %656 = vmatprep.subr.mxu0 0.0
    %657 = vmatpush1.msra.mxu0 %v627
    %658 = vmatprep.subr.mxu0 0.0
    %659 = vmatpush1.msra.mxu0 0.0
    %660 = vmatprep.subr.mxu0 0.0
    %661 = vmatpush1.msra.mxu0 0.0
    %662 = vmatprep.subr.mxu0 0.0
    %663 = vmatpush1.msra.mxu0 0.0
    %664 = vmatprep.subr.mxu0 0.0
    %665 = vmatpush1.msra.mxu0 0.0
    %666 = vmatprep.subr.mxu0 0.0
    %667 = vmatpush1.msra.mxu0 0.0
    %668 = vmatprep.subr.mxu0 0.0
    %669 = vmatpush1.msra.mxu0 0.0
    %670 = vmatprep.subr.mxu0 0.0
    %671 = vmatpush1.msra.mxu0 0.0
    %672 = vmatprep.subr.mxu0 0.0
    %673 = vmatpush1.msra.mxu0 0.0
    %674 = vmatprep.subr.mxu0 0.0
    %675 = vmatpush1.msra.mxu0 0.0
    %676 = vmatprep.subr.mxu0 0.0
    %677 = vmatpush1.msra.mxu0 0.0
    %678 = vmatprep.subr.mxu0 0.0
    %679 = vmatpush1.msra.mxu0 0.0
    %680 = vmatprep.subr.mxu0 0.0
    %681 = vmatpush1.msra.mxu0 0.0
    %682 = vmatprep.subr.mxu0 0.0
    %683 = vmatpush1.msra.mxu0 0.0
    %684 = vmatprep.subr.mxu0 0.0
    %685 = vmatpush1.msra.mxu0 0.0
    %686 = vmatprep.subr.mxu0 0.0
    %687 = vmatpush1.msra.mxu0 0.0
    %688 = vmatprep.subr.mxu0 0.0
    %689 = vmatpush1.msra.mxu0 0.0
    %690 = vmatprep.subr.mxu0 0.0
    %691 = vmatpush1.msra.mxu0 0.0
    %692 = vmatprep.subr.mxu0 0.0
    %693 = vmatpush1.msra.mxu0 0.0
    %694 = vmatprep.subr.mxu0 0.0
    %695 = vmatpush1.msra.mxu0 0.0
    %696 = vmatprep.subr.mxu0 0.0
    %697 = vmatpush1.msra.mxu0 0.0
    %698 = vmatprep.subr.mxu0 0.0
    %699 = vmatpush1.msra.mxu0 0.0
    %700 = vmatprep.subr.mxu0 0.0
    %701 = vmatpush1.msra.mxu0 0.0
    %702 = vmatprep.subr.mxu0 0.0
    %703 = vmatpush1.msra.mxu0 0.0
    %704 = vmatprep.subr.mxu0 0.0
    %705 = vmatpush1.msra.mxu0 0.0
    %706 = vmatprep.subr.mxu0 0.0
    %707 = vmatpush1.msra.mxu0 0.0
    %708 = vmatprep.subr.mxu0 0.0
    %709 = vmatpush1.msra.mxu0 0.0
    %710 = vmatprep.subr.mxu0 0.0
    %711 = vmatpush1.msra.mxu0 0.0
    %712 = vmatprep.subr.mxu0 0.0
    %713 = vmatpush1.msra.mxu0 0.0
    %714 = vmatprep.subr.mxu0 0.0
    %715 = vmatpush1.msra.mxu0 0.0
    %716 = vmatprep.mubr.f32.mxu0 0.0
    %717 = vmatmul.mubr.f32.gmra.mrb[0].mxu0 %v635
    %v718 = vpop.f32.mrb[0].mxu0
    %v719 = vadd.f32 %v227, %v718
    %v720 = vpop.f32.mrb[0].mxu0
    %721 = vmatprep.mubr.f32.mxu0 0.0
    %722 = vmatmul.mubr.f32.gmra.mrb[0].mxu0 %v638
    %v723 = vpop.f32.mrb[0].mxu0
    %v724 = vadd.f32 %v233, %v723
    %v725 = vpop.f32.mrb[0].mxu0
    %726 = vmatprep.mubr.f32.mxu0 0.0
    %727 = vmatmul.mubr.f32.gmra.mrb[0].mxu0 %v641
    %v728 = vpop.f32.mrb[0].mxu0
    %v729 = vadd.f32 %v239, %v728
    %v730 = vpop.f32.mrb[0].mxu0
    %731 = vmatprep.mubr.f32.mxu0 0.0
    %732 = vmatmul.mubr.f32.gmra.mrb[0].mxu0 %v644
    %v733 = vpop.f32.mrb[0].mxu0
    %v734 = vadd.f32 %v245, %v733
    %v735 = vpop.f32.mrb[0].mxu0
    %736 = vmatprep.mubr.f32.mxu0 0.0
    %737 = vmatmul.mubr.f32.gmra.mrb[0].mxu0 %v647
    %v738 = vpop.f32.mrb[0].mxu0
    %v739 = vadd.f32 %v251, %v738
    %v740 = vpop.f32.mrb[0].mxu0
    %741 = vmatprep.mubr.f32.mxu0 0.0
    %742 = vmatmul.mubr.f32.gmra.mrb[0].mxu0 %v650
    %v743 = vpop.f32.mrb[0].mxu0
    %v744 = vadd.f32 %v257, %v743
    %v745 = vpop.f32.mrb[0].mxu0
    %746 = vdwg.mxu0
    %v747 = vmax.f32 %v719, 0.0
    %v748 = vmax.f32 %v724, 0.0
    %v749 = vmax.f32 %v729, 0.0
    %v750 = vmax.f32 %v734, 0.0
    %v751 = vmax.f32 %v739, 0.0
    %v752 = vmax.f32 %v744, 0.0
    %v753 = vunpack.c.l.bf16 %v104
    %v754 = vunpack.c.l.bf16 %v105
    %v755 = vunpack.c.l.bf16 %v106
    %vm756 = vcmask 392192
    %v758 = vsel %vm756, %v753, 0
    %v761 = vsel %vm756, %v754, 0
    %v764 = vsel %vm756, %v755, 0
    %766 = vmatprep.subr.mxu0 0.0
    %767 = vmatpush1.msra.mxu0 %v747
    %768 = vmatprep.subr.mxu0 0.0
    %769 = vmatpush1.msra.mxu0 %v748
    %770 = vmatprep.subr.mxu0 0.0
    %771 = vmatpush1.msra.mxu0 %v749
    %772 = vmatprep.subr.mxu0 0.0
    %773 = vmatpush1.msra.mxu0 %v750
    %774 = vmatprep.subr.mxu0 0.0
    %775 = vmatpush1.msra.mxu0 %v751
    %776 = vmatprep.subr.mxu0 0.0
    %777 = vmatpush1.msra.mxu0 %v752
    %778 = vmatprep.subr.mxu0 0.0
    %779 = vmatpush1.msra.mxu0 0.0
    %780 = vmatprep.subr.mxu0 0.0
    %781 = vmatpush1.msra.mxu0 0.0
    %782 = vmatprep.subr.mxu0 0.0
    %783 = vmatpush1.msra.mxu0 0.0
    %784 = vmatprep.subr.mxu0 0.0
    %785 = vmatpush1.msra.mxu0 0.0
    %786 = vmatprep.subr.mxu0 0.0
    %787 = vmatpush1.msra.mxu0 0.0
    %788 = vmatprep.subr.mxu0 0.0
    %789 = vmatpush1.msra.mxu0 0.0
    %790 = vmatprep.subr.mxu0 0.0
    %791 = vmatpush1.msra.mxu0 0.0
    %792 = vmatprep.subr.mxu0 0.0
    %793 = vmatpush1.msra.mxu0 0.0
    %794 = vmatprep.subr.mxu0 0.0
    %795 = vmatpush1.msra.mxu0 0.0
    %796 = vmatprep.subr.mxu0 0.0
    %797 = vmatpush1.msra.mxu0 0.0
    %798 = vmatprep.subr.mxu0 0.0
    %799 = vmatpush1.msra.mxu0 0.0
    %800 = vmatprep.subr.mxu0 0.0
    %801 = vmatpush1.msra.mxu0 0.0
    %802 = vmatprep.subr.mxu0 0.0
    %803 = vmatpush1.msra.mxu0 0.0
    %804 = vmatprep.subr.mxu0 0.0
    %805 = vmatpush1.msra.mxu0 0.0
    %806 = vmatprep.subr.mxu0 0.0
    %807 = vmatpush1.msra.mxu0 0.0
    %808 = vmatprep.subr.mxu0 0.0
    %809 = vmatpush1.msra.mxu0 0.0
    %810 = vmatprep.subr.mxu0 0.0
    %811 = vmatpush1.msra.mxu0 0.0
    %812 = vmatprep.subr.mxu0 0.0
    %813 = vmatpush1.msra.mxu0 0.0
    %814 = vmatprep.subr.mxu0 0.0
    %815 = vmatpush1.msra.mxu0 0.0
    %816 = vmatprep.subr.mxu0 0.0
    %817 = vmatpush1.msra.mxu0 0.0
    %818 = vmatprep.subr.mxu0 0.0
    %819 = vmatpush1.msra.mxu0 0.0
    %820 = vmatprep.subr.mxu0 0.0
    %821 = vmatpush1.msra.mxu0 0.0
    %822 = vmatprep.subr.mxu0 0.0
    %823 = vmatpush1.msra.mxu0 0.0
    %824 = vmatprep.subr.mxu0 0.0
    %825 = vmatpush1.msra.mxu0 0.0
    %826 = vmatprep.subr.mxu0 0.0
    %827 = vmatpush1.msra.mxu0 0.0
    %828 = vmatprep.subr.mxu0 0.0
    %829 = vmatpush1.msra.mxu0 0.0
    %830 = vmatprep.mubr.f32.mxu0 0.0
    %831 = vmatmul.mubr.f32.gmra.mrb[0].mxu0 %v758
    %v832 = vpop.f32.mrb[0].mxu0
    %v833 = vadd.f32 0.0, %v832
    %v834 = vpop.f32.mrb[0].mxu0
    %835 = vmatprep.mubr.f32.mxu0 0.0
    %836 = vmatmul.mubr.f32.gmra.mrb[0].mxu0 %v761
    %v837 = vpop.f32.mrb[0].mxu0
    %v838 = vadd.f32 0.0, %v837
    %v839 = vpop.f32.mrb[0].mxu0
    %840 = vmatprep.mubr.f32.mxu0 0.0
    %841 = vmatmul.mubr.f32.gmra.mrb[0].mxu0 %v764
    %v842 = vpop.f32.mrb[0].mxu0
    %v843 = vadd.f32 0.0, %v842
    %v844 = vpop.f32.mrb[0].mxu0
    %845 = vdwg.mxu0
    %v846 = vld [vmem:[#allocation5] sm:$0xff]
    %v847 = vld [vmem:[#allocation5 + $0x8] sm:$0xff]
    %v848 = vld [vmem:[#allocation5 + $0x10] sm:$0xff]
    %v849 = vld [vmem:[#allocation5 + $0x18] sm:$0xff]
    %v850 = vld [vmem:[#allocation5 + $0x20] sm:$0xff]
    %v851 = vld [vmem:[#allocation5 + $0x28] sm:$0xff]
    %v852 = vld [vmem:[#allocation5 + $0x30] sm:$0xff]
    %v853 = vld [vmem:[#allocation5 + $0x38] sm:$0xff]
    %v854 = vld [vmem:[#allocation5 + $0x40] sm:$0xff]
    %v855 = vld [vmem:[#allocation5 + $0x48] sm:$0xff]
    %v856 = vld [vmem:[#allocation5 + $0x50] sm:$0xff]
    %v857 = vld [vmem:[#allocation5 + $0x58] sm:$0xff]
    %v858 = vld [vmem:[#allocation5 + $0x60] sm:$0xff]
    %v859 = vld [vmem:[#allocation5 + $0x68] sm:$0xff]
    %v860 = vld [vmem:[#allocation5 + $0x70] sm:$0xff]
    %v861 = vld [vmem:[#allocation5 + $0x78] sm:$0xff]
    %v862 = vadd.f32 %v625, %v833
    %v863 = vadd.f32 %v626, %v838
    %v864 = vadd.f32 %v627, %v843
    %v865 = vld [vmem:[%s12 + $0x1] sm:$0x1]
    %v866 = vlaneseq
    %v867 = vshrl.u32 %v866, 7
    %v868 = vsub.s32 0, %v867
    %v869 = vrot.slane %v865, %v868
    %870 = vmatprep.subr.mxu0 0.0
    %871 = vmatpush1.msra.mxu0 %v846
    %872 = vmatprep.subr.mxu0 0.0
    %873 = vmatpush1.msra.mxu0 %v847
    %874 = vmatprep.subr.mxu0 0.0
    %875 = vmatpush1.msra.mxu0 %v848
    %876 = vmatprep.subr.mxu0 0.0
    %877 = vmatpush1.msra.mxu0 %v849
    %878 = vmatprep.subr.mxu0 0.0
    %879 = vmatpush1.msra.mxu0 %v850
    %880 = vmatprep.subr.mxu0 0.0
    %881 = vmatpush1.msra.mxu0 %v851
    %882 = vmatprep.subr.mxu0 0.0
    %883 = vmatpush1.msra.mxu0 %v852
    %884 = vmatprep.subr.mxu0 0.0
    %885 = vmatpush1.msra.mxu0 %v853
    %886 = vmatprep.subr.mxu0 0.0
    %887 = vmatpush1.msra.mxu0 %v854
    %888 = vmatprep.subr.mxu0 0.0
    %889 = vmatpush1.msra.mxu0 %v855
    %890 = vmatprep.subr.mxu0 0.0
    %891 = vmatpush1.msra.mxu0 %v856
    %892 = vmatprep.subr.mxu0 0.0
    %893 = vmatpush1.msra.mxu0 %v857
    %894 = vmatprep.subr.mxu0 0.0
    %895 = vmatpush1.msra.mxu0 %v858
    %896 = vmatprep.subr.mxu0 0.0
    %897 = vmatpush1.msra.mxu0 %v859
    %898 = vmatprep.subr.mxu0 0.0
    %899 = vmatpush1.msra.mxu0 %v860
    %900 = vmatprep.subr.mxu0 0.0
    %901 = vmatpush1.msra.mxu0 %v861
    %902 = vmatprep.subr.mxu0 0.0
    %903 = vmatpush1.msra.mxu0 0.0
    %904 = vmatprep.subr.mxu0 0.0
    %905 = vmatpush1.msra.mxu0 0.0
    %906 = vmatprep.subr.mxu0 0.0
    %907 = vmatpush1.msra.mxu0 0.0
    %908 = vmatprep.subr.mxu0 0.0
    %909 = vmatpush1.msra.mxu0 0.0
    %910 = vmatprep.subr.mxu0 0.0
    %911 = vmatpush1.msra.mxu0 0.0
    %912 = vmatprep.subr.mxu0 0.0
    %913 = vmatpush1.msra.mxu0 0.0
    %914 = vmatprep.subr.mxu0 0.0
    %915 = vmatpush1.msra.mxu0 0.0
    %916 = vmatprep.subr.mxu0 0.0
    %917 = vmatpush1.msra.mxu0 0.0
    %918 = vmatprep.subr.mxu0 0.0
    %919 = vmatpush1.msra.mxu0 0.0
    %920 = vmatprep.subr.mxu0 0.0
    %921 = vmatpush1.msra.mxu0 0.0
    %922 = vmatprep.subr.mxu0 0.0
    %923 = vmatpush1.msra.mxu0 0.0
    %924 = vmatprep.subr.mxu0 0.0
    %925 = vmatpush1.msra.mxu0 0.0
    %926 = vmatprep.subr.mxu0 0.0
    %927 = vmatpush1.msra.mxu0 0.0
    %928 = vmatprep.subr.mxu0 0.0
    %929 = vmatpush1.msra.mxu0 0.0
    %930 = vmatprep.subr.mxu0 0.0
    %931 = vmatpush1.msra.mxu0 0.0
    %932 = vmatprep.subr.mxu0 0.0
    %933 = vmatpush1.msra.mxu0 0.0
    %934 = vmatprep.mubr.f32.mxu0 0.0
    %935 = vmatmul.mubr.f32.gmra.mrb[0].mxu0 %v862
    %v936 = vpop.f32.mrb[0].mxu0
    %v937 = vadd.f32 %v869, %v936
    %v938 = vpop.f32.mrb[0].mxu0
    %939 = vmatprep.mubr.f32.mxu0 0.0
    %940 = vmatmul.mubr.f32.gmra.mrb[0].mxu0 %v863
    %v941 = vpop.f32.mrb[0].mxu0
    %v942 = vadd.f32 %v869, %v941
    %v943 = vpop.f32.mrb[0].mxu0
    %944 = vmatprep.mubr.f32.mxu0 0.0
    %945 = vmatmul.mubr.f32.gmra.mrb[0].mxu0 %v864
    %v946 = vpop.f32.mrb[0].mxu0
    %v947 = vadd.f32 %v869, %v946
    %v948 = vpop.f32.mrb[0].mxu0
    %949 = vdwg.mxu0
    %v950 = vld [vmem:[%s12 + $0x2] sm:$0x1]
    %v951 = vld [vmem:[%s12 + $0x3] sm:$0x1]
    %v952 = vadd.f32 %v937, %v942
    %v953 = vadd.f32 %v952, %v947
    %v954 = vrot.slane %v953, 4
    %v955 = vadd.f32 %v953, %v954
    %v956 = vrot.slane %v955, 2
    %v957 = vadd.f32 %v955, %v956
    %v958 = vrot.slane %v957, 1
    %v959 = vadd.f32 %v957, %v958
    %v960 = vrcp.pop 24.0
    %v961 = vmul.f32 %v959, %v960
    %v962 = vsub.f32 %v937, %v961
    %v963 = vsub.f32 %v942, %v961
    %v964 = vsub.f32 %v947, %v961
    %v965 = vmul.f32 %v962, %v962
    %v966 = vmul.f32 %v963, %v963
    %v967 = vmul.f32 %v964, %v964
    %v968 = vadd.f32 %v965, %v966
    %v969 = vadd.f32 %v968, %v967
    %v970 = vrot.slane %v969, 4
    %v971 = vadd.f32 %v969, %v970
    %v972 = vrot.slane %v971, 2
    %v973 = vadd.f32 %v971, %v972
    %v974 = vrot.slane %v973, 1
    %v975 = vadd.f32 %v973, %v974
    %v976 = vmul.f32 %v975, %v960
    %v977 = vadd.f32 %v976, 1e-05
    %v978 = vrsqrt.pop %v977
    %v979 = vmul.f32 %v962, %v978
    %v980 = vmul.f32 %v963, %v978
    %v981 = vmul.f32 %v964, %v978
    %v982 = vlaneseq
    %v983 = vshrl.u32 %v982, 7
    %v984 = vsub.s32 0, %v983
    %v985 = vrot.slane %v950, %v984
    %v986 = vmul.f32 %v979, %v985
    %v987 = vmul.f32 %v980, %v985
    %v988 = vmul.f32 %v981, %v985
    %v989 = vlaneseq
    %v990 = vshrl.u32 %v989, 7
    %v991 = vsub.s32 0, %v990
    %v992 = vrot.slane %v951, %v991
    %v993 = vadd.f32 %v986, %v992
    %v994 = vadd.f32 %v987, %v992
    %v995 = vadd.f32 %v988, %v992
    %v996 = vmax.f32 %v993, 0.0
    %v997 = vmax.f32 %v994, 0.0
    %v998 = vmax.f32 %v995, 0.0
    %v999 = vld [vmem:[#allocation7] sm:$0xff]
    %v1000 = vld [vmem:[#allocation7 + $0x8] sm:$0xff]
    %v1001 = vld [vmem:[#allocation7 + $0x10] sm:$0xff]
    %v1002 = vld [vmem:[#allocation7 + $0x18] sm:$0xff]
    %v1003 = vld [vmem:[#allocation7 + $0x20] sm:$0xff]
    %v1004 = vld [vmem:[#allocation7 + $0x28] sm:$0xff]
    %v1005 = vld [vmem:[#allocation7 + $0x30] sm:$0xff]
    %v1006 = vld [vmem:[#allocation7 + $0x38] sm:$0xff]
    %v1007 = vld [vmem:[#allocation7 + $0x40] sm:$0xff]
    %v1008 = vld [vmem:[#allocation7 + $0x48] sm:$0xff]
    %v1009 = vld [vmem:[#allocation7 + $0x50] sm:$0xff]
    %v1010 = vld [vmem:[#allocation7 + $0x58] sm:$0xff]
    %v1011 = vld [vmem:[#allocation7 + $0x60] sm:$0xff]
    %v1012 = vld [vmem:[#allocation7 + $0x68] sm:$0xff]
    %v1013 = vld [vmem:[#allocation7 + $0x70] sm:$0xff]
    %v1014 = vld [vmem:[#allocation7 + $0x78] sm:$0xff]
    %v1015 = vld [vmem:[%s12 + $0x4] sm:$0x1]
    %v1016 = vlaneseq
    %v1017 = vshrl.u32 %v1016, 7
    %v1018 = vsub.s32 0, %v1017
    %v1019 = vrot.slane %v1015, %v1018
    %1020 = vmatprep.subr.mxu0 0.0
    %1021 = vmatpush1.msra.mxu0 %v999
    %1022 = vmatprep.subr.mxu0 0.0
    %1023 = vmatpush1.msra.mxu0 %v1000
    %1024 = vmatprep.subr.mxu0 0.0
    %1025 = vmatpush1.msra.mxu0 %v1001
    %1026 = vmatprep.subr.mxu0 0.0
    %1027 = vmatpush1.msra.mxu0 %v1002
    %1028 = vmatprep.subr.mxu0 0.0
    %1029 = vmatpush1.msra.mxu0 %v1003
    %1030 = vmatprep.subr.mxu0 0.0
    %1031 = vmatpush1.msra.mxu0 %v1004
    %1032 = vmatprep.subr.mxu0 0.0
    %1033 = vmatpush1.msra.mxu0 %v1005
    %1034 = vmatprep.subr.mxu0 0.0
    %1035 = vmatpush1.msra.mxu0 %v1006
    %1036 = vmatprep.subr.mxu0 0.0
    %1037 = vmatpush1.msra.mxu0 %v1007
    %1038 = vmatprep.subr.mxu0 0.0
    %1039 = vmatpush1.msra.mxu0 %v1008
    %1040 = vmatprep.subr.mxu0 0.0
    %1041 = vmatpush1.msra.mxu0 %v1009
    %1042 = vmatprep.subr.mxu0 0.0
    %1043 = vmatpush1.msra.mxu0 %v1010
    %1044 = vmatprep.subr.mxu0 0.0
    %1045 = vmatpush1.msra.mxu0 %v1011
    %1046 = vmatprep.subr.mxu0 0.0
    %1047 = vmatpush1.msra.mxu0 %v1012
    %1048 = vmatprep.subr.mxu0 0.0
    %1049 = vmatpush1.msra.mxu0 %v1013
    %1050 = vmatprep.subr.mxu0 0.0
    %1051 = vmatpush1.msra.mxu0 %v1014
    %1052 = vmatprep.subr.mxu0 0.0
    %1053 = vmatpush1.msra.mxu0 0.0
    %1054 = vmatprep.subr.mxu0 0.0
    %1055 = vmatpush1.msra.mxu0 0.0
    %1056 = vmatprep.subr.mxu0 0.0
    %1057 = vmatpush1.msra.mxu0 0.0
    %1058 = vmatprep.subr.mxu0 0.0
    %1059 = vmatpush1.msra.mxu0 0.0
    %1060 = vmatprep.subr.mxu0 0.0
    %1061 = vmatpush1.msra.mxu0 0.0
    %1062 = vmatprep.subr.mxu0 0.0
    %1063 = vmatpush1.msra.mxu0 0.0
    %1064 = vmatprep.subr.mxu0 0.0
    %1065 = vmatpush1.msra.mxu0 0.0
    %1066 = vmatprep.subr.mxu0 0.0
    %1067 = vmatpush1.msra.mxu0 0.0
    %1068 = vmatprep.subr.mxu0 0.0
    %1069 = vmatpush1.msra.mxu0 0.0
    %1070 = vmatprep.subr.mxu0 0.0
    %1071 = vmatpush1.msra.mxu0 0.0
    %1072 = vmatprep.subr.mxu0 0.0
    %1073 = vmatpush1.msra.mxu0 0.0
    %1074 = vmatprep.subr.mxu0 0.0
    %1075 = vmatpush1.msra.mxu0 0.0
    %1076 = vmatprep.subr.mxu0 0.0
    %1077 = vmatpush1.msra.mxu0 0.0
    %1078 = vmatprep.subr.mxu0 0.0
    %1079 = vmatpush1.msra.mxu0 0.0
    %1080 = vmatprep.subr.mxu0 0.0
    %1081 = vmatpush1.msra.mxu0 0.0
    %1082 = vmatprep.subr.mxu0 0.0
    %1083 = vmatpush1.msra.mxu0 0.0
    %1084 = vmatprep.mubr.f32.mxu0 0.0
    %1085 = vmatmul.mubr.f32.gmra.mrb[0].mxu0 %v996
    %v1086 = vpop.f32.mrb[0].mxu0
    %v1087 = vadd.f32 %v1019, %v1086
    %v1088 = vpop.f32.mrb[0].mxu0
    %1089 = vmatprep.mubr.f32.mxu0 0.0
    %1090 = vmatmul.mubr.f32.gmra.mrb[0].mxu0 %v997
    %v1091 = vpop.f32.mrb[0].mxu0
    %v1092 = vadd.f32 %v1019, %v1091
    %v1093 = vpop.f32.mrb[0].mxu0
    %1094 = vmatprep.mubr.f32.mxu0 0.0
    %1095 = vmatmul.mubr.f32.gmra.mrb[0].mxu0 %v998
    %v1096 = vpop.f32.mrb[0].mxu0
    %v1097 = vadd.f32 %v1019, %v1096
    %v1098 = vpop.f32.mrb[0].mxu0
    %1099 = vdwg.mxu0
    %v1100 = vld [vmem:[%s12 + $0x5] sm:$0x1]
    %v1101 = vld [vmem:[%s12 + $0x6] sm:$0x1]
    %v1102 = vadd.f32 %v1087, %v1092
    %v1103 = vadd.f32 %v1102, %v1097
    %v1104 = vrot.slane %v1103, 4
    %v1105 = vadd.f32 %v1103, %v1104
    %v1106 = vrot.slane %v1105, 2
    %v1107 = vadd.f32 %v1105, %v1106
    %v1108 = vrot.slane %v1107, 1
    %v1109 = vadd.f32 %v1107, %v1108
    %v1110 = vmul.f32 %v1109, %v960
    %v1111 = vsub.f32 %v1087, %v1110
    %v1112 = vsub.f32 %v1092, %v1110
    %v1113 = vsub.f32 %v1097, %v1110
    %v1114 = vmul.f32 %v1111, %v1111
    %v1115 = vmul.f32 %v1112, %v1112
    %v1116 = vmul.f32 %v1113, %v1113
    %v1117 = vadd.f32 %v1114, %v1115
    %v1118 = vadd.f32 %v1117, %v1116
    %v1119 = vrot.slane %v1118, 4
    %v1120 = vadd.f32 %v1118, %v1119
    %v1121 = vrot.slane %v1120, 2
    %v1122 = vadd.f32 %v1120, %v1121
    %v1123 = vrot.slane %v1122, 1
    %v1124 = vadd.f32 %v1122, %v1123
    %v1125 = vmul.f32 %v1124, %v960
    %v1126 = vadd.f32 %v1125, 1e-05
    %v1127 = vrsqrt.pop %v1126
    %v1128 = vmul.f32 %v1111, %v1127
    %v1129 = vmul.f32 %v1112, %v1127
    %v1130 = vmul.f32 %v1113, %v1127
    %v1131 = vlaneseq
    %v1132 = vshrl.u32 %v1131, 7
    %v1133 = vsub.s32 0, %v1132
    %v1134 = vrot.slane %v1100, %v1133
    %v1135 = vmul.f32 %v1128, %v1134
    %v1136 = vmul.f32 %v1129, %v1134
    %v1137 = vmul.f32 %v1130, %v1134
    %v1138 = vlaneseq
    %v1139 = vshrl.u32 %v1138, 7
    %v1140 = vsub.s32 0, %v1139
    %v1141 = vrot.slane %v1101, %v1140
    %v1142 = vadd.f32 %v1135, %v1141
    %v1143 = vadd.f32 %v1136, %v1141
    %v1144 = vadd.f32 %v1137, %v1141
    %v1145 = vmax.f32 %v1142, 0.0
    %v1146 = vmax.f32 %v1143, 0.0
    %v1147 = vmax.f32 %v1144, 0.0
    %v1148 = vld [vmem:[#allocation5 + $0x180] sm:$0xff]
    %v1149 = vld [vmem:[#allocation5 + $0x188] sm:$0xff]
    %v1150 = vld [vmem:[#allocation5 + $0x190] sm:$0xff]
    %v1151 = vld [vmem:[#allocation5 + $0x198] sm:$0xff]
    %v1152 = vld [vmem:[#allocation5 + $0x1a0] sm:$0xff]
    %v1153 = vld [vmem:[#allocation5 + $0x1a8] sm:$0xff]
    %v1154 = vld [vmem:[#allocation5 + $0x1b0] sm:$0xff]
    %v1155 = vld [vmem:[#allocation5 + $0x1b8] sm:$0xff]
    %v1156 = vld [vmem:[#allocation5 + $0x1c0] sm:$0xff]
    %v1157 = vld [vmem:[#allocation5 + $0x1c8] sm:$0xff]
    %v1158 = vld [vmem:[#allocation5 + $0x1d0] sm:$0xff]
    %v1159 = vld [vmem:[#allocation5 + $0x1d8] sm:$0xff]
    %v1160 = vld [vmem:[#allocation5 + $0x1e0] sm:$0xff]
    %v1161 = vld [vmem:[#allocation5 + $0x1e8] sm:$0xff]
    %v1162 = vld [vmem:[#allocation5 + $0x1f0] sm:$0xff]
    %v1163 = vld [vmem:[#allocation5 + $0x1f8] sm:$0xff]
    %v1164 = vld [vmem:[%s12 + $0x13] sm:$0x1]
    %v1165 = vlaneseq
    %v1166 = vshrl.u32 %v1165, 7
    %v1167 = vsub.s32 0, %v1166
    %v1168 = vrot.slane %v1164, %v1167
    %1169 = vmatprep.subr.mxu0 0.0
    %1170 = vmatpush1.msra.mxu0 %v1148
    %1171 = vmatprep.subr.mxu0 0.0
    %1172 = vmatpush1.msra.mxu0 %v1149
    %1173 = vmatprep.subr.mxu0 0.0
    %1174 = vmatpush1.msra.mxu0 %v1150
    %1175 = vmatprep.subr.mxu0 0.0
    %1176 = vmatpush1.msra.mxu0 %v1151
    %1177 = vmatprep.subr.mxu0 0.0
    %1178 = vmatpush1.msra.mxu0 %v1152
    %1179 = vmatprep.subr.mxu0 0.0
    %1180 = vmatpush1.msra.mxu0 %v1153
    %1181 = vmatprep.subr.mxu0 0.0
    %1182 = vmatpush1.msra.mxu0 %v1154
    %1183 = vmatprep.subr.mxu0 0.0
    %1184 = vmatpush1.msra.mxu0 %v1155
    %1185 = vmatprep.subr.mxu0 0.0
    %1186 = vmatpush1.msra.mxu0 %v1156
    %1187 = vmatprep.subr.mxu0 0.0
    %1188 = vmatpush1.msra.mxu0 %v1157
    %1189 = vmatprep.subr.mxu0 0.0
    %1190 = vmatpush1.msra.mxu0 %v1158
    %1191 = vmatprep.subr.mxu0 0.0
    %1192 = vmatpush1.msra.mxu0 %v1159
    %1193 = vmatprep.subr.mxu0 0.0
    %1194 = vmatpush1.msra.mxu0 %v1160
    %1195 = vmatprep.subr.mxu0 0.0
    %1196 = vmatpush1.msra.mxu0 %v1161
    %1197 = vmatprep.subr.mxu0 0.0
    %1198 = vmatpush1.msra.mxu0 %v1162
    %1199 = vmatprep.subr.mxu0 0.0
    %1200 = vmatpush1.msra.mxu0 %v1163
    %1201 = vmatprep.subr.mxu0 0.0
    %1202 = vmatpush1.msra.mxu0 0.0
    %1203 = vmatprep.subr.mxu0 0.0
    %1204 = vmatpush1.msra.mxu0 0.0
    %1205 = vmatprep.subr.mxu0 0.0
    %1206 = vmatpush1.msra.mxu0 0.0
    %1207 = vmatprep.subr.mxu0 0.0
    %1208 = vmatpush1.msra.mxu0 0.0
    %1209 = vmatprep.subr.mxu0 0.0
    %1210 = vmatpush1.msra.mxu0 0.0
    %1211 = vmatprep.subr.mxu0 0.0
    %1212 = vmatpush1.msra.mxu0 0.0
    %1213 = vmatprep.subr.mxu0 0.0
    %1214 = vmatpush1.msra.mxu0 0.0
    %1215 = vmatprep.subr.mxu0 0.0
    %1216 = vmatpush1.msra.mxu0 0.0
    %1217 = vmatprep.subr.mxu0 0.0
    %1218 = vmatpush1.msra.mxu0 0.0
    %1219 = vmatprep.subr.mxu0 0.0
    %1220 = vmatpush1.msra.mxu0 0.0
    %1221 = vmatprep.subr.mxu0 0.0
    %1222 = vmatpush1.msra.mxu0 0.0
    %1223 = vmatprep.subr.mxu0 0.0
    %1224 = vmatpush1.msra.mxu0 0.0
    %1225 = vmatprep.subr.mxu0 0.0
    %1226 = vmatpush1.msra.mxu0 0.0
    %1227 = vmatprep.subr.mxu0 0.0
    %1228 = vmatpush1.msra.mxu0 0.0
    %1229 = vmatprep.subr.mxu0 0.0
    %1230 = vmatpush1.msra.mxu0 0.0
    %1231 = vmatprep.subr.mxu0 0.0
    %1232 = vmatpush1.msra.mxu0 0.0
    %1233 = vmatprep.mubr.f32.mxu0 0.0
    %1234 = vmatmul.mubr.f32.gmra.mrb[0].mxu0 %v528
    %v1235 = vpop.f32.mrb[0].mxu0
    %v1236 = vadd.f32 %v1168, %v1235
    %v1237 = vpop.f32.mrb[0].mxu0
    %1238 = vdwg.mxu0
    %v1239 = vld [vmem:[%s12 + $0x14] sm:$0x3f]
    %v1240 = vld [vmem:[%s12 + $0x1a] sm:$0x3f]
    %v1242 = vsel %vm531, %v112, 0
    %v1245 = vsel %vm541, %v1236, 0
    %1247 = vmatprep.subr.mxu0 0.0
    %1248 = vmatpush1.msra.mxu0 %v1245
    %1249 = vmatprep.subr.mxu0 0.0
    %1250 = vmatpush1.msra.mxu0 0.0
    %1251 = vmatprep.subr.mxu0 0.0
    %1252 = vmatpush1.msra.mxu0 0.0
    %1253 = vmatprep.subr.mxu0 0.0
    %1254 = vmatpush1.msra.mxu0 0.0
    %1255 = vmatprep.subr.mxu0 0.0
    %1256 = vmatpush1.msra.mxu0 0.0
    %1257 = vmatprep.subr.mxu0 0.0
    %1258 = vmatpush1.msra.mxu0 0.0
    %1259 = vmatprep.subr.mxu0 0.0
    %1260 = vmatpush1.msra.mxu0 0.0
    %1261 = vmatprep.subr.mxu0 0.0
    %1262 = vmatpush1.msra.mxu0 0.0
    %1263 = vmatprep.subr.mxu0 0.0
    %1264 = vmatpush1.msra.mxu0 0.0
    %1265 = vmatprep.subr.mxu0 0.0
    %1266 = vmatpush1.msra.mxu0 0.0
    %1267 = vmatprep.subr.mxu0 0.0
    %1268 = vmatpush1.msra.mxu0 0.0
    %1269 = vmatprep.subr.mxu0 0.0
    %1270 = vmatpush1.msra.mxu0 0.0
    %1271 = vmatprep.subr.mxu0 0.0
    %1272 = vmatpush1.msra.mxu0 0.0
    %1273 = vmatprep.subr.mxu0 0.0
    %1274 = vmatpush1.msra.mxu0 0.0
    %1275 = vmatprep.subr.mxu0 0.0
    %1276 = vmatpush1.msra.mxu0 0.0
    %1277 = vmatprep.subr.mxu0 0.0
    %1278 = vmatpush1.msra.mxu0 0.0
    %1279 = vmatprep.subr.mxu0 0.0
    %1280 = vmatpush1.msra.mxu0 0.0
    %1281 = vmatprep.subr.mxu0 0.0
    %1282 = vmatpush1.msra.mxu0 0.0
    %1283 = vmatprep.subr.mxu0 0.0
    %1284 = vmatpush1.msra.mxu0 0.0
    %1285 = vmatprep.subr.mxu0 0.0
    %1286 = vmatpush1.msra.mxu0 0.0
    %1287 = vmatprep.subr.mxu0 0.0
    %1288 = vmatpush1.msra.mxu0 0.0
    %1289 = vmatprep.subr.mxu0 0.0
    %1290 = vmatpush1.msra.mxu0 0.0
    %1291 = vmatprep.subr.mxu0 0.0
    %1292 = vmatpush1.msra.mxu0 0.0
    %1293 = vmatprep.subr.mxu0 0.0
    %1294 = vmatpush1.msra.mxu0 0.0
    %1295 = vmatprep.subr.mxu0 0.0
    %1296 = vmatpush1.msra.mxu0 0.0
    %1297 = vmatprep.subr.mxu0 0.0
    %1298 = vmatpush1.msra.mxu0 0.0
    %1299 = vmatprep.subr.mxu0 0.0
    %1300 = vmatpush1.msra.mxu0 0.0
    %1301 = vmatprep.subr.mxu0 0.0
    %1302 = vmatpush1.msra.mxu0 0.0
    %1303 = vmatprep.subr.mxu0 0.0
    %1304 = vmatpush1.msra.mxu0 0.0
    %1305 = vmatprep.subr.mxu0 0.0
    %1306 = vmatpush1.msra.mxu0 0.0
    %1307 = vmatprep.subr.mxu0 0.0
    %1308 = vmatpush1.msra.mxu0 0.0
    %1309 = vmatprep.subr.mxu0 0.0
    %1310 = vmatpush1.msra.mxu0 0.0
    %1311 = vmatprep.mubr.f32.mxu0 0.0
    %1312 = vmatmul.mubr.f32.gmra.mrb[0].mxu0 %v1242
    %v1313 = vpop.f32.mrb[0].mxu0
    %v1314 = vadd.f32 0.0, %v1313
    %v1315 = vpop.f32.mrb[0].mxu0
    %1316 = vdwg.mxu0
    %v1317 = vsub.f32 %v1236, %v1314
    %v1318 = vmul.f32 %v1317, %v1317
    %v1320 = vsel %vm541, %v1318, 0
    %1322 = vmatprep.subr.mxu0 0.0
    %1323 = vmatpush1.msra.mxu0 %v1320
    %1324 = vmatprep.subr.mxu0 0.0
    %1325 = vmatpush1.msra.mxu0 0.0
    %1326 = vmatprep.subr.mxu0 0.0
    %1327 = vmatpush1.msra.mxu0 0.0
    %1328 = vmatprep.subr.mxu0 0.0
    %1329 = vmatpush1.msra.mxu0 0.0
    %1330 = vmatprep.subr.mxu0 0.0
    %1331 = vmatpush1.msra.mxu0 0.0
    %1332 = vmatprep.subr.mxu0 0.0
    %1333 = vmatpush1.msra.mxu0 0.0
    %1334 = vmatprep.subr.mxu0 0.0
    %1335 = vmatpush1.msra.mxu0 0.0
    %1336 = vmatprep.subr.mxu0 0.0
    %1337 = vmatpush1.msra.mxu0 0.0
    %1338 = vmatprep.subr.mxu0 0.0
    %1339 = vmatpush1.msra.mxu0 0.0
    %1340 = vmatprep.subr.mxu0 0.0
    %1341 = vmatpush1.msra.mxu0 0.0
    %1342 = vmatprep.subr.mxu0 0.0
    %1343 = vmatpush1.msra.mxu0 0.0
    %1344 = vmatprep.subr.mxu0 0.0
    %1345 = vmatpush1.msra.mxu0 0.0
    %1346 = vmatprep.subr.mxu0 0.0
    %1347 = vmatpush1.msra.mxu0 0.0
    %1348 = vmatprep.subr.mxu0 0.0
    %1349 = vmatpush1.msra.mxu0 0.0
    %1350 = vmatprep.subr.mxu0 0.0
    %1351 = vmatpush1.msra.mxu0 0.0
    %1352 = vmatprep.subr.mxu0 0.0
    %1353 = vmatpush1.msra.mxu0 0.0
    %1354 = vmatprep.subr.mxu0 0.0
    %1355 = vmatpush1.msra.mxu0 0.0
    %1356 = vmatprep.subr.mxu0 0.0
    %1357 = vmatpush1.msra.mxu0 0.0
    %1358 = vmatprep.subr.mxu0 0.0
    %1359 = vmatpush1.msra.mxu0 0.0
    %1360 = vmatprep.subr.mxu0 0.0
    %1361 = vmatpush1.msra.mxu0 0.0
    %1362 = vmatprep.subr.mxu0 0.0
    %1363 = vmatpush1.msra.mxu0 0.0
    %1364 = vmatprep.subr.mxu0 0.0
    %1365 = vmatpush1.msra.mxu0 0.0
    %1366 = vmatprep.subr.mxu0 0.0
    %1367 = vmatpush1.msra.mxu0 0.0
    %1368 = vmatprep.subr.mxu0 0.0
    %1369 = vmatpush1.msra.mxu0 0.0
    %1370 = vmatprep.subr.mxu0 0.0
    %1371 = vmatpush1.msra.mxu0 0.0
    %1372 = vmatprep.subr.mxu0 0.0
    %1373 = vmatpush1.msra.mxu0 0.0
    %1374 = vmatprep.subr.mxu0 0.0
    %1375 = vmatpush1.msra.mxu0 0.0
    %1376 = vmatprep.subr.mxu0 0.0
    %1377 = vmatpush1.msra.mxu0 0.0
    %1378 = vmatprep.subr.mxu0 0.0
    %1379 = vmatpush1.msra.mxu0 0.0
    %1380 = vmatprep.subr.mxu0 0.0
    %1381 = vmatpush1.msra.mxu0 0.0
    %1382 = vmatprep.subr.mxu0 0.0
    %1383 = vmatpush1.msra.mxu0 0.0
    %1384 = vmatprep.subr.mxu0 0.0
    %1385 = vmatpush1.msra.mxu0 0.0
    %1386 = vmatprep.mubr.f32.mxu0 0.0
    %1387 = vmatmul.mubr.f32.gmra.mrb[0].mxu0 %v1242
    %v1388 = vpop.f32.mrb[0].mxu0
    %v1389 = vadd.f32 1e-05, %v1388
    %v1390 = vpop.f32.mrb[0].mxu0
    %1391 = vdwg.mxu0
    %v1392 = vrsqrt.pop %v1389
    %v1393 = vmul.f32 %v1317, %v1392
    %v1394 = vmul.f32 %v1393, %v1239
    %v1395 = vadd.f32 %v1394, %v1240
    %v1396 = vmax.f32 %v1395, 0.0
    %v1397 = vld [vmem:[#allocation7 + $0x180] sm:$0xff]
    %v1398 = vld [vmem:[#allocation7 + $0x188] sm:$0xff]
    %v1399 = vld [vmem:[#allocation7 + $0x190] sm:$0xff]
    %v1400 = vld [vmem:[#allocation7 + $0x198] sm:$0xff]
    %v1401 = vld [vmem:[#allocation7 + $0x1a0] sm:$0xff]
    %v1402 = vld [vmem:[#allocation7 + $0x1a8] sm:$0xff]
    %v1403 = vld [vmem:[#allocation7 + $0x1b0] sm:$0xff]
    %v1404 = vld [vmem:[#allocation7 + $0x1b8] sm:$0xff]
    %v1405 = vld [vmem:[#allocation7 + $0x1c0] sm:$0xff]
    %v1406 = vld [vmem:[#allocation7 + $0x1c8] sm:$0xff]
    %v1407 = vld [vmem:[#allocation7 + $0x1d0] sm:$0xff]
    %v1408 = vld [vmem:[#allocation7 + $0x1d8] sm:$0xff]
    %v1409 = vld [vmem:[#allocation7 + $0x1e0] sm:$0xff]
    %v1410 = vld [vmem:[#allocation7 + $0x1e8] sm:$0xff]
    %v1411 = vld [vmem:[#allocation7 + $0x1f0] sm:$0xff]
    %v1412 = vld [vmem:[#allocation7 + $0x1f8] sm:$0xff]
    %v1413 = vld [vmem:[%s12 + $0x20] sm:$0x1]
    %v1414 = vlaneseq
    %v1415 = vshrl.u32 %v1414, 7
    %v1416 = vsub.s32 0, %v1415
    %v1417 = vrot.slane %v1413, %v1416
    %1418 = vmatprep.subr.mxu0 0.0
    %1419 = vmatpush1.msra.mxu0 %v1397
    %1420 = vmatprep.subr.mxu0 0.0
    %1421 = vmatpush1.msra.mxu0 %v1398
    %1422 = vmatprep.subr.mxu0 0.0
    %1423 = vmatpush1.msra.mxu0 %v1399
    %1424 = vmatprep.subr.mxu0 0.0
    %1425 = vmatpush1.msra.mxu0 %v1400
    %1426 = vmatprep.subr.mxu0 0.0
    %1427 = vmatpush1.msra.mxu0 %v1401
    %1428 = vmatprep.subr.mxu0 0.0
    %1429 = vmatpush1.msra.mxu0 %v1402
    %1430 = vmatprep.subr.mxu0 0.0
    %1431 = vmatpush1.msra.mxu0 %v1403
    %1432 = vmatprep.subr.mxu0 0.0
    %1433 = vmatpush1.msra.mxu0 %v1404
    %1434 = vmatprep.subr.mxu0 0.0
    %1435 = vmatpush1.msra.mxu0 %v1405
    %1436 = vmatprep.subr.mxu0 0.0
    %1437 = vmatpush1.msra.mxu0 %v1406
    %1438 = vmatprep.subr.mxu0 0.0
    %1439 = vmatpush1.msra.mxu0 %v1407
    %1440 = vmatprep.subr.mxu0 0.0
    %1441 = vmatpush1.msra.mxu0 %v1408
    %1442 = vmatprep.subr.mxu0 0.0
    %1443 = vmatpush1.msra.mxu0 %v1409
    %1444 = vmatprep.subr.mxu0 0.0
    %1445 = vmatpush1.msra.mxu0 %v1410
    %1446 = vmatprep.subr.mxu0 0.0
    %1447 = vmatpush1.msra.mxu0 %v1411
    %1448 = vmatprep.subr.mxu0 0.0
    %1449 = vmatpush1.msra.mxu0 %v1412
    %1450 = vmatprep.subr.mxu0 0.0
    %1451 = vmatpush1.msra.mxu0 0.0
    %1452 = vmatprep.subr.mxu0 0.0
    %1453 = vmatpush1.msra.mxu0 0.0
    %1454 = vmatprep.subr.mxu0 0.0
    %1455 = vmatpush1.msra.mxu0 0.0
    %1456 = vmatprep.subr.mxu0 0.0
    %1457 = vmatpush1.msra.mxu0 0.0
    %1458 = vmatprep.subr.mxu0 0.0
    %1459 = vmatpush1.msra.mxu0 0.0
    %1460 = vmatprep.subr.mxu0 0.0
    %1461 = vmatpush1.msra.mxu0 0.0
    %1462 = vmatprep.subr.mxu0 0.0
    %1463 = vmatpush1.msra.mxu0 0.0
    %1464 = vmatprep.subr.mxu0 0.0
    %1465 = vmatpush1.msra.mxu0 0.0
    %1466 = vmatprep.subr.mxu0 0.0
    %1467 = vmatpush1.msra.mxu0 0.0
    %1468 = vmatprep.subr.mxu0 0.0
    %1469 = vmatpush1.msra.mxu0 0.0
    %1470 = vmatprep.subr.mxu0 0.0
    %1471 = vmatpush1.msra.mxu0 0.0
    %1472 = vmatprep.subr.mxu0 0.0
    %1473 = vmatpush1.msra.mxu0 0.0
    %1474 = vmatprep.subr.mxu0 0.0
    %1475 = vmatpush1.msra.mxu0 0.0
    %1476 = vmatprep.subr.mxu0 0.0
    %1477 = vmatpush1.msra.mxu0 0.0
    %1478 = vmatprep.subr.mxu0 0.0
    %1479 = vmatpush1.msra.mxu0 0.0
    %1480 = vmatprep.subr.mxu0 0.0
    %1481 = vmatpush1.msra.mxu0 0.0
    %1482 = vmatprep.mubr.f32.mxu0 0.0
    %1483 = vmatmul.mubr.f32.gmra.mrb[0].mxu0 %v1396
    %v1484 = vpop.f32.mrb[0].mxu0
    %v1485 = vadd.f32 %v1417, %v1484
    %v1486 = vpop.f32.mrb[0].mxu0
    %1487 = vdwg.mxu0
    %v1488 = vld [vmem:[%s12 + $0x21] sm:$0x3f]
    %v1489 = vld [vmem:[%s12 + $0x27] sm:$0x3f]
    %v1491 = vsel %vm541, %v1485, 0
    %1493 = vmatprep.subr.mxu0 0.0
    %1494 = vmatpush1.msra.mxu0 %v1491
    %1495 = vmatprep.subr.mxu0 0.0
    %1496 = vmatpush1.msra.mxu0 0.0
    %1497 = vmatprep.subr.mxu0 0.0
    %1498 = vmatpush1.msra.mxu0 0.0
    %1499 = vmatprep.subr.mxu0 0.0
    %1500 = vmatpush1.msra.mxu0 0.0
    %1501 = vmatprep.subr.mxu0 0.0
    %1502 = vmatpush1.msra.mxu0 0.0
    %1503 = vmatprep.subr.mxu0 0.0
    %1504 = vmatpush1.msra.mxu0 0.0
    %1505 = vmatprep.subr.mxu0 0.0
    %1506 = vmatpush1.msra.mxu0 0.0
    %1507 = vmatprep.subr.mxu0 0.0
    %1508 = vmatpush1.msra.mxu0 0.0
    %1509 = vmatprep.subr.mxu0 0.0
    %1510 = vmatpush1.msra.mxu0 0.0
    %1511 = vmatprep.subr.mxu0 0.0
    %1512 = vmatpush1.msra.mxu0 0.0
    %1513 = vmatprep.subr.mxu0 0.0
    %1514 = vmatpush1.msra.mxu0 0.0
    %1515 = vmatprep.subr.mxu0 0.0
    %1516 = vmatpush1.msra.mxu0 0.0
    %1517 = vmatprep.subr.mxu0 0.0
    %1518 = vmatpush1.msra.mxu0 0.0
    %1519 = vmatprep.subr.mxu0 0.0
    %1520 = vmatpush1.msra.mxu0 0.0
    %1521 = vmatprep.subr.mxu0 0.0
    %1522 = vmatpush1.msra.mxu0 0.0
    %1523 = vmatprep.subr.mxu0 0.0
    %1524 = vmatpush1.msra.mxu0 0.0
    %1525 = vmatprep.subr.mxu0 0.0
    %1526 = vmatpush1.msra.mxu0 0.0
    %1527 = vmatprep.subr.mxu0 0.0
    %1528 = vmatpush1.msra.mxu0 0.0
    %1529 = vmatprep.subr.mxu0 0.0
    %1530 = vmatpush1.msra.mxu0 0.0
    %1531 = vmatprep.subr.mxu0 0.0
    %1532 = vmatpush1.msra.mxu0 0.0
    %1533 = vmatprep.subr.mxu0 0.0
    %1534 = vmatpush1.msra.mxu0 0.0
    %1535 = vmatprep.subr.mxu0 0.0
    %1536 = vmatpush1.msra.mxu0 0.0
    %1537 = vmatprep.subr.mxu0 0.0
    %1538 = vmatpush1.msra.mxu0 0.0
    %1539 = vmatprep.subr.mxu0 0.0
    %1540 = vmatpush1.msra.mxu0 0.0
    %1541 = vmatprep.subr.mxu0 0.0
    %1542 = vmatpush1.msra.mxu0 0.0
    %1543 = vmatprep.subr.mxu0 0.0
    %1544 = vmatpush1.msra.mxu0 0.0
    %1545 = vmatprep.subr.mxu0 0.0
    %1546 = vmatpush1.msra.mxu0 0.0
    %1547 = vmatprep.subr.mxu0 0.0
    %1548 = vmatpush1.msra.mxu0 0.0
    %1549 = vmatprep.subr.mxu0 0.0
    %1550 = vmatpush1.msra.mxu0 0.0
    %1551 = vmatprep.subr.mxu0 0.0
    %1552 = vmatpush1.msra.mxu0 0.0
    %1553 = vmatprep.subr.mxu0 0.0
    %1554 = vmatpush1.msra.mxu0 0.0
    %1555 = vmatprep.subr.mxu0 0.0
    %1556 = vmatpush1.msra.mxu0 0.0
    %1557 = vmatprep.mubr.f32.mxu0 0.0
    %1558 = vmatmul.mubr.f32.gmra.mrb[0].mxu0 %v1242
    %v1559 = vpop.f32.mrb[0].mxu0
    %v1560 = vadd.f32 0.0, %v1559
    %v1561 = vpop.f32.mrb[0].mxu0
    %1562 = vdwg.mxu0
    %v1563 = vsub.f32 %v1485, %v1560
    %v1564 = vmul.f32 %v1563, %v1563
    %v1566 = vsel %vm541, %v1564, 0
    %1568 = vmatprep.subr.mxu0 0.0
    %1569 = vmatpush1.msra.mxu0 %v1566
    %1570 = vmatprep.subr.mxu0 0.0
    %1571 = vmatpush1.msra.mxu0 0.0
    %1572 = vmatprep.subr.mxu0 0.0
    %1573 = vmatpush1.msra.mxu0 0.0
    %1574 = vmatprep.subr.mxu0 0.0
    %1575 = vmatpush1.msra.mxu0 0.0
    %1576 = vmatprep.subr.mxu0 0.0
    %1577 = vmatpush1.msra.mxu0 0.0
    %1578 = vmatprep.subr.mxu0 0.0
    %1579 = vmatpush1.msra.mxu0 0.0
    %1580 = vmatprep.subr.mxu0 0.0
    %1581 = vmatpush1.msra.mxu0 0.0
    %1582 = vmatprep.subr.mxu0 0.0
    %1583 = vmatpush1.msra.mxu0 0.0
    %1584 = vmatprep.subr.mxu0 0.0
    %1585 = vmatpush1.msra.mxu0 0.0
    %1586 = vmatprep.subr.mxu0 0.0
    %1587 = vmatpush1.msra.mxu0 0.0
    %1588 = vmatprep.subr.mxu0 0.0
    %1589 = vmatpush1.msra.mxu0 0.0
    %1590 = vmatprep.subr.mxu0 0.0
    %1591 = vmatpush1.msra.mxu0 0.0
    %1592 = vmatprep.subr.mxu0 0.0
    %1593 = vmatpush1.msra.mxu0 0.0
    %1594 = vmatprep.subr.mxu0 0.0
    %1595 = vmatpush1.msra.mxu0 0.0
    %1596 = vmatprep.subr.mxu0 0.0
    %1597 = vmatpush1.msra.mxu0 0.0
    %1598 = vmatprep.subr.mxu0 0.0
    %1599 = vmatpush1.msra.mxu0 0.0
    %1600 = vmatprep.subr.mxu0 0.0
    %1601 = vmatpush1.msra.mxu0 0.0
    %1602 = vmatprep.subr.mxu0 0.0
    %1603 = vmatpush1.msra.mxu0 0.0
    %1604 = vmatprep.subr.mxu0 0.0
    %1605 = vmatpush1.msra.mxu0 0.0
    %1606 = vmatprep.subr.mxu0 0.0
    %1607 = vmatpush1.msra.mxu0 0.0
    %1608 = vmatprep.subr.mxu0 0.0
    %1609 = vmatpush1.msra.mxu0 0.0
    %1610 = vmatprep.subr.mxu0 0.0
    %1611 = vmatpush1.msra.mxu0 0.0
    %1612 = vmatprep.subr.mxu0 0.0
    %1613 = vmatpush1.msra.mxu0 0.0
    %1614 = vmatprep.subr.mxu0 0.0
    %1615 = vmatpush1.msra.mxu0 0.0
    %1616 = vmatprep.subr.mxu0 0.0
    %1617 = vmatpush1.msra.mxu0 0.0
    %1618 = vmatprep.subr.mxu0 0.0
    %1619 = vmatpush1.msra.mxu0 0.0
    %1620 = vmatprep.subr.mxu0 0.0
    %1621 = vmatpush1.msra.mxu0 0.0
    %1622 = vmatprep.subr.mxu0 0.0
    %1623 = vmatpush1.msra.mxu0 0.0
    %1624 = vmatprep.subr.mxu0 0.0
    %1625 = vmatpush1.msra.mxu0 0.0
    %1626 = vmatprep.subr.mxu0 0.0
    %1627 = vmatpush1.msra.mxu0 0.0
    %1628 = vmatprep.subr.mxu0 0.0
    %1629 = vmatpush1.msra.mxu0 0.0
    %1630 = vmatprep.subr.mxu0 0.0
    %1631 = vmatpush1.msra.mxu0 0.0
    %1632 = vmatprep.mubr.f32.mxu0 0.0
    %1633 = vmatmul.mubr.f32.gmra.mrb[0].mxu0 %v1242
    %v1634 = vpop.f32.mrb[0].mxu0
    %v1635 = vadd.f32 1e-05, %v1634
    %v1636 = vpop.f32.mrb[0].mxu0
    %1637 = vdwg.mxu0
    %v1638 = vrsqrt.pop %v1635
    %v1639 = vmul.f32 %v1563, %v1638
    %v1640 = vmul.f32 %v1639, %v1488
    %v1641 = vadd.f32 %v1640, %v1489
    %v1642 = vmax.f32 %v1641, 0.0
    %1643 = vmatprep.subr.mxu0 0.0
    %1644 = vmatpush1.msra.mxu0 %v1145
    %1645 = vmatprep.subr.mxu0 0.0
    %1646 = vmatpush1.msra.mxu0 %v1146
    %1647 = vmatprep.subr.mxu0 0.0
    %1648 = vmatpush1.msra.mxu0 %v1147
    %1649 = vmatprep.subr.mxu0 0.0
    %1650 = vmatpush1.msra.mxu0 0.0
    %1651 = vmatprep.subr.mxu0 0.0
    %1652 = vmatpush1.msra.mxu0 0.0
    %1653 = vmatprep.subr.mxu0 0.0
    %1654 = vmatpush1.msra.mxu0 0.0
    %1655 = vmatprep.subr.mxu0 0.0
    %1656 = vmatpush1.msra.mxu0 0.0
    %1657 = vmatprep.subr.mxu0 0.0
    %1658 = vmatpush1.msra.mxu0 0.0
    %1659 = vmatprep.subr.mxu0 0.0
    %1660 = vmatpush1.msra.mxu0 0.0
    %1661 = vmatprep.subr.mxu0 0.0
    %1662 = vmatpush1.msra.mxu0 0.0
    %1663 = vmatprep.subr.mxu0 0.0
    %1664 = vmatpush1.msra.mxu0 0.0
    %1665 = vmatprep.subr.mxu0 0.0
    %1666 = vmatpush1.msra.mxu0 0.0
    %1667 = vmatprep.subr.mxu0 0.0
    %1668 = vmatpush1.msra.mxu0 0.0
    %1669 = vmatprep.subr.mxu0 0.0
    %1670 = vmatpush1.msra.mxu0 0.0
    %1671 = vmatprep.subr.mxu0 0.0
    %1672 = vmatpush1.msra.mxu0 0.0
    %1673 = vmatprep.subr.mxu0 0.0
    %1674 = vmatpush1.msra.mxu0 0.0
    %1675 = vmatprep.subr.mxu0 0.0
    %1676 = vmatpush1.msra.mxu0 0.0
    %1677 = vmatprep.subr.mxu0 0.0
    %1678 = vmatpush1.msra.mxu0 0.0
    %1679 = vmatprep.subr.mxu0 0.0
    %1680 = vmatpush1.msra.mxu0 0.0
    %1681 = vmatprep.subr.mxu0 0.0
    %1682 = vmatpush1.msra.mxu0 0.0
    %1683 = vmatprep.subr.mxu0 0.0
    %1684 = vmatpush1.msra.mxu0 0.0
    %1685 = vmatprep.subr.mxu0 0.0
    %1686 = vmatpush1.msra.mxu0 0.0
    %1687 = vmatprep.subr.mxu0 0.0
    %1688 = vmatpush1.msra.mxu0 0.0
    %1689 = vmatprep.subr.mxu0 0.0
    %1690 = vmatpush1.msra.mxu0 0.0
    %1691 = vmatprep.subr.mxu0 0.0
    %1692 = vmatpush1.msra.mxu0 0.0
    %1693 = vmatprep.subr.mxu0 0.0
    %1694 = vmatpush1.msra.mxu0 0.0
    %1695 = vmatprep.subr.mxu0 0.0
    %1696 = vmatpush1.msra.mxu0 0.0
    %1697 = vmatprep.subr.mxu0 0.0
    %1698 = vmatpush1.msra.mxu0 0.0
    %1699 = vmatprep.subr.mxu0 0.0
    %1700 = vmatpush1.msra.mxu0 0.0
    %1701 = vmatprep.subr.mxu0 0.0
    %1702 = vmatpush1.msra.mxu0 0.0
    %1703 = vmatprep.subr.mxu0 0.0
    %1704 = vmatpush1.msra.mxu0 0.0
    %1705 = vmatprep.subr.mxu0 0.0
    %1706 = vmatpush1.msra.mxu0 0.0
    %1707 = vmatprep.mubr.f32.mxu0 0.0
    %1708 = vmatmul.mubr.f32.gmra.mrb[0].mxu0 %v459
    %v1709 = vpop.f32.mrb[0].mxu0
    %v1710 = vadd.f32 %v1642, %v1709
    %v1711 = vpop.f32.mrb[0].mxu0
    %1712 = vdwg.mxu0
    %v1714 = vsel %vm541, %v1642, 0
    %1716 = vmatprep.subr.mxu0 0.0
    %1717 = vmatpush1.msra.mxu0 %v1714
    %1718 = vmatprep.subr.mxu0 0.0
    %1719 = vmatpush1.msra.mxu0 0.0
    %1720 = vmatprep.subr.mxu0 0.0
    %1721 = vmatpush1.msra.mxu0 0.0
    %1722 = vmatprep.subr.mxu0 0.0
    %1723 = vmatpush1.msra.mxu0 0.0
    %1724 = vmatprep.subr.mxu0 0.0
    %1725 = vmatpush1.msra.mxu0 0.0
    %1726 = vmatprep.subr.mxu0 0.0
    %1727 = vmatpush1.msra.mxu0 0.0
    %1728 = vmatprep.subr.mxu0 0.0
    %1729 = vmatpush1.msra.mxu0 0.0
    %1730 = vmatprep.subr.mxu0 0.0
    %1731 = vmatpush1.msra.mxu0 0.0
    %1732 = vmatprep.subr.mxu0 0.0
    %1733 = vmatpush1.msra.mxu0 0.0
    %1734 = vmatprep.subr.mxu0 0.0
    %1735 = vmatpush1.msra.mxu0 0.0
    %1736 = vmatprep.subr.mxu0 0.0
    %1737 = vmatpush1.msra.mxu0 0.0
    %1738 = vmatprep.subr.mxu0 0.0
    %1739 = vmatpush1.msra.mxu0 0.0
    %1740 = vmatprep.subr.mxu0 0.0
    %1741 = vmatpush1.msra.mxu0 0.0
    %1742 = vmatprep.subr.mxu0 0.0
    %1743 = vmatpush1.msra.mxu0 0.0
    %1744 = vmatprep.subr.mxu0 0.0
    %1745 = vmatpush1.msra.mxu0 0.0
    %1746 = vmatprep.subr.mxu0 0.0
    %1747 = vmatpush1.msra.mxu0 0.0
    %1748 = vmatprep.subr.mxu0 0.0
    %1749 = vmatpush1.msra.mxu0 0.0
    %1750 = vmatprep.subr.mxu0 0.0
    %1751 = vmatpush1.msra.mxu0 0.0
    %1752 = vmatprep.subr.mxu0 0.0
    %1753 = vmatpush1.msra.mxu0 0.0
    %1754 = vmatprep.subr.mxu0 0.0
    %1755 = vmatpush1.msra.mxu0 0.0
    %1756 = vmatprep.subr.mxu0 0.0
    %1757 = vmatpush1.msra.mxu0 0.0
    %1758 = vmatprep.subr.mxu0 0.0
    %1759 = vmatpush1.msra.mxu0 0.0
    %1760 = vmatprep.subr.mxu0 0.0
    %1761 = vmatpush1.msra.mxu0 0.0
    %1762 = vmatprep.subr.mxu0 0.0
    %1763 = vmatpush1.msra.mxu0 0.0
    %1764 = vmatprep.subr.mxu0 0.0
    %1765 = vmatpush1.msra.mxu0 0.0
    %1766 = vmatprep.subr.mxu0 0.0
    %1767 = vmatpush1.msra.mxu0 0.0
    %1768 = vmatprep.subr.mxu0 0.0
    %1769 = vmatpush1.msra.mxu0 0.0
    %1770 = vmatprep.subr.mxu0 0.0
    %1771 = vmatpush1.msra.mxu0 0.0
    %1772 = vmatprep.subr.mxu0 0.0
    %1773 = vmatpush1.msra.mxu0 0.0
    %1774 = vmatprep.subr.mxu0 0.0
    %1775 = vmatpush1.msra.mxu0 0.0
    %1776 = vmatprep.subr.mxu0 0.0
    %1777 = vmatpush1.msra.mxu0 0.0
    %1778 = vmatprep.subr.mxu0 0.0
    %1779 = vmatpush1.msra.mxu0 0.0
    %1780 = vmatprep.mubr.f32.mxu0 0.0
    %1781 = vmatmul.mubr.f32.gmra.mrb[0].mxu0 %v533
    %v1782 = vpop.f32.mrb[0].mxu0
    %v1783 = vadd.f32 0.0, %v1782
    %v1784 = vpop.f32.mrb[0].mxu0
    %1785 = vmatprep.mubr.f32.mxu0 0.0
    %1786 = vmatmul.mubr.f32.gmra.mrb[0].mxu0 %v536
    %v1787 = vpop.f32.mrb[0].mxu0
    %v1788 = vadd.f32 0.0, %v1787
    %v1789 = vpop.f32.mrb[0].mxu0
    %1790 = vmatprep.mubr.f32.mxu0 0.0
    %1791 = vmatmul.mubr.f32.gmra.mrb[0].mxu0 %v539
    %v1792 = vpop.f32.mrb[0].mxu0
    %v1793 = vadd.f32 0.0, %v1792
    %v1794 = vpop.f32.mrb[0].mxu0
    %1795 = vdwg.mxu0
    %v1796 = vadd.f32 %v1145, %v1783
    %v1797 = vadd.f32 %v1146, %v1788
    %v1798 = vadd.f32 %v1147, %v1793
    %1799 = vmatprep.subr.mxu0 0.0
    %1800 = vmatpush1.msra.mxu0 %v1796
    %1801 = vmatprep.subr.mxu0 0.0
    %1802 = vmatpush1.msra.mxu0 %v1797
    %1803 = vmatprep.subr.mxu0 0.0
    %1804 = vmatpush1.msra.mxu0 %v1798
    %1805 = vmatprep.subr.mxu0 0.0
    %1806 = vmatpush1.msra.mxu0 0.0
    %1807 = vmatprep.subr.mxu0 0.0
    %1808 = vmatpush1.msra.mxu0 0.0
    %1809 = vmatprep.subr.mxu0 0.0
    %1810 = vmatpush1.msra.mxu0 0.0
    %1811 = vmatprep.subr.mxu0 0.0
    %1812 = vmatpush1.msra.mxu0 0.0
    %1813 = vmatprep.subr.mxu0 0.0
    %1814 = vmatpush1.msra.mxu0 0.0
    %1815 = vmatprep.subr.mxu0 0.0
    %1816 = vmatpush1.msra.mxu0 0.0
    %1817 = vmatprep.subr.mxu0 0.0
    %1818 = vmatpush1.msra.mxu0 0.0
    %1819 = vmatprep.subr.mxu0 0.0
    %1820 = vmatpush1.msra.mxu0 0.0
    %1821 = vmatprep.subr.mxu0 0.0
    %1822 = vmatpush1.msra.mxu0 0.0
    %1823 = vmatprep.subr.mxu0 0.0
    %1824 = vmatpush1.msra.mxu0 0.0
    %1825 = vmatprep.subr.mxu0 0.0
    %1826 = vmatpush1.msra.mxu0 0.0
    %1827 = vmatprep.subr.mxu0 0.0
    %1828 = vmatpush1.msra.mxu0 0.0
    %1829 = vmatprep.subr.mxu0 0.0
    %1830 = vmatpush1.msra.mxu0 0.0
    %1831 = vmatprep.subr.mxu0 0.0
    %1832 = vmatpush1.msra.mxu0 0.0
    %1833 = vmatprep.subr.mxu0 0.0
    %1834 = vmatpush1.msra.mxu0 0.0
    %1835 = vmatprep.subr.mxu0 0.0
    %1836 = vmatpush1.msra.mxu0 0.0
    %1837 = vmatprep.subr.mxu0 0.0
    %1838 = vmatpush1.msra.mxu0 0.0
    %1839 = vmatprep.subr.mxu0 0.0
    %1840 = vmatpush1.msra.mxu0 0.0
    %1841 = vmatprep.subr.mxu0 0.0
    %1842 = vmatpush1.msra.mxu0 0.0
    %1843 = vmatprep.subr.mxu0 0.0
    %1844 = vmatpush1.msra.mxu0 0.0
    %1845 = vmatprep.subr.mxu0 0.0
    %1846 = vmatpush1.msra.mxu0 0.0
    %1847 = vmatprep.subr.mxu0 0.0
    %1848 = vmatpush1.msra.mxu0 0.0
    %1849 = vmatprep.subr.mxu0 0.0
    %1850 = vmatpush1.msra.mxu0 0.0
    %1851 = vmatprep.subr.mxu0 0.0
    %1852 = vmatpush1.msra.mxu0 0.0
    %1853 = vmatprep.subr.mxu0 0.0
    %1854 = vmatpush1.msra.mxu0 0.0
    %1855 = vmatprep.subr.mxu0 0.0
    %1856 = vmatpush1.msra.mxu0 0.0
    %1857 = vmatprep.subr.mxu0 0.0
    %1858 = vmatpush1.msra.mxu0 0.0
    %1859 = vmatprep.subr.mxu0 0.0
    %1860 = vmatpush1.msra.mxu0 0.0
    %1861 = vmatprep.subr.mxu0 0.0
    %1862 = vmatpush1.msra.mxu0 0.0
    %1863 = vmatprep.mubr.f32.mxu0 0.0
    %1864 = vmatmul.mubr.f32.gmra.mrb[0].mxu0 %v635
    %v1865 = vpop.f32.mrb[0].mxu0
    %v1866 = vadd.f32 %v229, %v1865
    %v1867 = vpop.f32.mrb[0].mxu0
    %1868 = vmatprep.mubr.f32.mxu0 0.0
    %1869 = vmatmul.mubr.f32.gmra.mrb[0].mxu0 %v638
    %v1870 = vpop.f32.mrb[0].mxu0
    %v1871 = vadd.f32 %v235, %v1870
    %v1872 = vpop.f32.mrb[0].mxu0
    %1873 = vmatprep.mubr.f32.mxu0 0.0
    %1874 = vmatmul.mubr.f32.gmra.mrb[0].mxu0 %v641
    %v1875 = vpop.f32.mrb[0].mxu0
    %v1876 = vadd.f32 %v241, %v1875
    %v1877 = vpop.f32.mrb[0].mxu0
    %1878 = vmatprep.mubr.f32.mxu0 0.0
    %1879 = vmatmul.mubr.f32.gmra.mrb[0].mxu0 %v644
    %v1880 = vpop.f32.mrb[0].mxu0
    %v1881 = vadd.f32 %v247, %v1880
    %v1882 = vpop.f32.mrb[0].mxu0
    %1883 = vmatprep.mubr.f32.mxu0 0.0
    %1884 = vmatmul.mubr.f32.gmra.mrb[0].mxu0 %v647
    %v1885 = vpop.f32.mrb[0].mxu0
    %v1886 = vadd.f32 %v253, %v1885
    %v1887 = vpop.f32.mrb[0].mxu0
    %1888 = vmatprep.mubr.f32.mxu0 0.0
    %1889 = vmatmul.mubr.f32.gmra.mrb[0].mxu0 %v650
    %v1890 = vpop.f32.mrb[0].mxu0
    %v1891 = vadd.f32 %v259, %v1890
    %v1892 = vpop.f32.mrb[0].mxu0
    %1893 = vdwg.mxu0
    %v1894 = vmax.f32 %v1866, 0.0
    %v1895 = vmax.f32 %v1871, 0.0
    %v1896 = vmax.f32 %v1876, 0.0
    %v1897 = vmax.f32 %v1881, 0.0
    %v1898 = vmax.f32 %v1886, 0.0
    %v1899 = vmax.f32 %v1891, 0.0
    %1900 = vmatprep.subr.mxu0 0.0
    %1901 = vmatpush1.msra.mxu0 %v1894
    %1902 = vmatprep.subr.mxu0 0.0
    %1903 = vmatpush1.msra.mxu0 %v1895
    %1904 = vmatprep.subr.mxu0 0.0
    %1905 = vmatpush1.msra.mxu0 %v1896
    %1906 = vmatprep.subr.mxu0 0.0
    %1907 = vmatpush1.msra.mxu0 %v1897
    %1908 = vmatprep.subr.mxu0 0.0
    %1909 = vmatpush1.msra.mxu0 %v1898
    %1910 = vmatprep.subr.mxu0 0.0
    %1911 = vmatpush1.msra.mxu0 %v1899
    %1912 = vmatprep.subr.mxu0 0.0
    %1913 = vmatpush1.msra.mxu0 0.0
    %1914 = vmatprep.subr.mxu0 0.0
    %1915 = vmatpush1.msra.mxu0 0.0
    %1916 = vmatprep.subr.mxu0 0.0
    %1917 = vmatpush1.msra.mxu0 0.0
    %1918 = vmatprep.subr.mxu0 0.0
    %1919 = vmatpush1.msra.mxu0 0.0
    %1920 = vmatprep.subr.mxu0 0.0
    %1921 = vmatpush1.msra.mxu0 0.0
    %1922 = vmatprep.subr.mxu0 0.0
    %1923 = vmatpush1.msra.mxu0 0.0
    %1924 = vmatprep.subr.mxu0 0.0
    %1925 = vmatpush1.msra.mxu0 0.0
    %1926 = vmatprep.subr.mxu0 0.0
    %1927 = vmatpush1.msra.mxu0 0.0
    %1928 = vmatprep.subr.mxu0 0.0
    %1929 = vmatpush1.msra.mxu0 0.0
    %1930 = vmatprep.subr.mxu0 0.0
    %1931 = vmatpush1.msra.mxu0 0.0
    %1932 = vmatprep.subr.mxu0 0.0
    %1933 = vmatpush1.msra.mxu0 0.0
    %1934 = vmatprep.subr.mxu0 0.0
    %1935 = vmatpush1.msra.mxu0 0.0
    %1936 = vmatprep.subr.mxu0 0.0
    %1937 = vmatpush1.msra.mxu0 0.0
    %1938 = vmatprep.subr.mxu0 0.0
    %1939 = vmatpush1.msra.mxu0 0.0
    %1940 = vmatprep.subr.mxu0 0.0
    %1941 = vmatpush1.msra.mxu0 0.0
    %1942 = vmatprep.subr.mxu0 0.0
    %1943 = vmatpush1.msra.mxu0 0.0
    %1944 = vmatprep.subr.mxu0 0.0
    %1945 = vmatpush1.msra.mxu0 0.0
    %1946 = vmatprep.subr.mxu0 0.0
    %1947 = vmatpush1.msra.mxu0 0.0
    %1948 = vmatprep.subr.mxu0 0.0
    %1949 = vmatpush1.msra.mxu0 0.0
    %1950 = vmatprep.subr.mxu0 0.0
    %1951 = vmatpush1.msra.mxu0 0.0
    %1952 = vmatprep.subr.mxu0 0.0
    %1953 = vmatpush1.msra.mxu0 0.0
    %1954 = vmatprep.subr.mxu0 0.0
    %1955 = vmatpush1.msra.mxu0 0.0
    %1956 = vmatprep.subr.mxu0 0.0
    %1957 = vmatpush1.msra.mxu0 0.0
    %1958 = vmatprep.subr.mxu0 0.0
    %1959 = vmatpush1.msra.mxu0 0.0
    %1960 = vmatprep.subr.mxu0 0.0
    %1961 = vmatpush1.msra.mxu0 0.0
    %1962 = vmatprep.subr.mxu0 0.0
    %1963 = vmatpush1.msra.mxu0 0.0
    %1964 = vmatprep.mubr.f32.mxu0 0.0
    %1965 = vmatmul.mubr.f32.gmra.mrb[0].mxu0 %v758
    %v1966 = vpop.f32.mrb[0].mxu0
    %v1967 = vadd.f32 0.0, %v1966
    %v1968 = vpop.f32.mrb[0].mxu0
    %1969 = vmatprep.mubr.f32.mxu0 0.0
    %1970 = vmatmul.mubr.f32.gmra.mrb[0].mxu0 %v761
    %v1971 = vpop.f32.mrb[0].mxu0
    %v1972 = vadd.f32 0.0, %v1971
    %v1973 = vpop.f32.mrb[0].mxu0
    %1974 = vmatprep.mubr.f32.mxu0 0.0
    %1975 = vmatmul.mubr.f32.gmra.mrb[0].mxu0 %v764
    %v1976 = vpop.f32.mrb[0].mxu0
    %v1977 = vadd.f32 0.0, %v1976
    %v1978 = vpop.f32.mrb[0].mxu0
    %1979 = vdwg.mxu0
    %v1980 = vld [vmem:[#allocation5 + $0x80] sm:$0xff]
    %v1981 = vld [vmem:[#allocation5 + $0x88] sm:$0xff]
    %v1982 = vld [vmem:[#allocation5 + $0x90] sm:$0xff]
    %v1983 = vld [vmem:[#allocation5 + $0x98] sm:$0xff]
    %v1984 = vld [vmem:[#allocation5 + $0xa0] sm:$0xff]
    %v1985 = vld [vmem:[#allocation5 + $0xa8] sm:$0xff]
    %v1986 = vld [vmem:[#allocation5 + $0xb0] sm:$0xff]
    %v1987 = vld [vmem:[#allocation5 + $0xb8] sm:$0xff]
    %v1988 = vld [vmem:[#allocation5 + $0xc0] sm:$0xff]
    %v1989 = vld [vmem:[#allocation5 + $0xc8] sm:$0xff]
    %v1990 = vld [vmem:[#allocation5 + $0xd0] sm:$0xff]
    %v1991 = vld [vmem:[#allocation5 + $0xd8] sm:$0xff]
    %v1992 = vld [vmem:[#allocation5 + $0xe0] sm:$0xff]
    %v1993 = vld [vmem:[#allocation5 + $0xe8] sm:$0xff]
    %v1994 = vld [vmem:[#allocation5 + $0xf0] sm:$0xff]
    %v1995 = vld [vmem:[#allocation5 + $0xf8] sm:$0xff]
    %v1996 = vadd.f32 %v1796, %v1967
    %v1997 = vadd.f32 %v1797, %v1972
    %v1998 = vadd.f32 %v1798, %v1977
    %v1999 = vld [vmem:[%s12 + $0x7] sm:$0x1]
    %v2000 = vlaneseq
    %v2001 = vshrl.u32 %v2000, 7
    %v2002 = vsub.s32 0, %v2001
    %v2003 = vrot.slane %v1999, %v2002
    %2004 = vmatprep.subr.mxu0 0.0
    %2005 = vmatpush1.msra.mxu0 %v1980
    %2006 = vmatprep.subr.mxu0 0.0
    %2007 = vmatpush1.msra.mxu0 %v1981
    %2008 = vmatprep.subr.mxu0 0.0
    %2009 = vmatpush1.msra.mxu0 %v1982
    %2010 = vmatprep.subr.mxu0 0.0
    %2011 = vmatpush1.msra.mxu0 %v1983
    %2012 = vmatprep.subr.mxu0 0.0
    %2013 = vmatpush1.msra.mxu0 %v1984
    %2014 = vmatprep.subr.mxu0 0.0
    %2015 = vmatpush1.msra.mxu0 %v1985
    %2016 = vmatprep.subr.mxu0 0.0
    %2017 = vmatpush1.msra.mxu0 %v1986
    %2018 = vmatprep.subr.mxu0 0.0
    %2019 = vmatpush1.msra.mxu0 %v1987
    %2020 = vmatprep.subr.mxu0 0.0
    %2021 = vmatpush1.msra.mxu0 %v1988
    %2022 = vmatprep.subr.mxu0 0.0
    %2023 = vmatpush1.msra.mxu0 %v1989
    %2024 = vmatprep.subr.mxu0 0.0
    %2025 = vmatpush1.msra.mxu0 %v1990
    %2026 = vmatprep.subr.mxu0 0.0
    %2027 = vmatpush1.msra.mxu0 %v1991
    %2028 = vmatprep.subr.mxu0 0.0
    %2029 = vmatpush1.msra.mxu0 %v1992
    %2030 = vmatprep.subr.mxu0 0.0
    %2031 = vmatpush1.msra.mxu0 %v1993
    %2032 = vmatprep.subr.mxu0 0.0
    %2033 = vmatpush1.msra.mxu0 %v1994
    %2034 = vmatprep.subr.mxu0 0.0
    %2035 = vmatpush1.msra.mxu0 %v1995
    %2036 = vmatprep.subr.mxu0 0.0
    %2037 = vmatpush1.msra.mxu0 0.0
    %2038 = vmatprep.subr.mxu0 0.0
    %2039 = vmatpush1.msra.mxu0 0.0
    %2040 = vmatprep.subr.mxu0 0.0
    %2041 = vmatpush1.msra.mxu0 0.0
    %2042 = vmatprep.subr.mxu0 0.0
    %2043 = vmatpush1.msra.mxu0 0.0
    %2044 = vmatprep.subr.mxu0 0.0
    %2045 = vmatpush1.msra.mxu0 0.0
    %2046 = vmatprep.subr.mxu0 0.0
    %2047 = vmatpush1.msra.mxu0 0.0
    %2048 = vmatprep.subr.mxu0 0.0
    %2049 = vmatpush1.msra.mxu0 0.0
    %2050 = vmatprep.subr.mxu0 0.0
    %2051 = vmatpush1.msra.mxu0 0.0
    %2052 = vmatprep.subr.mxu0 0.0
    %2053 = vmatpush1.msra.mxu0 0.0
    %2054 = vmatprep.subr.mxu0 0.0
    %2055 = vmatpush1.msra.mxu0 0.0
    %2056 = vmatprep.subr.mxu0 0.0
    %2057 = vmatpush1.msra.mxu0 0.0
    %2058 = vmatprep.subr.mxu0 0.0
    %2059 = vmatpush1.msra.mxu0 0.0
    %2060 = vmatprep.subr.mxu0 0.0
    %2061 = vmatpush1.msra.mxu0 0.0
    %2062 = vmatprep.subr.mxu0 0.0
    %2063 = vmatpush1.msra.mxu0 0.0
    %2064 = vmatprep.subr.mxu0 0.0
    %2065 = vmatpush1.msra.mxu0 0.0
    %2066 = vmatprep.subr.mxu0 0.0
    %2067 = vmatpush1.msra.mxu0 0.0
    %2068 = vmatprep.mubr.f32.mxu0 0.0
    %2069 = vmatmul.mubr.f32.gmra.mrb[0].mxu0 %v1996
    %v2070 = vpop.f32.mrb[0].mxu0
    %v2071 = vadd.f32 %v2003, %v2070
    %v2072 = vpop.f32.mrb[0].mxu0
    %2073 = vmatprep.mubr.f32.mxu0 0.0
    %2074 = vmatmul.mubr.f32.gmra.mrb[0].mxu0 %v1997
    %v2075 = vpop.f32.mrb[0].mxu0
    %v2076 = vadd.f32 %v2003, %v2075
    %v2077 = vpop.f32.mrb[0].mxu0
    %2078 = vmatprep.mubr.f32.mxu0 0.0
    %2079 = vmatmul.mubr.f32.gmra.mrb[0].mxu0 %v1998
    %v2080 = vpop.f32.mrb[0].mxu0
    %v2081 = vadd.f32 %v2003, %v2080
    %v2082 = vpop.f32.mrb[0].mxu0
    %2083 = vdwg.mxu0
    %v2084 = vld [vmem:[%s12 + $0x8] sm:$0x1]
    %v2085 = vld [vmem:[%s12 + $0x9] sm:$0x1]
    %v2086 = vadd.f32 %v2071, %v2076
    %v2087 = vadd.f32 %v2086, %v2081
    %v2088 = vrot.slane %v2087, 4
    %v2089 = vadd.f32 %v2087, %v2088
    %v2090 = vrot.slane %v2089, 2
    %v2091 = vadd.f32 %v2089, %v2090
    %v2092 = vrot.slane %v2091, 1
    %v2093 = vadd.f32 %v2091, %v2092
    %v2094 = vmul.f32 %v2093, %v960
    %v2095 = vsub.f32 %v2071, %v2094
    %v2096 = vsub.f32 %v2076, %v2094
    %v2097 = vsub.f32 %v2081, %v2094
    %v2098 = vmul.f32 %v2095, %v2095
    %v2099 = vmul.f32 %v2096, %v2096
    %v2100 = vmul.f32 %v2097, %v2097
    %v2101 = vadd.f32 %v2098, %v2099
    %v2102 = vadd.f32 %v2101, %v2100
    %v2103 = vrot.slane %v2102, 4
    %v2104 = vadd.f32 %v2102, %v2103
    %v2105 = vrot.slane %v2104, 2
    %v2106 = vadd.f32 %v2104, %v2105
    %v2107 = vrot.slane %v2106, 1
    %v2108 = vadd.f32 %v2106, %v2107
    %v2109 = vmul.f32 %v2108, %v960
    %v2110 = vadd.f32 %v2109, 1e-05
    %v2111 = vrsqrt.pop %v2110
    %v2112 = vmul.f32 %v2095, %v2111
    %v2113 = vmul.f32 %v2096, %v2111
    %v2114 = vmul.f32 %v2097, %v2111
    %v2115 = vlaneseq
    %v2116 = vshrl.u32 %v2115, 7
    %v2117 = vsub.s32 0, %v2116
    %v2118 = vrot.slane %v2084, %v2117
    %v2119 = vmul.f32 %v2112, %v2118
    %v2120 = vmul.f32 %v2113, %v2118
    %v2121 = vmul.f32 %v2114, %v2118
    %v2122 = vlaneseq
    %v2123 = vshrl.u32 %v2122, 7
    %v2124 = vsub.s32 0, %v2123
    %v2125 = vrot.slane %v2085, %v2124
    %v2126 = vadd.f32 %v2119, %v2125
    %v2127 = vadd.f32 %v2120, %v2125
    %v2128 = vadd.f32 %v2121, %v2125
    %v2129 = vmax.f32 %v2126, 0.0
    %v2130 = vmax.f32 %v2127, 0.0
    %v2131 = vmax.f32 %v2128, 0.0
    %v2132 = vld [vmem:[#allocation7 + $0x80] sm:$0xff]
    %v2133 = vld [vmem:[#allocation7 + $0x88] sm:$0xff]
    %v2134 = vld [vmem:[#allocation7 + $0x90] sm:$0xff]
    %v2135 = vld [vmem:[#allocation7 + $0x98] sm:$0xff]
    %v2136 = vld [vmem:[#allocation7 + $0xa0] sm:$0xff]
    %v2137 = vld [vmem:[#allocation7 + $0xa8] sm:$0xff]
    %v2138 = vld [vmem:[#allocation7 + $0xb0] sm:$0xff]
    %v2139 = vld [vmem:[#allocation7 + $0xb8] sm:$0xff]
    %v2140 = vld [vmem:[#allocation7 + $0xc0] sm:$0xff]
    %v2141 = vld [vmem:[#allocation7 + $0xc8] sm:$0xff]
    %v2142 = vld [vmem:[#allocation7 + $0xd0] sm:$0xff]
    %v2143 = vld [vmem:[#allocation7 + $0xd8] sm:$0xff]
    %v2144 = vld [vmem:[#allocation7 + $0xe0] sm:$0xff]
    %v2145 = vld [vmem:[#allocation7 + $0xe8] sm:$0xff]
    %v2146 = vld [vmem:[#allocation7 + $0xf0] sm:$0xff]
    %v2147 = vld [vmem:[#allocation7 + $0xf8] sm:$0xff]
    %v2148 = vld [vmem:[%s12 + $0xa] sm:$0x1]
    %v2149 = vlaneseq
    %v2150 = vshrl.u32 %v2149, 7
    %v2151 = vsub.s32 0, %v2150
    %v2152 = vrot.slane %v2148, %v2151
    %2153 = vmatprep.subr.mxu0 0.0
    %2154 = vmatpush1.msra.mxu0 %v2132
    %2155 = vmatprep.subr.mxu0 0.0
    %2156 = vmatpush1.msra.mxu0 %v2133
    %2157 = vmatprep.subr.mxu0 0.0
    %2158 = vmatpush1.msra.mxu0 %v2134
    %2159 = vmatprep.subr.mxu0 0.0
    %2160 = vmatpush1.msra.mxu0 %v2135
    %2161 = vmatprep.subr.mxu0 0.0
    %2162 = vmatpush1.msra.mxu0 %v2136
    %2163 = vmatprep.subr.mxu0 0.0
    %2164 = vmatpush1.msra.mxu0 %v2137
    %2165 = vmatprep.subr.mxu0 0.0
    %2166 = vmatpush1.msra.mxu0 %v2138
    %2167 = vmatprep.subr.mxu0 0.0
    %2168 = vmatpush1.msra.mxu0 %v2139
    %2169 = vmatprep.subr.mxu0 0.0
    %2170 = vmatpush1.msra.mxu0 %v2140
    %2171 = vmatprep.subr.mxu0 0.0
    %2172 = vmatpush1.msra.mxu0 %v2141
    %2173 = vmatprep.subr.mxu0 0.0
    %2174 = vmatpush1.msra.mxu0 %v2142
    %2175 = vmatprep.subr.mxu0 0.0
    %2176 = vmatpush1.msra.mxu0 %v2143
    %2177 = vmatprep.subr.mxu0 0.0
    %2178 = vmatpush1.msra.mxu0 %v2144
    %2179 = vmatprep.subr.mxu0 0.0
    %2180 = vmatpush1.msra.mxu0 %v2145
    %2181 = vmatprep.subr.mxu0 0.0
    %2182 = vmatpush1.msra.mxu0 %v2146
    %2183 = vmatprep.subr.mxu0 0.0
    %2184 = vmatpush1.msra.mxu0 %v2147
    %2185 = vmatprep.subr.mxu0 0.0
    %2186 = vmatpush1.msra.mxu0 0.0
    %2187 = vmatprep.subr.mxu0 0.0
    %2188 = vmatpush1.msra.mxu0 0.0
    %2189 = vmatprep.subr.mxu0 0.0
    %2190 = vmatpush1.msra.mxu0 0.0
    %2191 = vmatprep.subr.mxu0 0.0
    %2192 = vmatpush1.msra.mxu0 0.0
    %2193 = vmatprep.subr.mxu0 0.0
    %2194 = vmatpush1.msra.mxu0 0.0
    %2195 = vmatprep.subr.mxu0 0.0
    %2196 = vmatpush1.msra.mxu0 0.0
    %2197 = vmatprep.subr.mxu0 0.0
    %2198 = vmatpush1.msra.mxu0 0.0
    %2199 = vmatprep.subr.mxu0 0.0
    %2200 = vmatpush1.msra.mxu0 0.0
    %2201 = vmatprep.subr.mxu0 0.0
    %2202 = vmatpush1.msra.mxu0 0.0
    %2203 = vmatprep.subr.mxu0 0.0
    %2204 = vmatpush1.msra.mxu0 0.0
    %2205 = vmatprep.subr.mxu0 0.0
    %2206 = vmatpush1.msra.mxu0 0.0
    %2207 = vmatprep.subr.mxu0 0.0
    %2208 = vmatpush1.msra.mxu0 0.0
    %2209 = vmatprep.subr.mxu0 0.0
    %2210 = vmatpush1.msra.mxu0 0.0
    %2211 = vmatprep.subr.mxu0 0.0
    %2212 = vmatpush1.msra.mxu0 0.0
    %2213 = vmatprep.subr.mxu0 0.0
    %2214 = vmatpush1.msra.mxu0 0.0
    %2215 = vmatprep.subr.mxu0 0.0
    %2216 = vmatpush1.msra.mxu0 0.0
    %2217 = vmatprep.mubr.f32.mxu0 0.0
    %2218 = vmatmul.mubr.f32.gmra.mrb[0].mxu0 %v2129
    %v2219 = vpop.f32.mrb[0].mxu0
    %v2220 = vadd.f32 %v2152, %v2219
    %v2221 = vpop.f32.mrb[0].mxu0
    %2222 = vmatprep.mubr.f32.mxu0 0.0
    %2223 = vmatmul.mubr.f32.gmra.mrb[0].mxu0 %v2130
    %v2224 = vpop.f32.mrb[0].mxu0
    %v2225 = vadd.f32 %v2152, %v2224
    %v2226 = vpop.f32.mrb[0].mxu0
    %2227 = vmatprep.mubr.f32.mxu0 0.0
    %2228 = vmatmul.mubr.f32.gmra.mrb[0].mxu0 %v2131
    %v2229 = vpop.f32.mrb[0].mxu0
    %v2230 = vadd.f32 %v2152, %v2229
    %v2231 = vpop.f32.mrb[0].mxu0
    %2232 = vdwg.mxu0
    %v2233 = vld [vmem:[%s12 + $0xb] sm:$0x1]
    %v2234 = vld [vmem:[%s12 + $0xc] sm:$0x1]
    %v2235 = vadd.f32 %v2220, %v2225
    %v2236 = vadd.f32 %v2235, %v2230
    %v2237 = vrot.slane %v2236, 4
    %v2238 = vadd.f32 %v2236, %v2237
    %v2239 = vrot.slane %v2238, 2
    %v2240 = vadd.f32 %v2238, %v2239
    %v2241 = vrot.slane %v2240, 1
    %v2242 = vadd.f32 %v2240, %v2241
    %v2243 = vmul.f32 %v2242, %v960
    %v2244 = vsub.f32 %v2220, %v2243
    %v2245 = vsub.f32 %v2225, %v2243
    %v2246 = vsub.f32 %v2230, %v2243
    %v2247 = vmul.f32 %v2244, %v2244
    %v2248 = vmul.f32 %v2245, %v2245
    %v2249 = vmul.f32 %v2246, %v2246
    %v2250 = vadd.f32 %v2247, %v2248
    %v2251 = vadd.f32 %v2250, %v2249
    %v2252 = vrot.slane %v2251, 4
    %v2253 = vadd.f32 %v2251, %v2252
    %v2254 = vrot.slane %v2253, 2
    %v2255 = vadd.f32 %v2253, %v2254
    %v2256 = vrot.slane %v2255, 1
    %v2257 = vadd.f32 %v2255, %v2256
    %v2258 = vmul.f32 %v2257, %v960
    %v2259 = vadd.f32 %v2258, 1e-05
    %v2260 = vrsqrt.pop %v2259
    %v2261 = vmul.f32 %v2244, %v2260
    %v2262 = vmul.f32 %v2245, %v2260
    %v2263 = vmul.f32 %v2246, %v2260
    %v2264 = vlaneseq
    %v2265 = vshrl.u32 %v2264, 7
    %v2266 = vsub.s32 0, %v2265
    %v2267 = vrot.slane %v2233, %v2266
    %v2268 = vmul.f32 %v2261, %v2267
    %v2269 = vmul.f32 %v2262, %v2267
    %v2270 = vmul.f32 %v2263, %v2267
    %v2271 = vlaneseq
    %v2272 = vshrl.u32 %v2271, 7
    %v2273 = vsub.s32 0, %v2272
    %v2274 = vrot.slane %v2234, %v2273
    %v2275 = vadd.f32 %v2268, %v2274
    %v2276 = vadd.f32 %v2269, %v2274
    %v2277 = vadd.f32 %v2270, %v2274
    %v2278 = vmax.f32 %v2275, 0.0
    %v2279 = vmax.f32 %v2276, 0.0
    %v2280 = vmax.f32 %v2277, 0.0
    %v2281 = vld [vmem:[#allocation5 + $0x200] sm:$0xff]
    %v2282 = vld [vmem:[#allocation5 + $0x208] sm:$0xff]
    %v2283 = vld [vmem:[#allocation5 + $0x210] sm:$0xff]
    %v2284 = vld [vmem:[#allocation5 + $0x218] sm:$0xff]
    %v2285 = vld [vmem:[#allocation5 + $0x220] sm:$0xff]
    %v2286 = vld [vmem:[#allocation5 + $0x228] sm:$0xff]
    %v2287 = vld [vmem:[#allocation5 + $0x230] sm:$0xff]
    %v2288 = vld [vmem:[#allocation5 + $0x238] sm:$0xff]
    %v2289 = vld [vmem:[#allocation5 + $0x240] sm:$0xff]
    %v2290 = vld [vmem:[#allocation5 + $0x248] sm:$0xff]
    %v2291 = vld [vmem:[#allocation5 + $0x250] sm:$0xff]
    %v2292 = vld [vmem:[#allocation5 + $0x258] sm:$0xff]
    %v2293 = vld [vmem:[#allocation5 + $0x260] sm:$0xff]
    %v2294 = vld [vmem:[#allocation5 + $0x268] sm:$0xff]
    %v2295 = vld [vmem:[#allocation5 + $0x270] sm:$0xff]
    %v2296 = vld [vmem:[#allocation5 + $0x278] sm:$0xff]
    %v2297 = vld [vmem:[%s12 + $0x2d] sm:$0x1]
    %v2298 = vlaneseq
    %v2299 = vshrl.u32 %v2298, 7
    %v2300 = vsub.s32 0, %v2299
    %v2301 = vrot.slane %v2297, %v2300
    %2302 = vmatprep.subr.mxu0 0.0
    %2303 = vmatpush1.msra.mxu0 %v2281
    %2304 = vmatprep.subr.mxu0 0.0
    %2305 = vmatpush1.msra.mxu0 %v2282
    %2306 = vmatprep.subr.mxu0 0.0
    %2307 = vmatpush1.msra.mxu0 %v2283
    %2308 = vmatprep.subr.mxu0 0.0
    %2309 = vmatpush1.msra.mxu0 %v2284
    %2310 = vmatprep.subr.mxu0 0.0
    %2311 = vmatpush1.msra.mxu0 %v2285
    %2312 = vmatprep.subr.mxu0 0.0
    %2313 = vmatpush1.msra.mxu0 %v2286
    %2314 = vmatprep.subr.mxu0 0.0
    %2315 = vmatpush1.msra.mxu0 %v2287
    %2316 = vmatprep.subr.mxu0 0.0
    %2317 = vmatpush1.msra.mxu0 %v2288
    %2318 = vmatprep.subr.mxu0 0.0
    %2319 = vmatpush1.msra.mxu0 %v2289
    %2320 = vmatprep.subr.mxu0 0.0
    %2321 = vmatpush1.msra.mxu0 %v2290
    %2322 = vmatprep.subr.mxu0 0.0
    %2323 = vmatpush1.msra.mxu0 %v2291
    %2324 = vmatprep.subr.mxu0 0.0
    %2325 = vmatpush1.msra.mxu0 %v2292
    %2326 = vmatprep.subr.mxu0 0.0
    %2327 = vmatpush1.msra.mxu0 %v2293
    %2328 = vmatprep.subr.mxu0 0.0
    %2329 = vmatpush1.msra.mxu0 %v2294
    %2330 = vmatprep.subr.mxu0 0.0
    %2331 = vmatpush1.msra.mxu0 %v2295
    %2332 = vmatprep.subr.mxu0 0.0
    %2333 = vmatpush1.msra.mxu0 %v2296
    %2334 = vmatprep.subr.mxu0 0.0
    %2335 = vmatpush1.msra.mxu0 0.0
    %2336 = vmatprep.subr.mxu0 0.0
    %2337 = vmatpush1.msra.mxu0 0.0
    %2338 = vmatprep.subr.mxu0 0.0
    %2339 = vmatpush1.msra.mxu0 0.0
    %2340 = vmatprep.subr.mxu0 0.0
    %2341 = vmatpush1.msra.mxu0 0.0
    %2342 = vmatprep.subr.mxu0 0.0
    %2343 = vmatpush1.msra.mxu0 0.0
    %2344 = vmatprep.subr.mxu0 0.0
    %2345 = vmatpush1.msra.mxu0 0.0
    %2346 = vmatprep.subr.mxu0 0.0
    %2347 = vmatpush1.msra.mxu0 0.0
    %2348 = vmatprep.subr.mxu0 0.0
    %2349 = vmatpush1.msra.mxu0 0.0
    %2350 = vmatprep.subr.mxu0 0.0
    %2351 = vmatpush1.msra.mxu0 0.0
    %2352 = vmatprep.subr.mxu0 0.0
    %2353 = vmatpush1.msra.mxu0 0.0
    %2354 = vmatprep.subr.mxu0 0.0
    %2355 = vmatpush1.msra.mxu0 0.0
    %2356 = vmatprep.subr.mxu0 0.0
    %2357 = vmatpush1.msra.mxu0 0.0
    %2358 = vmatprep.subr.mxu0 0.0
    %2359 = vmatpush1.msra.mxu0 0.0
    %2360 = vmatprep.subr.mxu0 0.0
    %2361 = vmatpush1.msra.mxu0 0.0
    %2362 = vmatprep.subr.mxu0 0.0
    %2363 = vmatpush1.msra.mxu0 0.0
    %2364 = vmatprep.subr.mxu0 0.0
    %2365 = vmatpush1.msra.mxu0 0.0
    %2366 = vmatprep.mubr.f32.mxu0 0.0
    %2367 = vmatmul.mubr.f32.gmra.mrb[0].mxu0 %v1710
    %v2368 = vpop.f32.mrb[0].mxu0
    %v2369 = vadd.f32 %v2301, %v2368
    %v2370 = vpop.f32.mrb[0].mxu0
    %2371 = vdwg.mxu0
    %v2372 = vld [vmem:[%s12 + $0x2e] sm:$0x3f]
    %v2373 = vld [vmem:[%s12 + $0x34] sm:$0x3f]
    %v2375 = vsel %vm541, %v2369, 0
    %2377 = vmatprep.subr.mxu0 0.0
    %2378 = vmatpush1.msra.mxu0 %v2375
    %2379 = vmatprep.subr.mxu0 0.0
    %2380 = vmatpush1.msra.mxu0 0.0
    %2381 = vmatprep.subr.mxu0 0.0
    %2382 = vmatpush1.msra.mxu0 0.0
    %2383 = vmatprep.subr.mxu0 0.0
    %2384 = vmatpush1.msra.mxu0 0.0
    %2385 = vmatprep.subr.mxu0 0.0
    %2386 = vmatpush1.msra.mxu0 0.0
    %2387 = vmatprep.subr.mxu0 0.0
    %2388 = vmatpush1.msra.mxu0 0.0
    %2389 = vmatprep.subr.mxu0 0.0
    %2390 = vmatpush1.msra.mxu0 0.0
    %2391 = vmatprep.subr.mxu0 0.0
    %2392 = vmatpush1.msra.mxu0 0.0
    %2393 = vmatprep.subr.mxu0 0.0
    %2394 = vmatpush1.msra.mxu0 0.0
    %2395 = vmatprep.subr.mxu0 0.0
    %2396 = vmatpush1.msra.mxu0 0.0
    %2397 = vmatprep.subr.mxu0 0.0
    %2398 = vmatpush1.msra.mxu0 0.0
    %2399 = vmatprep.subr.mxu0 0.0
    %2400 = vmatpush1.msra.mxu0 0.0
    %2401 = vmatprep.subr.mxu0 0.0
    %2402 = vmatpush1.msra.mxu0 0.0
    %2403 = vmatprep.subr.mxu0 0.0
    %2404 = vmatpush1.msra.mxu0 0.0
    %2405 = vmatprep.subr.mxu0 0.0
    %2406 = vmatpush1.msra.mxu0 0.0
    %2407 = vmatprep.subr.mxu0 0.0
    %2408 = vmatpush1.msra.mxu0 0.0
    %2409 = vmatprep.subr.mxu0 0.0
    %2410 = vmatpush1.msra.mxu0 0.0
    %2411 = vmatprep.subr.mxu0 0.0
    %2412 = vmatpush1.msra.mxu0 0.0
    %2413 = vmatprep.subr.mxu0 0.0
    %2414 = vmatpush1.msra.mxu0 0.0
    %2415 = vmatprep.subr.mxu0 0.0
    %2416 = vmatpush1.msra.mxu0 0.0
    %2417 = vmatprep.subr.mxu0 0.0
    %2418 = vmatpush1.msra.mxu0 0.0
    %2419 = vmatprep.subr.mxu0 0.0
    %2420 = vmatpush1.msra.mxu0 0.0
    %2421 = vmatprep.subr.mxu0 0.0
    %2422 = vmatpush1.msra.mxu0 0.0
    %2423 = vmatprep.subr.mxu0 0.0
    %2424 = vmatpush1.msra.mxu0 0.0
    %2425 = vmatprep.subr.mxu0 0.0
    %2426 = vmatpush1.msra.mxu0 0.0
    %2427 = vmatprep.subr.mxu0 0.0
    %2428 = vmatpush1.msra.mxu0 0.0
    %2429 = vmatprep.subr.mxu0 0.0
    %2430 = vmatpush1.msra.mxu0 0.0
    %2431 = vmatprep.subr.mxu0 0.0
    %2432 = vmatpush1.msra.mxu0 0.0
    %2433 = vmatprep.subr.mxu0 0.0
    %2434 = vmatpush1.msra.mxu0 0.0
    %2435 = vmatprep.subr.mxu0 0.0
    %2436 = vmatpush1.msra.mxu0 0.0
    %2437 = vmatprep.subr.mxu0 0.0
    %2438 = vmatpush1.msra.mxu0 0.0
    %2439 = vmatprep.subr.mxu0 0.0
    %2440 = vmatpush1.msra.mxu0 0.0
    %2441 = vmatprep.mubr.f32.mxu0 0.0
    %2442 = vmatmul.mubr.f32.gmra.mrb[0].mxu0 %v1242
    %v2443 = vpop.f32.mrb[0].mxu0
    %v2444 = vadd.f32 0.0, %v2443
    %v2445 = vpop.f32.mrb[0].mxu0
    %2446 = vdwg.mxu0
    %v2447 = vsub.f32 %v2369, %v2444
    %v2448 = vmul.f32 %v2447, %v2447
    %v2450 = vsel %vm541, %v2448, 0
    %2452 = vmatprep.subr.mxu0 0.0
    %2453 = vmatpush1.msra.mxu0 %v2450
    %2454 = vmatprep.subr.mxu0 0.0
    %2455 = vmatpush1.msra.mxu0 0.0
    %2456 = vmatprep.subr.mxu0 0.0
    %2457 = vmatpush1.msra.mxu0 0.0
    %2458 = vmatprep.subr.mxu0 0.0
    %2459 = vmatpush1.msra.mxu0 0.0
    %2460 = vmatprep.subr.mxu0 0.0
    %2461 = vmatpush1.msra.mxu0 0.0
    %2462 = vmatprep.subr.mxu0 0.0
    %2463 = vmatpush1.msra.mxu0 0.0
    %2464 = vmatprep.subr.mxu0 0.0
    %2465 = vmatpush1.msra.mxu0 0.0
    %2466 = vmatprep.subr.mxu0 0.0
    %2467 = vmatpush1.msra.mxu0 0.0
    %2468 = vmatprep.subr.mxu0 0.0
    %2469 = vmatpush1.msra.mxu0 0.0
    %2470 = vmatprep.subr.mxu0 0.0
    %2471 = vmatpush1.msra.mxu0 0.0
    %2472 = vmatprep.subr.mxu0 0.0
    %2473 = vmatpush1.msra.mxu0 0.0
    %2474 = vmatprep.subr.mxu0 0.0
    %2475 = vmatpush1.msra.mxu0 0.0
    %2476 = vmatprep.subr.mxu0 0.0
    %2477 = vmatpush1.msra.mxu0 0.0
    %2478 = vmatprep.subr.mxu0 0.0
    %2479 = vmatpush1.msra.mxu0 0.0
    %2480 = vmatprep.subr.mxu0 0.0
    %2481 = vmatpush1.msra.mxu0 0.0
    %2482 = vmatprep.subr.mxu0 0.0
    %2483 = vmatpush1.msra.mxu0 0.0
    %2484 = vmatprep.subr.mxu0 0.0
    %2485 = vmatpush1.msra.mxu0 0.0
    %2486 = vmatprep.subr.mxu0 0.0
    %2487 = vmatpush1.msra.mxu0 0.0
    %2488 = vmatprep.subr.mxu0 0.0
    %2489 = vmatpush1.msra.mxu0 0.0
    %2490 = vmatprep.subr.mxu0 0.0
    %2491 = vmatpush1.msra.mxu0 0.0
    %2492 = vmatprep.subr.mxu0 0.0
    %2493 = vmatpush1.msra.mxu0 0.0
    %2494 = vmatprep.subr.mxu0 0.0
    %2495 = vmatpush1.msra.mxu0 0.0
    %2496 = vmatprep.subr.mxu0 0.0
    %2497 = vmatpush1.msra.mxu0 0.0
    %2498 = vmatprep.subr.mxu0 0.0
    %2499 = vmatpush1.msra.mxu0 0.0
    %2500 = vmatprep.subr.mxu0 0.0
    %2501 = vmatpush1.msra.mxu0 0.0
    %2502 = vmatprep.subr.mxu0 0.0
    %2503 = vmatpush1.msra.mxu0 0.0
    %2504 = vmatprep.subr.mxu0 0.0
    %2505 = vmatpush1.msra.mxu0 0.0
    %2506 = vmatprep.subr.mxu0 0.0
    %2507 = vmatpush1.msra.mxu0 0.0
    %2508 = vmatprep.subr.mxu0 0.0
    %2509 = vmatpush1.msra.mxu0 0.0
    %2510 = vmatprep.subr.mxu0 0.0
    %2511 = vmatpush1.msra.mxu0 0.0
    %2512 = vmatprep.subr.mxu0 0.0
    %2513 = vmatpush1.msra.mxu0 0.0
    %2514 = vmatprep.subr.mxu0 0.0
    %2515 = vmatpush1.msra.mxu0 0.0
    %2516 = vmatprep.mubr.f32.mxu0 0.0
    %2517 = vmatmul.mubr.f32.gmra.mrb[0].mxu0 %v1242
    %v2518 = vpop.f32.mrb[0].mxu0
    %v2519 = vadd.f32 1e-05, %v2518
    %v2520 = vpop.f32.mrb[0].mxu0
    %2521 = vdwg.mxu0
    %v2522 = vrsqrt.pop %v2519
    %v2523 = vmul.f32 %v2447, %v2522
    %v2524 = vmul.f32 %v2523, %v2372
    %v2525 = vadd.f32 %v2524, %v2373
    %v2526 = vmax.f32 %v2525, 0.0
    %v2527 = vld [vmem:[#allocation7 + $0x200] sm:$0xff]
    %v2528 = vld [vmem:[#allocation7 + $0x208] sm:$0xff]
    %v2529 = vld [vmem:[#allocation7 + $0x210] sm:$0xff]
    %v2530 = vld [vmem:[#allocation7 + $0x218] sm:$0xff]
    %v2531 = vld [vmem:[#allocation7 + $0x220] sm:$0xff]
    %v2532 = vld [vmem:[#allocation7 + $0x228] sm:$0xff]
    %v2533 = vld [vmem:[#allocation7 + $0x230] sm:$0xff]
    %v2534 = vld [vmem:[#allocation7 + $0x238] sm:$0xff]
    %v2535 = vld [vmem:[#allocation7 + $0x240] sm:$0xff]
    %v2536 = vld [vmem:[#allocation7 + $0x248] sm:$0xff]
    %v2537 = vld [vmem:[#allocation7 + $0x250] sm:$0xff]
    %v2538 = vld [vmem:[#allocation7 + $0x258] sm:$0xff]
    %v2539 = vld [vmem:[#allocation7 + $0x260] sm:$0xff]
    %v2540 = vld [vmem:[#allocation7 + $0x268] sm:$0xff]
    %v2541 = vld [vmem:[#allocation7 + $0x270] sm:$0xff]
    %v2542 = vld [vmem:[#allocation7 + $0x278] sm:$0xff]
    %v2543 = vld [vmem:[%s12 + $0x3a] sm:$0x1]
    %v2544 = vlaneseq
    %v2545 = vshrl.u32 %v2544, 7
    %v2546 = vsub.s32 0, %v2545
    %v2547 = vrot.slane %v2543, %v2546
    %2548 = vmatprep.subr.mxu0 0.0
    %2549 = vmatpush1.msra.mxu0 %v2527
    %2550 = vmatprep.subr.mxu0 0.0
    %2551 = vmatpush1.msra.mxu0 %v2528
    %2552 = vmatprep.subr.mxu0 0.0
    %2553 = vmatpush1.msra.mxu0 %v2529
    %2554 = vmatprep.subr.mxu0 0.0
    %2555 = vmatpush1.msra.mxu0 %v2530
    %2556 = vmatprep.subr.mxu0 0.0
    %2557 = vmatpush1.msra.mxu0 %v2531
    %2558 = vmatprep.subr.mxu0 0.0
    %2559 = vmatpush1.msra.mxu0 %v2532
    %2560 = vmatprep.subr.mxu0 0.0
    %2561 = vmatpush1.msra.mxu0 %v2533
    %2562 = vmatprep.subr.mxu0 0.0
    %2563 = vmatpush1.msra.mxu0 %v2534
    %2564 = vmatprep.subr.mxu0 0.0
    %2565 = vmatpush1.msra.mxu0 %v2535
    %2566 = vmatprep.subr.mxu0 0.0
    %2567 = vmatpush1.msra.mxu0 %v2536
    %2568 = vmatprep.subr.mxu0 0.0
    %2569 = vmatpush1.msra.mxu0 %v2537
    %2570 = vmatprep.subr.mxu0 0.0
    %2571 = vmatpush1.msra.mxu0 %v2538
    %2572 = vmatprep.subr.mxu0 0.0
    %2573 = vmatpush1.msra.mxu0 %v2539
    %2574 = vmatprep.subr.mxu0 0.0
    %2575 = vmatpush1.msra.mxu0 %v2540
    %2576 = vmatprep.subr.mxu0 0.0
    %2577 = vmatpush1.msra.mxu0 %v2541
    %2578 = vmatprep.subr.mxu0 0.0
    %2579 = vmatpush1.msra.mxu0 %v2542
    %2580 = vmatprep.subr.mxu0 0.0
    %2581 = vmatpush1.msra.mxu0 0.0
    %2582 = vmatprep.subr.mxu0 0.0
    %2583 = vmatpush1.msra.mxu0 0.0
    %2584 = vmatprep.subr.mxu0 0.0
    %2585 = vmatpush1.msra.mxu0 0.0
    %2586 = vmatprep.subr.mxu0 0.0
    %2587 = vmatpush1.msra.mxu0 0.0
    %2588 = vmatprep.subr.mxu0 0.0
    %2589 = vmatpush1.msra.mxu0 0.0
    %2590 = vmatprep.subr.mxu0 0.0
    %2591 = vmatpush1.msra.mxu0 0.0
    %2592 = vmatprep.subr.mxu0 0.0
    %2593 = vmatpush1.msra.mxu0 0.0
    %2594 = vmatprep.subr.mxu0 0.0
    %2595 = vmatpush1.msra.mxu0 0.0
    %2596 = vmatprep.subr.mxu0 0.0
    %2597 = vmatpush1.msra.mxu0 0.0
    %2598 = vmatprep.subr.mxu0 0.0
    %2599 = vmatpush1.msra.mxu0 0.0
    %2600 = vmatprep.subr.mxu0 0.0
    %2601 = vmatpush1.msra.mxu0 0.0
    %2602 = vmatprep.subr.mxu0 0.0
    %2603 = vmatpush1.msra.mxu0 0.0
    %2604 = vmatprep.subr.mxu0 0.0
    %2605 = vmatpush1.msra.mxu0 0.0
    %2606 = vmatprep.subr.mxu0 0.0
    %2607 = vmatpush1.msra.mxu0 0.0
    %2608 = vmatprep.subr.mxu0 0.0
    %2609 = vmatpush1.msra.mxu0 0.0
    %2610 = vmatprep.subr.mxu0 0.0
    %2611 = vmatpush1.msra.mxu0 0.0
    %2612 = vmatprep.mubr.f32.mxu0 0.0
    %2613 = vmatmul.mubr.f32.gmra.mrb[0].mxu0 %v2526
    %v2614 = vpop.f32.mrb[0].mxu0
    %v2615 = vadd.f32 %v2547, %v2614
    %v2616 = vpop.f32.mrb[0].mxu0
    %2617 = vdwg.mxu0
    %v2618 = vld [vmem:[%s12 + $0x3b] sm:$0x3f]
    %v2619 = vld [vmem:[%s12 + $0x41] sm:$0x3f]
    %v2621 = vsel %vm541, %v2615, 0
    %2623 = vmatprep.subr.mxu0 0.0
    %2624 = vmatpush1.msra.mxu0 %v2621
    %2625 = vmatprep.subr.mxu0 0.0
    %2626 = vmatpush1.msra.mxu0 0.0
    %2627 = vmatprep.subr.mxu0 0.0
    %2628 = vmatpush1.msra.mxu0 0.0
    %2629 = vmatprep.subr.mxu0 0.0
    %2630 = vmatpush1.msra.mxu0 0.0
    %2631 = vmatprep.subr.mxu0 0.0
    %2632 = vmatpush1.msra.mxu0 0.0
    %2633 = vmatprep.subr.mxu0 0.0
    %2634 = vmatpush1.msra.mxu0 0.0
    %2635 = vmatprep.subr.mxu0 0.0
    %2636 = vmatpush1.msra.mxu0 0.0
    %2637 = vmatprep.subr.mxu0 0.0
    %2638 = vmatpush1.msra.mxu0 0.0
    %2639 = vmatprep.subr.mxu0 0.0
    %2640 = vmatpush1.msra.mxu0 0.0
    %2641 = vmatprep.subr.mxu0 0.0
    %2642 = vmatpush1.msra.mxu0 0.0
    %2643 = vmatprep.subr.mxu0 0.0
    %2644 = vmatpush1.msra.mxu0 0.0
    %2645 = vmatprep.subr.mxu0 0.0
    %2646 = vmatpush1.msra.mxu0 0.0
    %2647 = vmatprep.subr.mxu0 0.0
    %2648 = vmatpush1.msra.mxu0 0.0
    %2649 = vmatprep.subr.mxu0 0.0
    %2650 = vmatpush1.msra.mxu0 0.0
    %2651 = vmatprep.subr.mxu0 0.0
    %2652 = vmatpush1.msra.mxu0 0.0
    %2653 = vmatprep.subr.mxu0 0.0
    %2654 = vmatpush1.msra.mxu0 0.0
    %2655 = vmatprep.subr.mxu0 0.0
    %2656 = vmatpush1.msra.mxu0 0.0
    %2657 = vmatprep.subr.mxu0 0.0
    %2658 = vmatpush1.msra.mxu0 0.0
    %2659 = vmatprep.subr.mxu0 0.0
    %2660 = vmatpush1.msra.mxu0 0.0
    %2661 = vmatprep.subr.mxu0 0.0
    %2662 = vmatpush1.msra.mxu0 0.0
    %2663 = vmatprep.subr.mxu0 0.0
    %2664 = vmatpush1.msra.mxu0 0.0
    %2665 = vmatprep.subr.mxu0 0.0
    %2666 = vmatpush1.msra.mxu0 0.0
    %2667 = vmatprep.subr.mxu0 0.0
    %2668 = vmatpush1.msra.mxu0 0.0
    %2669 = vmatprep.subr.mxu0 0.0
    %2670 = vmatpush1.msra.mxu0 0.0
    %2671 = vmatprep.subr.mxu0 0.0
    %2672 = vmatpush1.msra.mxu0 0.0
    %2673 = vmatprep.subr.mxu0 0.0
    %2674 = vmatpush1.msra.mxu0 0.0
    %2675 = vmatprep.subr.mxu0 0.0
    %2676 = vmatpush1.msra.mxu0 0.0
    %2677 = vmatprep.subr.mxu0 0.0
    %2678 = vmatpush1.msra.mxu0 0.0
    %2679 = vmatprep.subr.mxu0 0.0
    %2680 = vmatpush1.msra.mxu0 0.0
    %2681 = vmatprep.subr.mxu0 0.0
    %2682 = vmatpush1.msra.mxu0 0.0
    %2683 = vmatprep.subr.mxu0 0.0
    %2684 = vmatpush1.msra.mxu0 0.0
    %2685 = vmatprep.subr.mxu0 0.0
    %2686 = vmatpush1.msra.mxu0 0.0
    %2687 = vmatprep.mubr.f32.mxu0 0.0
    %2688 = vmatmul.mubr.f32.gmra.mrb[0].mxu0 %v1242
    %v2689 = vpop.f32.mrb[0].mxu0
    %v2690 = vadd.f32 0.0, %v2689
    %v2691 = vpop.f32.mrb[0].mxu0
    %2692 = vdwg.mxu0
    %v2693 = vsub.f32 %v2615, %v2690
    %v2694 = vmul.f32 %v2693, %v2693
    %v2696 = vsel %vm541, %v2694, 0
    %2698 = vmatprep.subr.mxu0 0.0
    %2699 = vmatpush1.msra.mxu0 %v2696
    %2700 = vmatprep.subr.mxu0 0.0
    %2701 = vmatpush1.msra.mxu0 0.0
    %2702 = vmatprep.subr.mxu0 0.0
    %2703 = vmatpush1.msra.mxu0 0.0
    %2704 = vmatprep.subr.mxu0 0.0
    %2705 = vmatpush1.msra.mxu0 0.0
    %2706 = vmatprep.subr.mxu0 0.0
    %2707 = vmatpush1.msra.mxu0 0.0
    %2708 = vmatprep.subr.mxu0 0.0
    %2709 = vmatpush1.msra.mxu0 0.0
    %2710 = vmatprep.subr.mxu0 0.0
    %2711 = vmatpush1.msra.mxu0 0.0
    %2712 = vmatprep.subr.mxu0 0.0
    %2713 = vmatpush1.msra.mxu0 0.0
    %2714 = vmatprep.subr.mxu0 0.0
    %2715 = vmatpush1.msra.mxu0 0.0
    %2716 = vmatprep.subr.mxu0 0.0
    %2717 = vmatpush1.msra.mxu0 0.0
    %2718 = vmatprep.subr.mxu0 0.0
    %2719 = vmatpush1.msra.mxu0 0.0
    %2720 = vmatprep.subr.mxu0 0.0
    %2721 = vmatpush1.msra.mxu0 0.0
    %2722 = vmatprep.subr.mxu0 0.0
    %2723 = vmatpush1.msra.mxu0 0.0
    %2724 = vmatprep.subr.mxu0 0.0
    %2725 = vmatpush1.msra.mxu0 0.0
    %2726 = vmatprep.subr.mxu0 0.0
    %2727 = vmatpush1.msra.mxu0 0.0
    %2728 = vmatprep.subr.mxu0 0.0
    %2729 = vmatpush1.msra.mxu0 0.0
    %2730 = vmatprep.subr.mxu0 0.0
    %2731 = vmatpush1.msra.mxu0 0.0
    %2732 = vmatprep.subr.mxu0 0.0
    %2733 = vmatpush1.msra.mxu0 0.0
    %2734 = vmatprep.subr.mxu0 0.0
    %2735 = vmatpush1.msra.mxu0 0.0
    %2736 = vmatprep.subr.mxu0 0.0
    %2737 = vmatpush1.msra.mxu0 0.0
    %2738 = vmatprep.subr.mxu0 0.0
    %2739 = vmatpush1.msra.mxu0 0.0
    %2740 = vmatprep.subr.mxu0 0.0
    %2741 = vmatpush1.msra.mxu0 0.0
    %2742 = vmatprep.subr.mxu0 0.0
    %2743 = vmatpush1.msra.mxu0 0.0
    %2744 = vmatprep.subr.mxu0 0.0
    %2745 = vmatpush1.msra.mxu0 0.0
    %2746 = vmatprep.subr.mxu0 0.0
    %2747 = vmatpush1.msra.mxu0 0.0
    %2748 = vmatprep.subr.mxu0 0.0
    %2749 = vmatpush1.msra.mxu0 0.0
    %2750 = vmatprep.subr.mxu0 0.0
    %2751 = vmatpush1.msra.mxu0 0.0
    %2752 = vmatprep.subr.mxu0 0.0
    %2753 = vmatpush1.msra.mxu0 0.0
    %2754 = vmatprep.subr.mxu0 0.0
    %2755 = vmatpush1.msra.mxu0 0.0
    %2756 = vmatprep.subr.mxu0 0.0
    %2757 = vmatpush1.msra.mxu0 0.0
    %2758 = vmatprep.subr.mxu0 0.0
    %2759 = vmatpush1.msra.mxu0 0.0
    %2760 = vmatprep.subr.mxu0 0.0
    %2761 = vmatpush1.msra.mxu0 0.0
    %2762 = vmatprep.mubr.f32.mxu0 0.0
    %2763 = vmatmul.mubr.f32.gmra.mrb[0].mxu0 %v1242
    %v2764 = vpop.f32.mrb[0].mxu0
    %v2765 = vadd.f32 1e-05, %v2764
    %v2766 = vpop.f32.mrb[0].mxu0
    %2767 = vdwg.mxu0
    %v2768 = vrsqrt.pop %v2765
    %v2769 = vmul.f32 %v2693, %v2768
    %v2770 = vmul.f32 %v2769, %v2618
    %v2771 = vadd.f32 %v2770, %v2619
    %v2772 = vmax.f32 %v2771, 0.0
    %v2774 = vsel %vm541, %v2772, 0
    %2776 = vmatprep.subr.mxu0 0.0
    %2777 = vmatpush1.msra.mxu0 %v2774
    %2778 = vmatprep.subr.mxu0 0.0
    %2779 = vmatpush1.msra.mxu0 0.0
    %2780 = vmatprep.subr.mxu0 0.0
    %2781 = vmatpush1.msra.mxu0 0.0
    %2782 = vmatprep.subr.mxu0 0.0
    %2783 = vmatpush1.msra.mxu0 0.0
    %2784 = vmatprep.subr.mxu0 0.0
    %2785 = vmatpush1.msra.mxu0 0.0
    %2786 = vmatprep.subr.mxu0 0.0
    %2787 = vmatpush1.msra.mxu0 0.0
    %2788 = vmatprep.subr.mxu0 0.0
    %2789 = vmatpush1.msra.mxu0 0.0
    %2790 = vmatprep.subr.mxu0 0.0
    %2791 = vmatpush1.msra.mxu0 0.0
    %2792 = vmatprep.subr.mxu0 0.0
    %2793 = vmatpush1.msra.mxu0 0.0
    %2794 = vmatprep.subr.mxu0 0.0
    %2795 = vmatpush1.msra.mxu0 0.0
    %2796 = vmatprep.subr.mxu0 0.0
    %2797 = vmatpush1.msra.mxu0 0.0
    %2798 = vmatprep.subr.mxu0 0.0
    %2799 = vmatpush1.msra.mxu0 0.0
    %2800 = vmatprep.subr.mxu0 0.0
    %2801 = vmatpush1.msra.mxu0 0.0
    %2802 = vmatprep.subr.mxu0 0.0
    %2803 = vmatpush1.msra.mxu0 0.0
    %2804 = vmatprep.subr.mxu0 0.0
    %2805 = vmatpush1.msra.mxu0 0.0
    %2806 = vmatprep.subr.mxu0 0.0
    %2807 = vmatpush1.msra.mxu0 0.0
    %2808 = vmatprep.subr.mxu0 0.0
    %2809 = vmatpush1.msra.mxu0 0.0
    %2810 = vmatprep.subr.mxu0 0.0
    %2811 = vmatpush1.msra.mxu0 0.0
    %2812 = vmatprep.subr.mxu0 0.0
    %2813 = vmatpush1.msra.mxu0 0.0
    %2814 = vmatprep.subr.mxu0 0.0
    %2815 = vmatpush1.msra.mxu0 0.0
    %2816 = vmatprep.subr.mxu0 0.0
    %2817 = vmatpush1.msra.mxu0 0.0
    %2818 = vmatprep.subr.mxu0 0.0
    %2819 = vmatpush1.msra.mxu0 0.0
    %2820 = vmatprep.subr.mxu0 0.0
    %2821 = vmatpush1.msra.mxu0 0.0
    %2822 = vmatprep.subr.mxu0 0.0
    %2823 = vmatpush1.msra.mxu0 0.0
    %2824 = vmatprep.subr.mxu0 0.0
    %2825 = vmatpush1.msra.mxu0 0.0
    %2826 = vmatprep.subr.mxu0 0.0
    %2827 = vmatpush1.msra.mxu0 0.0
    %2828 = vmatprep.subr.mxu0 0.0
    %2829 = vmatpush1.msra.mxu0 0.0
    %2830 = vmatprep.subr.mxu0 0.0
    %2831 = vmatpush1.msra.mxu0 0.0
    %2832 = vmatprep.subr.mxu0 0.0
    %2833 = vmatpush1.msra.mxu0 0.0
    %2834 = vmatprep.subr.mxu0 0.0
    %2835 = vmatpush1.msra.mxu0 0.0
    %2836 = vmatprep.subr.mxu0 0.0
    %2837 = vmatpush1.msra.mxu0 0.0
    %2838 = vmatprep.subr.mxu0 0.0
    %2839 = vmatpush1.msra.mxu0 0.0
    %2840 = vmatprep.mubr.f32.mxu0 0.0
    %2841 = vmatmul.mubr.f32.gmra.mrb[0].mxu0 %v533
    %v2842 = vpop.f32.mrb[0].mxu0
    %v2843 = vadd.f32 0.0, %v2842
    %v2844 = vpop.f32.mrb[0].mxu0
    %2845 = vmatprep.mubr.f32.mxu0 0.0
    %2846 = vmatmul.mubr.f32.gmra.mrb[0].mxu0 %v536
    %v2847 = vpop.f32.mrb[0].mxu0
    %v2848 = vadd.f32 0.0, %v2847
    %v2849 = vpop.f32.mrb[0].mxu0
    %2850 = vmatprep.mubr.f32.mxu0 0.0
    %2851 = vmatmul.mubr.f32.gmra.mrb[0].mxu0 %v539
    %v2852 = vpop.f32.mrb[0].mxu0
    %v2853 = vadd.f32 0.0, %v2852
    %v2854 = vpop.f32.mrb[0].mxu0
    %2855 = vdwg.mxu0
    %v2856 = vadd.f32 %v2278, %v2843
    %v2857 = vadd.f32 %v2279, %v2848
    %v2858 = vadd.f32 %v2280, %v2853
    %2859 = vmatprep.subr.mxu0 0.0
    %2860 = vmatpush1.msra.mxu0 %v2856
    %2861 = vmatprep.subr.mxu0 0.0
    %2862 = vmatpush1.msra.mxu0 %v2857
    %2863 = vmatprep.subr.mxu0 0.0
    %2864 = vmatpush1.msra.mxu0 %v2858
    %2865 = vmatprep.subr.mxu0 0.0
    %2866 = vmatpush1.msra.mxu0 0.0
    %2867 = vmatprep.subr.mxu0 0.0
    %2868 = vmatpush1.msra.mxu0 0.0
    %2869 = vmatprep.subr.mxu0 0.0
    %2870 = vmatpush1.msra.mxu0 0.0
    %2871 = vmatprep.subr.mxu0 0.0
    %2872 = vmatpush1.msra.mxu0 0.0
    %2873 = vmatprep.subr.mxu0 0.0
    %2874 = vmatpush1.msra.mxu0 0.0
    %2875 = vmatprep.subr.mxu0 0.0
    %2876 = vmatpush1.msra.mxu0 0.0
    %2877 = vmatprep.subr.mxu0 0.0
    %2878 = vmatpush1.msra.mxu0 0.0
    %2879 = vmatprep.subr.mxu0 0.0
    %2880 = vmatpush1.msra.mxu0 0.0
    %2881 = vmatprep.subr.mxu0 0.0
    %2882 = vmatpush1.msra.mxu0 0.0
    %2883 = vmatprep.subr.mxu0 0.0
    %2884 = vmatpush1.msra.mxu0 0.0
    %2885 = vmatprep.subr.mxu0 0.0
    %2886 = vmatpush1.msra.mxu0 0.0
    %2887 = vmatprep.subr.mxu0 0.0
    %2888 = vmatpush1.msra.mxu0 0.0
    %2889 = vmatprep.subr.mxu0 0.0
    %2890 = vmatpush1.msra.mxu0 0.0
    %2891 = vmatprep.subr.mxu0 0.0
    %2892 = vmatpush1.msra.mxu0 0.0
    %2893 = vmatprep.subr.mxu0 0.0
    %2894 = vmatpush1.msra.mxu0 0.0
    %2895 = vmatprep.subr.mxu0 0.0
    %2896 = vmatpush1.msra.mxu0 0.0
    %2897 = vmatprep.subr.mxu0 0.0
    %2898 = vmatpush1.msra.mxu0 0.0
    %2899 = vmatprep.subr.mxu0 0.0
    %2900 = vmatpush1.msra.mxu0 0.0
    %2901 = vmatprep.subr.mxu0 0.0
    %2902 = vmatpush1.msra.mxu0 0.0
    %2903 = vmatprep.subr.mxu0 0.0
    %2904 = vmatpush1.msra.mxu0 0.0
    %2905 = vmatprep.subr.mxu0 0.0
    %2906 = vmatpush1.msra.mxu0 0.0
    %2907 = vmatprep.subr.mxu0 0.0
    %2908 = vmatpush1.msra.mxu0 0.0
    %2909 = vmatprep.subr.mxu0 0.0
    %2910 = vmatpush1.msra.mxu0 0.0
    %2911 = vmatprep.subr.mxu0 0.0
    %2912 = vmatpush1.msra.mxu0 0.0
    %2913 = vmatprep.subr.mxu0 0.0
    %2914 = vmatpush1.msra.mxu0 0.0
    %2915 = vmatprep.subr.mxu0 0.0
    %2916 = vmatpush1.msra.mxu0 0.0
    %2917 = vmatprep.subr.mxu0 0.0
    %2918 = vmatpush1.msra.mxu0 0.0
    %2919 = vmatprep.subr.mxu0 0.0
    %2920 = vmatpush1.msra.mxu0 0.0
    %2921 = vmatprep.subr.mxu0 0.0
    %2922 = vmatpush1.msra.mxu0 0.0
    %2923 = vmatprep.mubr.f32.mxu0 0.0
    %2924 = vmatmul.mubr.f32.gmra.mrb[0].mxu0 %v635
    %v2925 = vpop.f32.mrb[0].mxu0
    %v2926 = vadd.f32 %v328, %v2925
    %v2927 = vpop.f32.mrb[0].mxu0
    %2928 = vmatprep.mubr.f32.mxu0 0.0
    %2929 = vmatmul.mubr.f32.gmra.mrb[0].mxu0 %v638
    %v2930 = vpop.f32.mrb[0].mxu0
    %v2931 = vadd.f32 %v333, %v2930
    %v2932 = vpop.f32.mrb[0].mxu0
    %2933 = vmatprep.mubr.f32.mxu0 0.0
    %2934 = vmatmul.mubr.f32.gmra.mrb[0].mxu0 %v641
    %v2935 = vpop.f32.mrb[0].mxu0
    %v2936 = vadd.f32 %v338, %v2935
    %v2937 = vpop.f32.mrb[0].mxu0
    %2938 = vmatprep.mubr.f32.mxu0 0.0
    %2939 = vmatmul.mubr.f32.gmra.mrb[0].mxu0 %v644
    %v2940 = vpop.f32.mrb[0].mxu0
    %v2941 = vadd.f32 %v343, %v2940
    %v2942 = vpop.f32.mrb[0].mxu0
    %2943 = vmatprep.mubr.f32.mxu0 0.0
    %2944 = vmatmul.mubr.f32.gmra.mrb[0].mxu0 %v647
    %v2945 = vpop.f32.mrb[0].mxu0
    %v2946 = vadd.f32 %v348, %v2945
    %v2947 = vpop.f32.mrb[0].mxu0
    %2948 = vmatprep.mubr.f32.mxu0 0.0
    %2949 = vmatmul.mubr.f32.gmra.mrb[0].mxu0 %v650
    %v2950 = vpop.f32.mrb[0].mxu0
    %v2951 = vadd.f32 %v353, %v2950
    %v2952 = vpop.f32.mrb[0].mxu0
    %2953 = vdwg.mxu0
    %v2954 = vmax.f32 %v2926, 0.0
    %v2955 = vmax.f32 %v2931, 0.0
    %v2956 = vmax.f32 %v2936, 0.0
    %v2957 = vmax.f32 %v2941, 0.0
    %v2958 = vmax.f32 %v2946, 0.0
    %v2959 = vmax.f32 %v2951, 0.0
    %2960 = vmatprep.subr.mxu0 0.0
    %2961 = vmatpush1.msra.mxu0 %v2954
    %2962 = vmatprep.subr.mxu0 0.0
    %2963 = vmatpush1.msra.mxu0 %v2955
    %2964 = vmatprep.subr.mxu0 0.0
    %2965 = vmatpush1.msra.mxu0 %v2956
    %2966 = vmatprep.subr.mxu0 0.0
    %2967 = vmatpush1.msra.mxu0 %v2957
    %2968 = vmatprep.subr.mxu0 0.0
    %2969 = vmatpush1.msra.mxu0 %v2958
    %2970 = vmatprep.subr.mxu0 0.0
    %2971 = vmatpush1.msra.mxu0 %v2959
    %2972 = vmatprep.subr.mxu0 0.0
    %2973 = vmatpush1.msra.mxu0 0.0
    %2974 = vmatprep.subr.mxu0 0.0
    %2975 = vmatpush1.msra.mxu0 0.0
    %2976 = vmatprep.subr.mxu0 0.0
    %2977 = vmatpush1.msra.mxu0 0.0
    %2978 = vmatprep.subr.mxu0 0.0
    %2979 = vmatpush1.msra.mxu0 0.0
    %2980 = vmatprep.subr.mxu0 0.0
    %2981 = vmatpush1.msra.mxu0 0.0
    %2982 = vmatprep.subr.mxu0 0.0
    %2983 = vmatpush1.msra.mxu0 0.0
    %2984 = vmatprep.subr.mxu0 0.0
    %2985 = vmatpush1.msra.mxu0 0.0
    %2986 = vmatprep.subr.mxu0 0.0
    %2987 = vmatpush1.msra.mxu0 0.0
    %2988 = vmatprep.subr.mxu0 0.0
    %2989 = vmatpush1.msra.mxu0 0.0
    %2990 = vmatprep.subr.mxu0 0.0
    %2991 = vmatpush1.msra.mxu0 0.0
    %2992 = vmatprep.subr.mxu0 0.0
    %2993 = vmatpush1.msra.mxu0 0.0
    %2994 = vmatprep.subr.mxu0 0.0
    %2995 = vmatpush1.msra.mxu0 0.0
    %2996 = vmatprep.subr.mxu0 0.0
    %2997 = vmatpush1.msra.mxu0 0.0
    %2998 = vmatprep.subr.mxu0 0.0
    %2999 = vmatpush1.msra.mxu0 0.0
    %3000 = vmatprep.subr.mxu0 0.0
    %3001 = vmatpush1.msra.mxu0 0.0
    %3002 = vmatprep.subr.mxu0 0.0
    %3003 = vmatpush1.msra.mxu0 0.0
    %3004 = vmatprep.subr.mxu0 0.0
    %3005 = vmatpush1.msra.mxu0 0.0
    %3006 = vmatprep.subr.mxu0 0.0
    %3007 = vmatpush1.msra.mxu0 0.0
    %3008 = vmatprep.subr.mxu0 0.0
    %3009 = vmatpush1.msra.mxu0 0.0
    %3010 = vmatprep.subr.mxu0 0.0
    %3011 = vmatpush1.msra.mxu0 0.0
    %3012 = vmatprep.subr.mxu0 0.0
    %3013 = vmatpush1.msra.mxu0 0.0
    %3014 = vmatprep.subr.mxu0 0.0
    %3015 = vmatpush1.msra.mxu0 0.0
    %3016 = vmatprep.subr.mxu0 0.0
    %3017 = vmatpush1.msra.mxu0 0.0
    %3018 = vmatprep.subr.mxu0 0.0
    %3019 = vmatpush1.msra.mxu0 0.0
    %3020 = vmatprep.subr.mxu0 0.0
    %3021 = vmatpush1.msra.mxu0 0.0
    %3022 = vmatprep.subr.mxu0 0.0
    %3023 = vmatpush1.msra.mxu0 0.0
    %3024 = vmatprep.mubr.f32.mxu0 0.0
    %3025 = vmatmul.mubr.f32.gmra.mrb[0].mxu0 %v758
    %v3026 = vpop.f32.mrb[0].mxu0
    %v3027 = vadd.f32 0.0, %v3026
    %v3028 = vpop.f32.mrb[0].mxu0
    %3029 = vmatprep.mubr.f32.mxu0 0.0
    %3030 = vmatmul.mubr.f32.gmra.mrb[0].mxu0 %v761
    %v3031 = vpop.f32.mrb[0].mxu0
    %v3032 = vadd.f32 0.0, %v3031
    %v3033 = vpop.f32.mrb[0].mxu0
    %3034 = vmatprep.mubr.f32.mxu0 0.0
    %3035 = vmatmul.mubr.f32.gmra.mrb[0].mxu0 %v764
    %v3036 = vpop.f32.mrb[0].mxu0
    %v3037 = vadd.f32 0.0, %v3036
    %v3038 = vpop.f32.mrb[0].mxu0
    %3039 = vdwg.mxu0
    %v3040 = vld [vmem:[#allocation5 + $0x100] sm:$0xff]
    %v3041 = vld [vmem:[#allocation5 + $0x108] sm:$0xff]
    %v3042 = vld [vmem:[#allocation5 + $0x110] sm:$0xff]
    %v3043 = vld [vmem:[#allocation5 + $0x118] sm:$0xff]
    %v3044 = vld [vmem:[#allocation5 + $0x120] sm:$0xff]
    %v3045 = vld [vmem:[#allocation5 + $0x128] sm:$0xff]
    %v3046 = vld [vmem:[#allocation5 + $0x130] sm:$0xff]
    %v3047 = vld [vmem:[#allocation5 + $0x138] sm:$0xff]
    %v3048 = vld [vmem:[#allocation5 + $0x140] sm:$0xff]
    %v3049 = vld [vmem:[#allocation5 + $0x148] sm:$0xff]
    %v3050 = vld [vmem:[#allocation5 + $0x150] sm:$0xff]
    %v3051 = vld [vmem:[#allocation5 + $0x158] sm:$0xff]
    %v3052 = vld [vmem:[#allocation5 + $0x160] sm:$0xff]
    %v3053 = vld [vmem:[#allocation5 + $0x168] sm:$0xff]
    %v3054 = vld [vmem:[#allocation5 + $0x170] sm:$0xff]
    %v3055 = vld [vmem:[#allocation5 + $0x178] sm:$0xff]
    %v3056 = vadd.f32 %v2856, %v3027
    %v3057 = vadd.f32 %v2857, %v3032
    %v3058 = vadd.f32 %v2858, %v3037
    %v3059 = vld [vmem:[%s12 + $0xd] sm:$0x1]
    %v3060 = vlaneseq
    %v3061 = vshrl.u32 %v3060, 7
    %v3062 = vsub.s32 0, %v3061
    %v3063 = vrot.slane %v3059, %v3062
    %3064 = vmatprep.subr.mxu0 0.0
    %3065 = vmatpush1.msra.mxu0 %v3040
    %3066 = vmatprep.subr.mxu0 0.0
    %3067 = vmatpush1.msra.mxu0 %v3041
    %3068 = vmatprep.subr.mxu0 0.0
    %3069 = vmatpush1.msra.mxu0 %v3042
    %3070 = vmatprep.subr.mxu0 0.0
    %3071 = vmatpush1.msra.mxu0 %v3043
    %3072 = vmatprep.subr.mxu0 0.0
    %3073 = vmatpush1.msra.mxu0 %v3044
    %3074 = vmatprep.subr.mxu0 0.0
    %3075 = vmatpush1.msra.mxu0 %v3045
    %3076 = vmatprep.subr.mxu0 0.0
    %3077 = vmatpush1.msra.mxu0 %v3046
    %3078 = vmatprep.subr.mxu0 0.0
    %3079 = vmatpush1.msra.mxu0 %v3047
    %3080 = vmatprep.subr.mxu0 0.0
    %3081 = vmatpush1.msra.mxu0 %v3048
    %3082 = vmatprep.subr.mxu0 0.0
    %3083 = vmatpush1.msra.mxu0 %v3049
    %3084 = vmatprep.subr.mxu0 0.0
    %3085 = vmatpush1.msra.mxu0 %v3050
    %3086 = vmatprep.subr.mxu0 0.0
    %3087 = vmatpush1.msra.mxu0 %v3051
    %3088 = vmatprep.subr.mxu0 0.0
    %3089 = vmatpush1.msra.mxu0 %v3052
    %3090 = vmatprep.subr.mxu0 0.0
    %3091 = vmatpush1.msra.mxu0 %v3053
    %3092 = vmatprep.subr.mxu0 0.0
    %3093 = vmatpush1.msra.mxu0 %v3054
    %3094 = vmatprep.subr.mxu0 0.0
    %3095 = vmatpush1.msra.mxu0 %v3055
    %3096 = vmatprep.subr.mxu0 0.0
    %3097 = vmatpush1.msra.mxu0 0.0
    %3098 = vmatprep.subr.mxu0 0.0
    %3099 = vmatpush1.msra.mxu0 0.0
    %3100 = vmatprep.subr.mxu0 0.0
    %3101 = vmatpush1.msra.mxu0 0.0
    %3102 = vmatprep.subr.mxu0 0.0
    %3103 = vmatpush1.msra.mxu0 0.0
    %3104 = vmatprep.subr.mxu0 0.0
    %3105 = vmatpush1.msra.mxu0 0.0
    %3106 = vmatprep.subr.mxu0 0.0
    %3107 = vmatpush1.msra.mxu0 0.0
    %3108 = vmatprep.subr.mxu0 0.0
    %3109 = vmatpush1.msra.mxu0 0.0
    %3110 = vmatprep.subr.mxu0 0.0
    %3111 = vmatpush1.msra.mxu0 0.0
    %3112 = vmatprep.subr.mxu0 0.0
    %3113 = vmatpush1.msra.mxu0 0.0
    %3114 = vmatprep.subr.mxu0 0.0
    %3115 = vmatpush1.msra.mxu0 0.0
    %3116 = vmatprep.subr.mxu0 0.0
    %3117 = vmatpush1.msra.mxu0 0.0
    %3118 = vmatprep.subr.mxu0 0.0
    %3119 = vmatpush1.msra.mxu0 0.0
    %3120 = vmatprep.subr.mxu0 0.0
    %3121 = vmatpush1.msra.mxu0 0.0
    %3122 = vmatprep.subr.mxu0 0.0
    %3123 = vmatpush1.msra.mxu0 0.0
    %3124 = vmatprep.subr.mxu0 0.0
    %3125 = vmatpush1.msra.mxu0 0.0
    %3126 = vmatprep.subr.mxu0 0.0
    %3127 = vmatpush1.msra.mxu0 0.0
    %3128 = vmatprep.mubr.f32.mxu0 0.0
    %3129 = vmatmul.mubr.f32.gmra.mrb[0].mxu0 %v3056
    %v3130 = vpop.f32.mrb[0].mxu0
    %v3131 = vadd.f32 %v3063, %v3130
    %v3132 = vpop.f32.mrb[0].mxu0
    %3133 = vmatprep.mubr.f32.mxu0 0.0
    %3134 = vmatmul.mubr.f32.gmra.mrb[0].mxu0 %v3057
    %v3135 = vpop.f32.mrb[0].mxu0
    %v3136 = vadd.f32 %v3063, %v3135
    %v3137 = vpop.f32.mrb[0].mxu0
    %3138 = vmatprep.mubr.f32.mxu0 0.0
    %3139 = vmatmul.mubr.f32.gmra.mrb[0].mxu0 %v3058
    %v3140 = vpop.f32.mrb[0].mxu0
    %v3141 = vadd.f32 %v3063, %v3140
    %v3142 = vpop.f32.mrb[0].mxu0
    %3143 = vdwg.mxu0
    %v3144 = vld [vmem:[%s12 + $0xe] sm:$0x1]
    %v3145 = vld [vmem:[%s12 + $0xf] sm:$0x1]
    %v3146 = vadd.f32 %v3131, %v3136
    %v3147 = vadd.f32 %v3146, %v3141
    %v3148 = vrot.slane %v3147, 4
    %v3149 = vadd.f32 %v3147, %v3148
    %v3150 = vrot.slane %v3149, 2
    %v3151 = vadd.f32 %v3149, %v3150
    %v3152 = vrot.slane %v3151, 1
    %v3153 = vadd.f32 %v3151, %v3152
    %v3154 = vmul.f32 %v3153, %v960
    %v3155 = vsub.f32 %v3131, %v3154
    %v3156 = vsub.f32 %v3136, %v3154
    %v3157 = vsub.f32 %v3141, %v3154
    %v3158 = vmul.f32 %v3155, %v3155
    %v3159 = vmul.f32 %v3156, %v3156
    %v3160 = vmul.f32 %v3157, %v3157
    %v3161 = vadd.f32 %v3158, %v3159
    %v3162 = vadd.f32 %v3161, %v3160
    %v3163 = vrot.slane %v3162, 4
    %v3164 = vadd.f32 %v3162, %v3163
    %v3165 = vrot.slane %v3164, 2
    %v3166 = vadd.f32 %v3164, %v3165
    %v3167 = vrot.slane %v3166, 1
    %v3168 = vadd.f32 %v3166, %v3167
    %v3169 = vmul.f32 %v3168, %v960
    %v3170 = vadd.f32 %v3169, 1e-05
    %v3171 = vrsqrt.pop %v3170
    %v3172 = vmul.f32 %v3155, %v3171
    %v3173 = vmul.f32 %v3156, %v3171
    %v3174 = vmul.f32 %v3157, %v3171
    %v3175 = vlaneseq
    %v3176 = vshrl.u32 %v3175, 7
    %v3177 = vsub.s32 0, %v3176
    %v3178 = vrot.slane %v3144, %v3177
    %v3179 = vmul.f32 %v3172, %v3178
    %v3180 = vmul.f32 %v3173, %v3178
    %v3181 = vmul.f32 %v3174, %v3178
    %v3182 = vlaneseq
    %v3183 = vshrl.u32 %v3182, 7
    %v3184 = vsub.s32 0, %v3183
    %v3185 = vrot.slane %v3145, %v3184
    %v3186 = vadd.f32 %v3179, %v3185
    %v3187 = vadd.f32 %v3180, %v3185
    %v3188 = vadd.f32 %v3181, %v3185
    %v3189 = vmax.f32 %v3186, 0.0
    %v3190 = vmax.f32 %v3187, 0.0
    %v3191 = vmax.f32 %v3188, 0.0
    %v3192 = vld [vmem:[#allocation7 + $0x100] sm:$0xff]
    %v3193 = vld [vmem:[#allocation7 + $0x108] sm:$0xff]
    %v3194 = vld [vmem:[#allocation7 + $0x110] sm:$0xff]
    %v3195 = vld [vmem:[#allocation7 + $0x118] sm:$0xff]
    %v3196 = vld [vmem:[#allocation7 + $0x120] sm:$0xff]
    %v3197 = vld [vmem:[#allocation7 + $0x128] sm:$0xff]
    %v3198 = vld [vmem:[#allocation7 + $0x130] sm:$0xff]
    %v3199 = vld [vmem:[#allocation7 + $0x138] sm:$0xff]
    %v3200 = vld [vmem:[#allocation7 + $0x140] sm:$0xff]
    %v3201 = vld [vmem:[#allocation7 + $0x148] sm:$0xff]
    %v3202 = vld [vmem:[#allocation7 + $0x150] sm:$0xff]
    %v3203 = vld [vmem:[#allocation7 + $0x158] sm:$0xff]
    %v3204 = vld [vmem:[#allocation7 + $0x160] sm:$0xff]
    %v3205 = vld [vmem:[#allocation7 + $0x168] sm:$0xff]
    %v3206 = vld [vmem:[#allocation7 + $0x170] sm:$0xff]
    %v3207 = vld [vmem:[#allocation7 + $0x178] sm:$0xff]
    %v3208 = vld [vmem:[%s12 + $0x10] sm:$0x1]
    %v3209 = vlaneseq
    %v3210 = vshrl.u32 %v3209, 7
    %v3211 = vsub.s32 0, %v3210
    %v3212 = vrot.slane %v3208, %v3211
    %3213 = vmatprep.subr.mxu0 0.0
    %3214 = vmatpush1.msra.mxu0 %v3192
    %3215 = vmatprep.subr.mxu0 0.0
    %3216 = vmatpush1.msra.mxu0 %v3193
    %3217 = vmatprep.subr.mxu0 0.0
    %3218 = vmatpush1.msra.mxu0 %v3194
    %3219 = vmatprep.subr.mxu0 0.0
    %3220 = vmatpush1.msra.mxu0 %v3195
    %3221 = vmatprep.subr.mxu0 0.0
    %3222 = vmatpush1.msra.mxu0 %v3196
    %3223 = vmatprep.subr.mxu0 0.0
    %3224 = vmatpush1.msra.mxu0 %v3197
    %3225 = vmatprep.subr.mxu0 0.0
    %3226 = vmatpush1.msra.mxu0 %v3198
    %3227 = vmatprep.subr.mxu0 0.0
    %3228 = vmatpush1.msra.mxu0 %v3199
    %3229 = vmatprep.subr.mxu0 0.0
    %3230 = vmatpush1.msra.mxu0 %v3200
    %3231 = vmatprep.subr.mxu0 0.0
    %3232 = vmatpush1.msra.mxu0 %v3201
    %3233 = vmatprep.subr.mxu0 0.0
    %3234 = vmatpush1.msra.mxu0 %v3202
    %3235 = vmatprep.subr.mxu0 0.0
    %3236 = vmatpush1.msra.mxu0 %v3203
    %3237 = vmatprep.subr.mxu0 0.0
    %3238 = vmatpush1.msra.mxu0 %v3204
    %3239 = vmatprep.subr.mxu0 0.0
    %3240 = vmatpush1.msra.mxu0 %v3205
    %3241 = vmatprep.subr.mxu0 0.0
    %3242 = vmatpush1.msra.mxu0 %v3206
    %3243 = vmatprep.subr.mxu0 0.0
    %3244 = vmatpush1.msra.mxu0 %v3207
    %3245 = vmatprep.subr.mxu0 0.0
    %3246 = vmatpush1.msra.mxu0 0.0
    %3247 = vmatprep.subr.mxu0 0.0
    %3248 = vmatpush1.msra.mxu0 0.0
    %3249 = vmatprep.subr.mxu0 0.0
    %3250 = vmatpush1.msra.mxu0 0.0
    %3251 = vmatprep.subr.mxu0 0.0
    %3252 = vmatpush1.msra.mxu0 0.0
    %3253 = vmatprep.subr.mxu0 0.0
    %3254 = vmatpush1.msra.mxu0 0.0
    %3255 = vmatprep.subr.mxu0 0.0
    %3256 = vmatpush1.msra.mxu0 0.0
    %3257 = vmatprep.subr.mxu0 0.0
    %3258 = vmatpush1.msra.mxu0 0.0
    %3259 = vmatprep.subr.mxu0 0.0
    %3260 = vmatpush1.msra.mxu0 0.0
    %3261 = vmatprep.subr.mxu0 0.0
    %3262 = vmatpush1.msra.mxu0 0.0
    %3263 = vmatprep.subr.mxu0 0.0
    %3264 = vmatpush1.msra.mxu0 0.0
    %3265 = vmatprep.subr.mxu0 0.0
    %3266 = vmatpush1.msra.mxu0 0.0
    %3267 = vmatprep.subr.mxu0 0.0
    %3268 = vmatpush1.msra.mxu0 0.0
    %3269 = vmatprep.subr.mxu0 0.0
    %3270 = vmatpush1.msra.mxu0 0.0
    %3271 = vmatprep.subr.mxu0 0.0
    %3272 = vmatpush1.msra.mxu0 0.0
    %3273 = vmatprep.subr.mxu0 0.0
    %3274 = vmatpush1.msra.mxu0 0.0
    %3275 = vmatprep.subr.mxu0 0.0
    %3276 = vmatpush1.msra.mxu0 0.0
    %3277 = vmatprep.mubr.f32.mxu0 0.0
    %3278 = vmatmul.mubr.f32.gmra.mrb[0].mxu0 %v3189
    %v3279 = vpop.f32.mrb[0].mxu0
    %v3280 = vadd.f32 %v3212, %v3279
    %v3281 = vpop.f32.mrb[0].mxu0
    %3282 = vmatprep.mubr.f32.mxu0 0.0
    %3283 = vmatmul.mubr.f32.gmra.mrb[0].mxu0 %v3190
    %v3284 = vpop.f32.mrb[0].mxu0
    %v3285 = vadd.f32 %v3212, %v3284
    %v3286 = vpop.f32.mrb[0].mxu0
    %3287 = vmatprep.mubr.f32.mxu0 0.0
    %3288 = vmatmul.mubr.f32.gmra.mrb[0].mxu0 %v3191
    %v3289 = vpop.f32.mrb[0].mxu0
    %v3290 = vadd.f32 %v3212, %v3289
    %v3291 = vpop.f32.mrb[0].mxu0
    %3292 = vdwg.mxu0
    %v3293 = vld [vmem:[%s12 + $0x11] sm:$0x1]
    %v3294 = vld [vmem:[%s12 + $0x12] sm:$0x1]
    %v3295 = vadd.f32 %v3280, %v3285
    %v3296 = vadd.f32 %v3295, %v3290
    %v3297 = vrot.slane %v3296, 4
    %v3298 = vadd.f32 %v3296, %v3297
    %v3299 = vrot.slane %v3298, 2
    %v3300 = vadd.f32 %v3298, %v3299
    %v3301 = vrot.slane %v3300, 1
    %v3302 = vadd.f32 %v3300, %v3301
    %v3303 = vmul.f32 %v3302, %v960
    %v3304 = vsub.f32 %v3280, %v3303
    %v3305 = vsub.f32 %v3285, %v3303
    %v3306 = vsub.f32 %v3290, %v3303
    %v3307 = vmul.f32 %v3304, %v3304
    %v3308 = vmul.f32 %v3305, %v3305
    %v3309 = vmul.f32 %v3306, %v3306
    %v3310 = vadd.f32 %v3307, %v3308
    %v3311 = vadd.f32 %v3310, %v3309
    %v3312 = vrot.slane %v3311, 4
    %v3313 = vadd.f32 %v3311, %v3312
    %v3314 = vrot.slane %v3313, 2
    %v3315 = vadd.f32 %v3313, %v3314
    %v3316 = vrot.slane %v3315, 1
    %v3317 = vadd.f32 %v3315, %v3316
    %v3318 = vmul.f32 %v3317, %v960
    %v3319 = vadd.f32 %v3318, 1e-05
    %v3320 = vrsqrt.pop %v3319
    %v3321 = vmul.f32 %v3304, %v3320
    %v3322 = vmul.f32 %v3305, %v3320
    %v3323 = vmul.f32 %v3306, %v3320
    %v3324 = vlaneseq
    %v3325 = vshrl.u32 %v3324, 7
    %v3326 = vsub.s32 0, %v3325
    %v3327 = vrot.slane %v3293, %v3326
    %v3328 = vmul.f32 %v3321, %v3327
    %v3329 = vmul.f32 %v3322, %v3327
    %v3330 = vmul.f32 %v3323, %v3327
    %v3331 = vlaneseq
    %v3332 = vshrl.u32 %v3331, 7
    %v3333 = vsub.s32 0, %v3332
    %v3334 = vrot.slane %v3294, %v3333
    %v3335 = vadd.f32 %v3328, %v3334
    %v3336 = vadd.f32 %v3329, %v3334
    %v3337 = vadd.f32 %v3330, %v3334
    %v3339 = vsel %vm457, %v108, 0
    %3341 = vmatprep.subr.mxu0 0.0
    %3342 = vmatpush1.msra.mxu0 %v3335
    %3343 = vmatprep.subr.mxu0 0.0
    %3344 = vmatpush1.msra.mxu0 %v3336
    %3345 = vmatprep.subr.mxu0 0.0
    %3346 = vmatpush1.msra.mxu0 %v3337
    %3347 = vmatprep.subr.mxu0 0.0
    %3348 = vmatpush1.msra.mxu0 0.0
    %3349 = vmatprep.subr.mxu0 0.0
    %3350 = vmatpush1.msra.mxu0 0.0
    %3351 = vmatprep.subr.mxu0 0.0
    %3352 = vmatpush1.msra.mxu0 0.0
    %3353 = vmatprep.subr.mxu0 0.0
    %3354 = vmatpush1.msra.mxu0 0.0
    %3355 = vmatprep.subr.mxu0 0.0
    %3356 = vmatpush1.msra.mxu0 0.0
    %3357 = vmatprep.subr.mxu0 0.0
    %3358 = vmatpush1.msra.mxu0 0.0
    %3359 = vmatprep.subr.mxu0 0.0
    %3360 = vmatpush1.msra.mxu0 0.0
    %3361 = vmatprep.subr.mxu0 0.0
    %3362 = vmatpush1.msra.mxu0 0.0
    %3363 = vmatprep.subr.mxu0 0.0
    %3364 = vmatpush1.msra.mxu0 0.0
    %3365 = vmatprep.subr.mxu0 0.0
    %3366 = vmatpush1.msra.mxu0 0.0
    %3367 = vmatprep.subr.mxu0 0.0
    %3368 = vmatpush1.msra.mxu0 0.0
    %3369 = vmatprep.subr.mxu0 0.0
    %3370 = vmatpush1.msra.mxu0 0.0
    %3371 = vmatprep.subr.mxu0 0.0
    %3372 = vmatpush1.msra.mxu0 0.0
    %3373 = vmatprep.subr.mxu0 0.0
    %3374 = vmatpush1.msra.mxu0 0.0
    %3375 = vmatprep.subr.mxu0 0.0
    %3376 = vmatpush1.msra.mxu0 0.0
    %3377 = vmatprep.subr.mxu0 0.0
    %3378 = vmatpush1.msra.mxu0 0.0
    %3379 = vmatprep.subr.mxu0 0.0
    %3380 = vmatpush1.msra.mxu0 0.0
    %3381 = vmatprep.subr.mxu0 0.0
    %3382 = vmatpush1.msra.mxu0 0.0
    %3383 = vmatprep.subr.mxu0 0.0
    %3384 = vmatpush1.msra.mxu0 0.0
    %3385 = vmatprep.subr.mxu0 0.0
    %3386 = vmatpush1.msra.mxu0 0.0
    %3387 = vmatprep.subr.mxu0 0.0
    %3388 = vmatpush1.msra.mxu0 0.0
    %3389 = vmatprep.subr.mxu0 0.0
    %3390 = vmatpush1.msra.mxu0 0.0
    %3391 = vmatprep.subr.mxu0 0.0
    %3392 = vmatpush1.msra.mxu0 0.0
    %3393 = vmatprep.subr.mxu0 0.0
    %3394 = vmatpush1.msra.mxu0 0.0
    %3395 = vmatprep.subr.mxu0 0.0
    %3396 = vmatpush1.msra.mxu0 0.0
    %3397 = vmatprep.subr.mxu0 0.0
    %3398 = vmatpush1.msra.mxu0 0.0
    %3399 = vmatprep.subr.mxu0 0.0
    %3400 = vmatpush1.msra.mxu0 0.0
    %3401 = vmatprep.subr.mxu0 0.0
    %3402 = vmatpush1.msra.mxu0 0.0
    %3403 = vmatprep.subr.mxu0 0.0
    %3404 = vmatpush1.msra.mxu0 0.0
    %3405 = vmatprep.mubr.f32.mxu0 0.0
    %3406 = vmatmul.mubr.f32.gmra.mrb[0].mxu0 %v3339
    %v3407 = vpop.f32.mrb[0].mxu0
    %v3408 = vadd.f32 0.0, %v3407
    %v3409 = vpop.f32.mrb[0].mxu0
    %3410 = vdwg.mxu0
    %v3411 = vld [vmem:[#allocation8] sm:$0xff]
    %v3412 = vld [vmem:[#allocation8 + $0x10] sm:$0xff]
    %v3413 = vld [vmem:[#allocation8 + $0x20] sm:$0xff]
    %v3414 = vld [vmem:[#allocation8 + $0x30] sm:$0xff]
    %v3415 = vld [vmem:[#allocation8 + $0x40] sm:$0xff]
    %v3416 = vld [vmem:[#allocation8 + $0x50] sm:$0xff]
    %v3417 = vld [vmem:[#allocation8 + $0x60] sm:$0xff]
    %v3418 = vld [vmem:[#allocation8 + $0x70] sm:$0xff]
    %v3419 = vld [vmem:[#allocation8 + $0x80] sm:$0xff]
    %v3420 = vld [vmem:[#allocation8 + $0x90] sm:$0xff]
    %v3421 = vld [vmem:[#allocation8 + $0xa0] sm:$0xff]
    %v3422 = vld [vmem:[#allocation8 + $0xb0] sm:$0xff]
    %v3423 = vld [vmem:[#allocation8 + $0xc0] sm:$0xff]
    %v3424 = vld [vmem:[#allocation8 + $0xd0] sm:$0xff]
    %v3425 = vld [vmem:[#allocation8 + $0xe0] sm:$0xff]
    %v3426 = vld [vmem:[#allocation8 + $0xf0] sm:$0xff]
    %v3427 = vld [vmem:[%s12 + $0x47] sm:$0x1]
    %v3428 = vlaneseq
    %v3429 = vshrl.u32 %v3428, 7
    %v3430 = vsub.s32 0, %v3429
    %v3431 = vrot.slane %v3427, %v3430
    %3432 = vmatprep.subr.mxu0 0.0
    %3433 = vmatpush1.msra.mxu0 %v3411
    %3434 = vmatprep.subr.mxu0 0.0
    %3435 = vmatpush1.msra.mxu0 %v3412
    %3436 = vmatprep.subr.mxu0 0.0
    %3437 = vmatpush1.msra.mxu0 %v3413
    %3438 = vmatprep.subr.mxu0 0.0
    %3439 = vmatpush1.msra.mxu0 %v3414
    %3440 = vmatprep.subr.mxu0 0.0
    %3441 = vmatpush1.msra.mxu0 %v3415
    %3442 = vmatprep.subr.mxu0 0.0
    %3443 = vmatpush1.msra.mxu0 %v3416
    %3444 = vmatprep.subr.mxu0 0.0
    %3445 = vmatpush1.msra.mxu0 %v3417
    %3446 = vmatprep.subr.mxu0 0.0
    %3447 = vmatpush1.msra.mxu0 %v3418
    %3448 = vmatprep.subr.mxu0 0.0
    %3449 = vmatpush1.msra.mxu0 %v3419
    %3450 = vmatprep.subr.mxu0 0.0
    %3451 = vmatpush1.msra.mxu0 %v3420
    %3452 = vmatprep.subr.mxu0 0.0
    %3453 = vmatpush1.msra.mxu0 %v3421
    %3454 = vmatprep.subr.mxu0 0.0
    %3455 = vmatpush1.msra.mxu0 %v3422
    %3456 = vmatprep.subr.mxu0 0.0
    %3457 = vmatpush1.msra.mxu0 %v3423
    %3458 = vmatprep.subr.mxu0 0.0
    %3459 = vmatpush1.msra.mxu0 %v3424
    %3460 = vmatprep.subr.mxu0 0.0
    %3461 = vmatpush1.msra.mxu0 %v3425
    %3462 = vmatprep.subr.mxu0 0.0
    %3463 = vmatpush1.msra.mxu0 %v3426
    %3464 = vmatprep.subr.mxu0 0.0
    %3465 = vmatpush1.msra.mxu0 0.0
    %3466 = vmatprep.subr.mxu0 0.0
    %3467 = vmatpush1.msra.mxu0 0.0
    %3468 = vmatprep.subr.mxu0 0.0
    %3469 = vmatpush1.msra.mxu0 0.0
    %3470 = vmatprep.subr.mxu0 0.0
    %3471 = vmatpush1.msra.mxu0 0.0
    %3472 = vmatprep.subr.mxu0 0.0
    %3473 = vmatpush1.msra.mxu0 0.0
    %3474 = vmatprep.subr.mxu0 0.0
    %3475 = vmatpush1.msra.mxu0 0.0
    %3476 = vmatprep.subr.mxu0 0.0
    %3477 = vmatpush1.msra.mxu0 0.0
    %3478 = vmatprep.subr.mxu0 0.0
    %3479 = vmatpush1.msra.mxu0 0.0
    %3480 = vmatprep.subr.mxu0 0.0
    %3481 = vmatpush1.msra.mxu0 0.0
    %3482 = vmatprep.subr.mxu0 0.0
    %3483 = vmatpush1.msra.mxu0 0.0
    %3484 = vmatprep.subr.mxu0 0.0
    %3485 = vmatpush1.msra.mxu0 0.0
    %3486 = vmatprep.subr.mxu0 0.0
    %3487 = vmatpush1.msra.mxu0 0.0
    %3488 = vmatprep.subr.mxu0 0.0
    %3489 = vmatpush1.msra.mxu0 0.0
    %3490 = vmatprep.subr.mxu0 0.0
    %3491 = vmatpush1.msra.mxu0 0.0
    %3492 = vmatprep.subr.mxu0 0.0
    %3493 = vmatpush1.msra.mxu0 0.0
    %3494 = vmatprep.subr.mxu0 0.0
    %3495 = vmatpush1.msra.mxu0 0.0
    %3496 = vmatprep.mubr.f32.mxu0 0.0
    %3497 = vmatmul.mubr.f32.gmra.mrb[0].mxu0 %v3408
    %v3498 = vpop.f32.mrb[0].mxu0
    %v3499 = vadd.f32 %v3431, %v3498
    %v3500 = vpop.f32.mrb[0].mxu0
    %3501 = vdwg.mxu0
    %v3502 = vmax.f32 %v3499, 0.0
    %v3503 = vld [vmem:[#allocation8 + $0x8] sm:$0xff]
    %v3504 = vld [vmem:[#allocation8 + $0x18] sm:$0xff]
    %v3505 = vld [vmem:[#allocation8 + $0x28] sm:$0xff]
    %v3506 = vld [vmem:[#allocation8 + $0x38] sm:$0xff]
    %v3507 = vld [vmem:[#allocation8 + $0x48] sm:$0xff]
    %v3508 = vld [vmem:[#allocation8 + $0x58] sm:$0xff]
    %v3509 = vld [vmem:[#allocation8 + $0x68] sm:$0xff]
    %v3510 = vld [vmem:[#allocation8 + $0x78] sm:$0xff]
    %v3511 = vld [vmem:[#allocation8 + $0x88] sm:$0xff]
    %v3512 = vld [vmem:[#allocation8 + $0x98] sm:$0xff]
    %v3513 = vld [vmem:[#allocation8 + $0xa8] sm:$0xff]
    %v3514 = vld [vmem:[#allocation8 + $0xb8] sm:$0xff]
    %v3515 = vld [vmem:[#allocation8 + $0xc8] sm:$0xff]
    %v3516 = vld [vmem:[#allocation8 + $0xd8] sm:$0xff]
    %v3517 = vld [vmem:[#allocation8 + $0xe8] sm:$0xff]
    %v3518 = vld [vmem:[#allocation8 + $0xf8] sm:$0xff]
    %v3519 = vld [vmem:[%s12 + $0x48] sm:$0x1]
    %v3520 = vlaneseq
    %v3521 = vshrl.u32 %v3520, 7
    %v3522 = vsub.s32 0, %v3521
    %v3523 = vrot.slane %v3519, %v3522
    %3524 = vmatprep.subr.mxu0 0.0
    %3525 = vmatpush1.msra.mxu0 %v3503
    %3526 = vmatprep.subr.mxu0 0.0
    %3527 = vmatpush1.msra.mxu0 %v3504
    %3528 = vmatprep.subr.mxu0 0.0
    %3529 = vmatpush1.msra.mxu0 %v3505
    %3530 = vmatprep.subr.mxu0 0.0
    %3531 = vmatpush1.msra.mxu0 %v3506
    %3532 = vmatprep.subr.mxu0 0.0
    %3533 = vmatpush1.msra.mxu0 %v3507
    %3534 = vmatprep.subr.mxu0 0.0
    %3535 = vmatpush1.msra.mxu0 %v3508
    %3536 = vmatprep.subr.mxu0 0.0
    %3537 = vmatpush1.msra.mxu0 %v3509
    %3538 = vmatprep.subr.mxu0 0.0
    %3539 = vmatpush1.msra.mxu0 %v3510
    %3540 = vmatprep.subr.mxu0 0.0
    %3541 = vmatpush1.msra.mxu0 %v3511
    %3542 = vmatprep.subr.mxu0 0.0
    %3543 = vmatpush1.msra.mxu0 %v3512
    %3544 = vmatprep.subr.mxu0 0.0
    %3545 = vmatpush1.msra.mxu0 %v3513
    %3546 = vmatprep.subr.mxu0 0.0
    %3547 = vmatpush1.msra.mxu0 %v3514
    %3548 = vmatprep.subr.mxu0 0.0
    %3549 = vmatpush1.msra.mxu0 %v3515
    %3550 = vmatprep.subr.mxu0 0.0
    %3551 = vmatpush1.msra.mxu0 %v3516
    %3552 = vmatprep.subr.mxu0 0.0
    %3553 = vmatpush1.msra.mxu0 %v3517
    %3554 = vmatprep.subr.mxu0 0.0
    %3555 = vmatpush1.msra.mxu0 %v3518
    %3556 = vmatprep.subr.mxu0 0.0
    %3557 = vmatpush1.msra.mxu0 0.0
    %3558 = vmatprep.subr.mxu0 0.0
    %3559 = vmatpush1.msra.mxu0 0.0
    %3560 = vmatprep.subr.mxu0 0.0
    %3561 = vmatpush1.msra.mxu0 0.0
    %3562 = vmatprep.subr.mxu0 0.0
    %3563 = vmatpush1.msra.mxu0 0.0
    %3564 = vmatprep.subr.mxu0 0.0
    %3565 = vmatpush1.msra.mxu0 0.0
    %3566 = vmatprep.subr.mxu0 0.0
    %3567 = vmatpush1.msra.mxu0 0.0
    %3568 = vmatprep.subr.mxu0 0.0
    %3569 = vmatpush1.msra.mxu0 0.0
    %3570 = vmatprep.subr.mxu0 0.0
    %3571 = vmatpush1.msra.mxu0 0.0
    %3572 = vmatprep.subr.mxu0 0.0
    %3573 = vmatpush1.msra.mxu0 0.0
    %3574 = vmatprep.subr.mxu0 0.0
    %3575 = vmatpush1.msra.mxu0 0.0
    %3576 = vmatprep.subr.mxu0 0.0
    %3577 = vmatpush1.msra.mxu0 0.0
    %3578 = vmatprep.subr.mxu0 0.0
    %3579 = vmatpush1.msra.mxu0 0.0
    %3580 = vmatprep.subr.mxu0 0.0
    %3581 = vmatpush1.msra.mxu0 0.0
    %3582 = vmatprep.subr.mxu0 0.0
    %3583 = vmatpush1.msra.mxu0 0.0
    %3584 = vmatprep.subr.mxu0 0.0
    %3585 = vmatpush1.msra.mxu0 0.0
    %3586 = vmatprep.subr.mxu0 0.0
    %3587 = vmatpush1.msra.mxu0 0.0
    %3588 = vmatprep.mubr.f32.mxu0 0.0
    %3589 = vmatmul.mubr.f32.gmra.mrb[0].mxu0 %v3502
    %v3590 = vpop.f32.mrb[0].mxu0
    %v3591 = vadd.f32 %v3523, %v3590
    %v3592 = vpop.f32.mrb[0].mxu0
    %3593 = vdwg.mxu0
    %3594 = vst [vmem:[#allocation10] sm:$0x3] %v3591
    // Predicated region
    $region70: #{tpu_custom_call.1} parent=1 // pred_check
      _
    $region71: #{tpu_custom_call.1} parent=1 // pred_check_branch
      %3596 = sbr.rel (0) target = $region73
    $region72: #{tpu_custom_call.1} parent=1 // pred_region
      %s3598 = ssub.s32 32, 32
      %3599 = vsyncadd [#allocation4], %s3598
      %s3601 = sshll.u32 [#allocation10], 4
      %s3602 = int_to_ptr.vmem [resolvable:$true] %s3601
      %3604 = dma.vmem_to_hbm [thread:$0]  %s3602, 32, %s13, [#allocation4]
    $region73: #{tpu_custom_call.1} parent=1 // pred_fallthru
      _
    // Predicated region
    $region74: #{tpu_custom_call.1} parent=1 // pred_check
      _
    $region75: #{tpu_custom_call.1} parent=1 // pred_check_branch
      %3606 = sbr.rel (0) target = $region77
    $region76: #{tpu_custom_call.1} parent=1 // pred_region
      %3607 = dma.done [#allocation4], 32
    $region77: #{tpu_custom_call.1} parent=1 // pred_fallthru
      _
    %3608 = vsyncpa [#allocation3], 1
    %3609 = vsyncpa [#allocation6], 1
    %3610 = vsyncpa [#allocation9], 1
    %3611 = vsyncpa [#allocation4], 1

</llo_original>
